<compile_context>
chip_gen: v7x
topology: tpu7x:2x2x1
jax: 0.10.0
libtpu: 0.0.40
codegen_flags: <defaults>
</compile_context>

<pallas_src>
from functools import partial

import jax
import jax.numpy as jnp
from jax import lax
from jax.experimental import pallas as pl
from jax.experimental.pallas import tpu as pltpu


def _round_up(x: int, m: int) -> int:
    return ((x + m - 1) // m) * m


# ---------------------------------------------------------------------------
# Fused kernel: all BENN layers in one invocation.
#   per layer: y = ((x*r) @ W [+ x if skip]) * s + b*s ; relu on hidden layers
# which equals PyTorch's  x = act(((x*r) @ W + b [+ x]) * s).
# ---------------------------------------------------------------------------
def _benn_fused_kernel(x_ref, *refs, relu_flags, skip_flags, matmul_dtype):
    L = len(relu_flags)
    o_ref = refs[4 * L]
    E, Nt, _ = x_ref.shape
    cast_lhs = jnp.dtype(matmul_dtype) != jnp.dtype(jnp.float32)

    x = x_ref[...].astype(jnp.float32)               # activations stay on-chip

    for l in range(L):                               # static unroll over layers
        w_ref, r_ref, s_ref, bs_ref = refs[4 * l:4 * l + 4]
        xr = x * r_ref[...]                          # [E,Nt,Din]*[E,1,Din]  (VPU)
        lhs = xr.reshape(E * Nt, xr.shape[-1])       # fold ensemble into MXU M dim
        dot_kwargs = dict(preferred_element_type=jnp.float32)
        if cast_lhs:
            lhs = lhs.astype(matmul_dtype)           # bf16 operands (W pre-cast)
        else:
            dot_kwargs["precision"] = lax.Precision.HIGHEST
        acc = jnp.dot(lhs, w_ref[...], **dot_kwargs)
        acc = acc.reshape(E, Nt, acc.shape[-1])
        if skip_flags[l]:                            # static; padded widths match
            acc = acc + x                            # skip add BEFORE the *s scale
        y = acc * s_ref[...] + bs_ref[...]           # fused FMA epilogue (f32)
        if relu_flags[l]:
            y = jnp.maximum(y, 0.0)
        x = y

    o_ref[...] = x.astype(o_ref.dtype)               # lane-dense store


# ---------------------------------------------------------------------------
# Parameter packing: per-layer 128-lane padding, W pre-cast to matmul_dtype.
# ---------------------------------------------------------------------------
def pack_benn_params(params, skip_con=False, matmul_dtype=jnp.float32):
    E = params[0]["r"].shape[0]
    dims = [params[0]["w"].shape[0]] + [p["w"].shape[1] for p in params]
    qdims = [dims[0]] + [_round_up(d, 128) for d in dims[1:]]
    if skip_con and dims[0] == dims[1]:
        qdims[0] = qdims[1]          # layer-0 skip add needs matching padded widths

    flat, relu_flags, skip_flags = [], [], []
    for l, p in enumerate(params):
        din, dout = p["w"].shape
        qin, qout = qdims[l], qdims[l + 1]
        w = jnp.zeros((qin, qout), matmul_dtype).at[:din, :dout].set(
            p["w"].astype(matmul_dtype))             # matmul dtype at pack time
        r = jnp.zeros((E, 1, qin), jnp.float32).at[:, :, :din].set(
            p["r"].astype(jnp.float32))
        s = jnp.zeros((E, 1, qout), jnp.float32).at[:, :, :dout].set(
            p["s"].astype(jnp.float32))
        bs = jnp.zeros((E, 1, qout), jnp.float32).at[:, :, :dout].set(
            (p["b"] * p["s"]).astype(jnp.float32))   # precomputed b*s (f32)
        flat += [w, r, s, bs]
        relu_flags.append(bool(p["relu"]))
        skip_flags.append(bool(skip_con and din == dout))
    return flat, tuple(relu_flags), tuple(skip_flags), qdims


# ---------------------------------------------------------------------------
# VMEM-aware, multi-core-friendly row tiling.
# ---------------------------------------------------------------------------
def _choose_row_tiling(n_rows_real, row_mult, max_tile, fits_vmem):
    n_rows = _round_up(n_rows_real, row_mult)
    tile = max(row_mult, (min(n_rows, max_tile) // row_mult) * row_mult)
    while tile > row_mult and not fits_vmem(tile):   # shrink until it fits VMEM
        tile = max(row_mult, ((tile // 2) // row_mult) * row_mult)
    n_tiles = pl.cdiv(n_rows, tile)
    if n_tiles == 1 and n_rows >= 2 * row_mult:      # v7x: feed both TensorCores
        tile = _round_up(pl.cdiv(n_rows, 2), row_mult)
    elif n_tiles > 1 and n_tiles % 2 == 1:           # prefer an even tile count
        cand = _round_up(pl.cdiv(n_rows, n_tiles + 1), row_mult)
        if fits_vmem(cand):
            tile = cand
    n_pad = tile * pl.cdiv(n_rows, tile)             # grid always divides evenly
    return tile, n_pad


# ---------------------------------------------------------------------------
# BENN forward: one fused pallas_call
# ---------------------------------------------------------------------------
def benn_forward(params, x, skip_con=False, matmul_dtype=jnp.float32,
                 max_row_tile=1024):
    """x: [E, N, n_in] -> [E, N, n_out]   (E == n_ens)."""
    E, N, n_in = x.shape
    n_out = params[-1]["w"].shape[1]
    L = len(params)
    flat, relu_flags, skip_flags, qdims = pack_benn_params(
        params, skip_con, matmul_dtype)
    q_in, q_out, q_max = qdims[0], qdims[-1], max(qdims)

    x_isz = jnp.dtype(x.dtype).itemsize
    row_mult = max(8, 32 // x_isz)                   # 8 rows f32, 16 bf16, 32 int8

    # ---- VMEM budget (v7x: 64 MiB, v5e/v6e: 128 MiB) and tile selection ----
    try:
        vmem_cap = int(getattr(pltpu.get_tpu_info(), "vmem_capacity_bytes",
                               64 << 20))
    except Exception:
        vmem_cap = 64 << 20                          # conservative (v7x) fallback
    vmem_budget = (vmem_cap * 7) // 10               # leave compiler headroom
    param_bytes = sum(int(a.size) * jnp.dtype(a.dtype).itemsize for a in flat)

    def _fits(tile):
        act = 2 * E * tile * (_round_up(q_in, 128) + q_out) * x_isz  # dbl-buf I/O
        tmp = 3 * E * tile * q_max * 4                               # live f32 temps
        return act + tmp + 2 * param_bytes <= vmem_budget

    tile_n, n_pad = _choose_row_tiling(N, row_mult, max_row_tile, _fits)
    grid = (n_pad // tile_n,)

    # Pad only what is needed: rows up to the tile boundary, lanes only when a
    # layer-0 skip connection forces q_in > n_in.  No full-width x_pad in HBM.
    if n_pad != N or q_in != n_in:
        x_in = jnp.zeros((E, n_pad, q_in), x.dtype).at[:, :N, :n_in].set(x)
    else:
        x_in = x

    flops = 2 * E * N * sum(p["w"].shape[0] * p["w"].shape[1] for p in params)
    bytes_accessed = int(x_in.size * x_isz + E * n_pad * q_out * x_isz
                         + param_bytes)
    vmem_limit = int(vmem_cap * 3 // 4)

    kernel = partial(_benn_fused_kernel, relu_flags=relu_flags,
                     skip_flags=skip_flags, matmul_dtype=matmul_dtype)

    def _const_map(rank):
        return (lambda n: (0, 0)) if rank == 2 else (lambda n: (0, 0, 0))

    def _run(single_buffer_params):
        def _pspec(shape):
            if single_buffer_params:
                return pl.BlockSpec(shape, _const_map(len(shape)),
                                    pipeline_mode=pl.Buffered(1))
            return pl.BlockSpec(shape, _const_map(len(shape)))

        in_specs = [pl.BlockSpec((E, tile_n, q_in), lambda n: (0, n, 0))]
        in_specs += [_pspec(a.shape) for a in flat]

        out = pl.pallas_call(
            kernel,
            out_shape=jax.ShapeDtypeStruct((E, n_pad, q_out), x.dtype),
            grid=grid,
            in_specs=in_specs,
            out_specs=pl.BlockSpec((E, tile_n, q_out), lambda n: (0, n, 0)),
            compiler_params=pltpu.CompilerParams(
                dimension_semantics=("parallel",),
                vmem_limit_bytes=vmem_limit),
            cost_estimate=pl.CostEstimate(flops=int(flops), transcendentals=0,
                                          bytes_accessed=bytes_accessed),
        )(x_in, *flat)
        return jax.block_until_ready(out)

    try:
        out_pad = _run(single_buffer_params=True)
    except Exception:
        # Some jax versions reject single-buffered (Buffered(1)) resident inputs;
        # fall back to the default double-buffered pipeline.
        out_pad = _run(single_buffer_params=False)

    return out_pad[:, :N, :n_out]                    # drop row / lane padding


# ---------------------------------------------------------------------------
# Parameter construction (mirrors BENN.__init__/reset_parameters)
# ---------------------------------------------------------------------------
def init_benn_params(key, n_ens, n_in, n_out, n_hid_layers=2, n_hidden=32,
                     gain=1.0, dtype=jnp.float32):
    layers_dim = [n_in] + n_hid_layers * [n_hidden] + [n_out]
    params = []
    for i, (din, dout) in enumerate(zip(layers_dim[:-1], layers_dim[1:])):
        key, kw, kb, kr, ks = jax.random.split(key, 5)
        bound_w = gain * (6.0 / (din + dout)) ** 0.5          # xavier_uniform_
        w = jax.random.uniform(kw, (din, dout), dtype, -bound_w, bound_w)
        bound_b = 1.0 / (dout ** 0.5)                         # torch fan_in = size(1)
        b = jax.random.uniform(kb, (1, dout), dtype, -bound_b, bound_b)
        r = 1.0 + 0.25 * jax.random.normal(kr, (n_ens, 1, din), dtype)
        s = 1.0 + 0.25 * jax.random.normal(ks, (n_ens, 1, dout), dtype)
        params.append(dict(w=w, b=b, r=r, s=s, relu=(i < n_hid_layers)))
    return params


# Pure-JAX reference (mirrors BENN.draw_f) for verification.
def benn_forward_ref(params, x, skip_con=False):
    for p in params:
        x_ = jnp.dot(x * p["r"], p["w"],
                     precision=lax.Precision.HIGHEST) + p["b"]
        if skip_con and x.shape == x_.shape:
            x_ = x_ + x
        x = x_ * p["s"]
        if p["relu"]:
            x = jnp.maximum(x, 0.0)
    return x


if __name__ == "__main__":
    # Small shapes consistent with BENN.forward: x is [L, N, n_in], L == n_ens.
    n_ens, N, n_in, n_hidden, n_out = 4, 8, 4, 32, 4

    key = jax.random.PRNGKey(0)
    kp, kx = jax.random.split(key)
    params = init_benn_params(kp, n_ens, n_in, n_out,
                              n_hid_layers=2, n_hidden=n_hidden)
    x = jax.random.normal(kx, (n_ens, N, n_in), jnp.float32)

    # f32 matmul path (matches the reference)
    out = jax.block_until_ready(benn_forward(params, x))
    ref = benn_forward_ref(params, x)
    assert out.shape == (n_ens, N, n_out)
    assert jnp.allclose(out, ref, atol=1e-4, rtol=1e-4), "f32 mismatch vs reference"

    # skip-connection path (skip add before *s, only on true Din==Dout layers)
    out_sc = jax.block_until_ready(benn_forward(params, x, skip_con=True))
    ref_sc = benn_forward_ref(params, x, skip_con=True)
    assert jnp.allclose(out_sc, ref_sc, atol=1e-4, rtol=1e-4), "skip_con mismatch"

    # bf16 MXU fast path (v6e/v7x): bf16 operands, f32 accumulate + f32 epilogue
    out_bf = jax.block_until_ready(
        benn_forward(params, x, matmul_dtype=jnp.bfloat16))
    assert jnp.allclose(out_bf, ref, atol=2e-1, rtol=2e-1), "bf16 path diverged"

    print("KERNEL_OK")
</pallas_src>

<mosaic_0001>
module attributes {stable_mosaic.version = 11 : i64} {
  func.func @_benn_fused_kernel(%arg0: i32, %arg1: memref<4x8x4xf32, #tpu.memory_space<vmem>>, %arg2: memref<4x128xf32, #tpu.memory_space<vmem>>, %arg3: memref<4x1x4xf32, #tpu.memory_space<vmem>>, %arg4: memref<4x1x128xf32, #tpu.memory_space<vmem>>, %arg5: memref<4x1x128xf32, #tpu.memory_space<vmem>>, %arg6: memref<128x128xf32, #tpu.memory_space<vmem>>, %arg7: memref<4x1x128xf32, #tpu.memory_space<vmem>>, %arg8: memref<4x1x128xf32, #tpu.memory_space<vmem>>, %arg9: memref<4x1x128xf32, #tpu.memory_space<vmem>>, %arg10: memref<128x128xf32, #tpu.memory_space<vmem>>, %arg11: memref<4x1x128xf32, #tpu.memory_space<vmem>>, %arg12: memref<4x1x128xf32, #tpu.memory_space<vmem>>, %arg13: memref<4x1x128xf32, #tpu.memory_space<vmem>>, %arg14: memref<4x8x128xf32, #tpu.memory_space<vmem>>) attributes {dimension_semantics = [#tpu.dimension_semantics<parallel>], iteration_bounds = array<i64: 1>, scalar_prefetch = 0 : i64, scratch_operands = 0 : i64, tpu.core_type = #tpu.core_type<tc>, window_params = [{transform_indices = @transform_0, window_bounds = array<i64: 4, 8, 4>}, {pipeline_mode = #tpu.pipeline_mode<synchronous>, transform_indices = @transform_1, window_bounds = array<i64: 4, 128>}, {pipeline_mode = #tpu.pipeline_mode<synchronous>, transform_indices = @transform_2, window_bounds = array<i64: 4, 1, 4>}, {pipeline_mode = #tpu.pipeline_mode<synchronous>, transform_indices = @transform_3, window_bounds = array<i64: 4, 1, 128>}, {pipeline_mode = #tpu.pipeline_mode<synchronous>, transform_indices = @transform_4, window_bounds = array<i64: 4, 1, 128>}, {pipeline_mode = #tpu.pipeline_mode<synchronous>, transform_indices = @transform_5, window_bounds = array<i64: 128, 128>}, {pipeline_mode = #tpu.pipeline_mode<synchronous>, transform_indices = @transform_6, window_bounds = array<i64: 4, 1, 128>}, {pipeline_mode = #tpu.pipeline_mode<synchronous>, transform_indices = @transform_7, window_bounds = array<i64: 4, 1, 128>}, {pipeline_mode = #tpu.pipeline_mode<synchronous>, transform_indices = @transform_8, window_bounds = array<i64: 4, 1, 128>}, {pipeline_mode = #tpu.pipeline_mode<synchronous>, transform_indices = @transform_9, window_bounds = array<i64: 128, 128>}, {pipeline_mode = #tpu.pipeline_mode<synchronous>, transform_indices = @transform_10, window_bounds = array<i64: 4, 1, 128>}, {pipeline_mode = #tpu.pipeline_mode<synchronous>, transform_indices = @transform_11, window_bounds = array<i64: 4, 1, 128>}, {pipeline_mode = #tpu.pipeline_mode<synchronous>, transform_indices = @transform_12, window_bounds = array<i64: 4, 1, 128>}, {transform_indices = @transform_13, window_bounds = array<i64: 4, 8, 128>}]} {
    %c0 = arith.constant 0 : index
    %c0_0 = arith.constant 0 : index
    %c0_1 = arith.constant 0 : index
    %0 = vector.load %arg1[%c0, %c0_0, %c0_1] : memref<4x8x4xf32, #tpu.memory_space<vmem>>, vector<4x8x4xf32>
    %c0_2 = arith.constant 0 : index
    %c0_3 = arith.constant 0 : index
    %c0_4 = arith.constant 0 : index
    %1 = vector.load %arg3[%c0_2, %c0_3, %c0_4] : memref<4x1x4xf32, #tpu.memory_space<vmem>>, vector<4x1x4xf32>
    %2 = vector.broadcast %1 : vector<4x1x4xf32> to vector<4x8x4xf32>
    %3 = arith.mulf %0, %2 : vector<4x8x4xf32>
    %4 = vector.shape_cast %3 : vector<4x8x4xf32> to vector<32x4xf32>
    %c0_5 = arith.constant 0 : index
    %c0_6 = arith.constant 0 : index
    %5 = vector.load %arg2[%c0_5, %c0_6] : memref<4x128xf32, #tpu.memory_space<vmem>>, vector<4x128xf32>
    %cst = arith.constant dense<0.000000e+00> : vector<32x128xf32>
    %6 = tpu.matmul %4, %5, %cst {dimension_numbers = #tpu.dot_dimension_numbers<[1], [0], [0], [1], [0, 0, 1, 1], [], []>, precision = #tpu.contract_precision<fp32>} : vector<32x4xf32>, vector<4x128xf32>, vector<32x128xf32> -> vector<32x128xf32>
    %7 = vector.shape_cast %6 : vector<32x128xf32> to vector<4x8x128xf32>
    %c0_7 = arith.constant 0 : index
    %c0_8 = arith.constant 0 : index
    %c0_9 = arith.constant 0 : index
    %8 = vector.load %arg4[%c0_7, %c0_8, %c0_9] : memref<4x1x128xf32, #tpu.memory_space<vmem>>, vector<4x1x128xf32>
    %9 = vector.broadcast %8 : vector<4x1x128xf32> to vector<4x8x128xf32>
    %10 = arith.mulf %7, %9 : vector<4x8x128xf32>
    %c0_10 = arith.constant 0 : index
    %c0_11 = arith.constant 0 : index
    %c0_12 = arith.constant 0 : index
    %11 = vector.load %arg5[%c0_10, %c0_11, %c0_12] : memref<4x1x128xf32, #tpu.memory_space<vmem>>, vector<4x1x128xf32>
    %12 = vector.broadcast %11 : vector<4x1x128xf32> to vector<4x8x128xf32>
    %13 = arith.addf %10, %12 : vector<4x8x128xf32>
    %cst_13 = arith.constant 0.000000e+00 : f32
    %14 = vector.broadcast %cst_13 : f32 to vector<4x8x128xf32>
    %15 = arith.maximumf %13, %14 : vector<4x8x128xf32>
    %c0_14 = arith.constant 0 : index
    %c0_15 = arith.constant 0 : index
    %c0_16 = arith.constant 0 : index
    %16 = vector.load %arg7[%c0_14, %c0_15, %c0_16] : memref<4x1x128xf32, #tpu.memory_space<vmem>>, vector<4x1x128xf32>
    %17 = vector.broadcast %16 : vector<4x1x128xf32> to vector<4x8x128xf32>
    %18 = arith.mulf %15, %17 : vector<4x8x128xf32>
    %19 = vector.shape_cast %18 : vector<4x8x128xf32> to vector<32x128xf32>
    %c0_17 = arith.constant 0 : index
    %c0_18 = arith.constant 0 : index
    %20 = vector.load %arg6[%c0_17, %c0_18] : memref<128x128xf32, #tpu.memory_space<vmem>>, vector<128x128xf32>
    %cst_19 = arith.constant dense<0.000000e+00> : vector<32x128xf32>
    %21 = tpu.matmul %19, %20, %cst_19 {dimension_numbers = #tpu.dot_dimension_numbers<[1], [0], [0], [1], [0, 0, 1, 1], [], []>, precision = #tpu.contract_precision<fp32>} : vector<32x128xf32>, vector<128x128xf32>, vector<32x128xf32> -> vector<32x128xf32>
    %22 = vector.shape_cast %21 : vector<32x128xf32> to vector<4x8x128xf32>
    %c0_20 = arith.constant 0 : index
    %c0_21 = arith.constant 0 : index
    %c0_22 = arith.constant 0 : index
    %23 = vector.load %arg8[%c0_20, %c0_21, %c0_22] : memref<4x1x128xf32, #tpu.memory_space<vmem>>, vector<4x1x128xf32>
    %24 = vector.broadcast %23 : vector<4x1x128xf32> to vector<4x8x128xf32>
    %25 = arith.mulf %22, %24 : vector<4x8x128xf32>
    %c0_23 = arith.constant 0 : index
    %c0_24 = arith.constant 0 : index
    %c0_25 = arith.constant 0 : index
    %26 = vector.load %arg9[%c0_23, %c0_24, %c0_25] : memref<4x1x128xf32, #tpu.memory_space<vmem>>, vector<4x1x128xf32>
    %27 = vector.broadcast %26 : vector<4x1x128xf32> to vector<4x8x128xf32>
    %28 = arith.addf %25, %27 : vector<4x8x128xf32>
    %cst_26 = arith.constant 0.000000e+00 : f32
    %29 = vector.broadcast %cst_26 : f32 to vector<4x8x128xf32>
    %30 = arith.maximumf %28, %29 : vector<4x8x128xf32>
    %c0_27 = arith.constant 0 : index
    %c0_28 = arith.constant 0 : index
    %c0_29 = arith.constant 0 : index
    %31 = vector.load %arg11[%c0_27, %c0_28, %c0_29] : memref<4x1x128xf32, #tpu.memory_space<vmem>>, vector<4x1x128xf32>
    %32 = vector.broadcast %31 : vector<4x1x128xf32> to vector<4x8x128xf32>
    %33 = arith.mulf %30, %32 : vector<4x8x128xf32>
    %34 = vector.shape_cast %33 : vector<4x8x128xf32> to vector<32x128xf32>
    %c0_30 = arith.constant 0 : index
    %c0_31 = arith.constant 0 : index
    %35 = vector.load %arg10[%c0_30, %c0_31] : memref<128x128xf32, #tpu.memory_space<vmem>>, vector<128x128xf32>
    %cst_32 = arith.constant dense<0.000000e+00> : vector<32x128xf32>
    %36 = tpu.matmul %34, %35, %cst_32 {dimension_numbers = #tpu.dot_dimension_numbers<[1], [0], [0], [1], [0, 0, 1, 1], [], []>, precision = #tpu.contract_precision<fp32>} : vector<32x128xf32>, vector<128x128xf32>, vector<32x128xf32> -> vector<32x128xf32>
    %37 = vector.shape_cast %36 : vector<32x128xf32> to vector<4x8x128xf32>
    %c0_33 = arith.constant 0 : index
    %c0_34 = arith.constant 0 : index
    %c0_35 = arith.constant 0 : index
    %38 = vector.load %arg12[%c0_33, %c0_34, %c0_35] : memref<4x1x128xf32, #tpu.memory_space<vmem>>, vector<4x1x128xf32>
    %39 = vector.broadcast %38 : vector<4x1x128xf32> to vector<4x8x128xf32>
    %40 = arith.mulf %37, %39 : vector<4x8x128xf32>
    %c0_36 = arith.constant 0 : index
    %c0_37 = arith.constant 0 : index
    %c0_38 = arith.constant 0 : index
    %41 = vector.load %arg13[%c0_36, %c0_37, %c0_38] : memref<4x1x128xf32, #tpu.memory_space<vmem>>, vector<4x1x128xf32>
    %42 = vector.broadcast %41 : vector<4x1x128xf32> to vector<4x8x128xf32>
    %43 = arith.addf %40, %42 : vector<4x8x128xf32>
    %c0_39 = arith.constant 0 : index
    %c0_40 = arith.constant 0 : index
    %c0_41 = arith.constant 0 : index
    %44 = vector.load %arg14[%c0_39, %c0_40, %c0_41] : memref<4x8x128xf32, #tpu.memory_space<vmem>>, vector<4x8x128xf32>
    tpu.vector_store %arg14[%c0_39, %c0_40, %c0_41], %43 {strides = array<i32>} : memref<4x8x128xf32, #tpu.memory_space<vmem>>, vector<4x8x128xf32>,
    return
  }
  func.func @transform_0(%arg0: i32) -> (i32, i32, i32) {
    %c0_i32 = arith.constant 0 : i32
    %c0_i32_0 = arith.constant 0 : i32
    %c0_i32_1 = arith.constant 0 : i32
    return %c0_i32, %arg0, %c0_i32_0 : i32, i32, i32
  }
  func.func @transform_1(%arg0: i32) -> (i32, i32) {
    %c0_i32 = arith.constant 0 : i32
    %c0_i32_0 = arith.constant 0 : i32
    %c0_i32_1 = arith.constant 0 : i32
    return %c0_i32, %c0_i32_0 : i32, i32
  }
  func.func @transform_2(%arg0: i32) -> (i32, i32, i32) {
    %c0_i32 = arith.constant 0 : i32
    %c0_i32_0 = arith.constant 0 : i32
    %c0_i32_1 = arith.constant 0 : i32
    %c0_i32_2 = arith.constant 0 : i32
    return %c0_i32, %c0_i32_0, %c0_i32_1 : i32, i32, i32
  }
  func.func @transform_3(%arg0: i32) -> (i32, i32, i32) {
    %c0_i32 = arith.constant 0 : i32
    %c0_i32_0 = arith.constant 0 : i32
    %c0_i32_1 = arith.constant 0 : i32
    %c0_i32_2 = arith.constant 0 : i32
    return %c0_i32, %c0_i32_0, %c0_i32_1 : i32, i32, i32
  }
  func.func @transform_4(%arg0: i32) -> (i32, i32, i32) {
    %c0_i32 = arith.constant 0 : i32
    %c0_i32_0 = arith.constant 0 : i32
    %c0_i32_1 = arith.constant 0 : i32
    %c0_i32_2 = arith.constant 0 : i32
    return %c0_i32, %c0_i32_0, %c0_i32_1 : i32, i32, i32
  }
  func.func @transform_5(%arg0: i32) -> (i32, i32) {
    %c0_i32 = arith.constant 0 : i32
    %c0_i32_0 = arith.constant 0 : i32
    %c0_i32_1 = arith.constant 0 : i32
    return %c0_i32, %c0_i32_0 : i32, i32
  }
  func.func @transform_6(%arg0: i32) -> (i32, i32, i32) {
    %c0_i32 = arith.constant 0 : i32
    %c0_i32_0 = arith.constant 0 : i32
    %c0_i32_1 = arith.constant 0 : i32
    %c0_i32_2 = arith.constant 0 : i32
    return %c0_i32, %c0_i32_0, %c0_i32_1 : i32, i32, i32
  }
  func.func @transform_7(%arg0: i32) -> (i32, i32, i32) {
    %c0_i32 = arith.constant 0 : i32
    %c0_i32_0 = arith.constant 0 : i32
    %c0_i32_1 = arith.constant 0 : i32
    %c0_i32_2 = arith.constant 0 : i32
    return %c0_i32, %c0_i32_0, %c0_i32_1 : i32, i32, i32
  }
  func.func @transform_8(%arg0: i32) -> (i32, i32, i32) {
    %c0_i32 = arith.constant 0 : i32
    %c0_i32_0 = arith.constant 0 : i32
    %c0_i32_1 = arith.constant 0 : i32
    %c0_i32_2 = arith.constant 0 : i32
    return %c0_i32, %c0_i32_0, %c0_i32_1 : i32, i32, i32
  }
  func.func @transform_9(%arg0: i32) -> (i32, i32) {
    %c0_i32 = arith.constant 0 : i32
    %c0_i32_0 = arith.constant 0 : i32
    %c0_i32_1 = arith.constant 0 : i32
    return %c0_i32, %c0_i32_0 : i32, i32
  }
  func.func @transform_10(%arg0: i32) -> (i32, i32, i32) {
    %c0_i32 = arith.constant 0 : i32
    %c0_i32_0 = arith.constant 0 : i32
    %c0_i32_1 = arith.constant 0 : i32
    %c0_i32_2 = arith.constant 0 : i32
    return %c0_i32, %c0_i32_0, %c0_i32_1 : i32, i32, i32
  }
  func.func @transform_11(%arg0: i32) -> (i32, i32, i32) {
    %c0_i32 = arith.constant 0 : i32
    %c0_i32_0 = arith.constant 0 : i32
    %c0_i32_1 = arith.constant 0 : i32
    %c0_i32_2 = arith.constant 0 : i32
    return %c0_i32, %c0_i32_0, %c0_i32_1 : i32, i32, i32
  }
  func.func @transform_12(%arg0: i32) -> (i32, i32, i32) {
    %c0_i32 = arith.constant 0 : i32
    %c0_i32_0 = arith.constant 0 : i32
    %c0_i32_1 = arith.constant 0 : i32
    %c0_i32_2 = arith.constant 0 : i32
    return %c0_i32, %c0_i32_0, %c0_i32_1 : i32, i32, i32
  }
  func.func @transform_13(%arg0: i32) -> (i32, i32, i32) {
    %c0_i32 = arith.constant 0 : i32
    %c0_i32_0 = arith.constant 0 : i32
    %c0_i32_1 = arith.constant 0 : i32
    return %c0_i32, %arg0, %c0_i32_0 : i32, i32, i32
  }
}

module attributes {stable_mosaic.version = 11 : i64} {
  func.func @_benn_fused_kernel(%arg0: i32, %arg1: memref<4x8x4xf32, #tpu.memory_space<vmem>>, %arg2: memref<4x128xf32, #tpu.memory_space<vmem>>, %arg3: memref<4x1x4xf32, #tpu.memory_space<vmem>>, %arg4: memref<4x1x128xf32, #tpu.memory_space<vmem>>, %arg5: memref<4x1x128xf32, #tpu.memory_space<vmem>>, %arg6: memref<128x128xf32, #tpu.memory_space<vmem>>, %arg7: memref<4x1x128xf32, #tpu.memory_space<vmem>>, %arg8: memref<4x1x128xf32, #tpu.memory_space<vmem>>, %arg9: memref<4x1x128xf32, #tpu.memory_space<vmem>>, %arg10: memref<128x128xf32, #tpu.memory_space<vmem>>, %arg11: memref<4x1x128xf32, #tpu.memory_space<vmem>>, %arg12: memref<4x1x128xf32, #tpu.memory_space<vmem>>, %arg13: memref<4x1x128xf32, #tpu.memory_space<vmem>>, %arg14: memref<4x8x128xf32, #tpu.memory_space<vmem>>) attributes {dimension_semantics = [#tpu.dimension_semantics<parallel>], iteration_bounds = array<i64: 1>, scalar_prefetch = 0 : i64, scratch_operands = 0 : i64, tpu.core_type = #tpu.core_type<tc>, window_params = [{transform_indices = @transform_0, window_bounds = array<i64: 4, 8, 4>}, {pipeline_mode = #tpu.pipeline_mode<synchronous>, transform_indices = @transform_1, window_bounds = array<i64: 4, 128>}, {pipeline_mode = #tpu.pipeline_mode<synchronous>, transform_indices = @transform_2, window_bounds = array<i64: 4, 1, 4>}, {pipeline_mode = #tpu.pipeline_mode<synchronous>, transform_indices = @transform_3, window_bounds = array<i64: 4, 1, 128>}, {pipeline_mode = #tpu.pipeline_mode<synchronous>, transform_indices = @transform_4, window_bounds = array<i64: 4, 1, 128>}, {pipeline_mode = #tpu.pipeline_mode<synchronous>, transform_indices = @transform_5, window_bounds = array<i64: 128, 128>}, {pipeline_mode = #tpu.pipeline_mode<synchronous>, transform_indices = @transform_6, window_bounds = array<i64: 4, 1, 128>}, {pipeline_mode = #tpu.pipeline_mode<synchronous>, transform_indices = @transform_7, window_bounds = array<i64: 4, 1, 128>}, {pipeline_mode = #tpu.pipeline_mode<synchronous>, transform_indices = @transform_8, window_bounds = array<i64: 4, 1, 128>}, {pipeline_mode = #tpu.pipeline_mode<synchronous>, transform_indices = @transform_9, window_bounds = array<i64: 128, 128>}, {pipeline_mode = #tpu.pipeline_mode<synchronous>, transform_indices = @transform_10, window_bounds = array<i64: 4, 1, 128>}, {pipeline_mode = #tpu.pipeline_mode<synchronous>, transform_indices = @transform_11, window_bounds = array<i64: 4, 1, 128>}, {pipeline_mode = #tpu.pipeline_mode<synchronous>, transform_indices = @transform_12, window_bounds = array<i64: 4, 1, 128>}, {transform_indices = @transform_13, window_bounds = array<i64: 4, 8, 128>}]} {
    %c0 = arith.constant 0 : index
    %c0_0 = arith.constant 0 : index
    %c0_1 = arith.constant 0 : index
    %0 = vector.load %arg1[%c0, %c0_0, %c0_1] : memref<4x8x4xf32, #tpu.memory_space<vmem>>, vector<4x8x4xf32>
    %c0_2 = arith.constant 0 : index
    %c0_3 = arith.constant 0 : index
    %c0_4 = arith.constant 0 : index
    %1 = vector.load %arg3[%c0_2, %c0_3, %c0_4] : memref<4x1x4xf32, #tpu.memory_space<vmem>>, vector<4x1x4xf32>
    %2 = vector.broadcast %1 : vector<4x1x4xf32> to vector<4x8x4xf32>
    %3 = arith.mulf %0, %2 : vector<4x8x4xf32>
    %4 = vector.shape_cast %3 : vector<4x8x4xf32> to vector<32x4xf32>
    %c0_5 = arith.constant 0 : index
    %c0_6 = arith.constant 0 : index
    %5 = vector.load %arg2[%c0_5, %c0_6] : memref<4x128xf32, #tpu.memory_space<vmem>>, vector<4x128xf32>
    %cst = arith.constant dense<0.000000e+00> : vector<32x128xf32>
    %6 = tpu.matmul %4, %5, %cst {dimension_numbers = #tpu.dot_dimension_numbers<[1], [0], [0], [1], [0, 0, 1, 1], [], []>, precision = #tpu.contract_precision<fp32>} : vector<32x4xf32>, vector<4x128xf32>, vector<32x128xf32> -> vector<32x128xf32>
    %7 = vector.shape_cast %6 : vector<32x128xf32> to vector<4x8x128xf32>
    %c0_7 = arith.constant 0 : index
    %c0_8 = arith.constant 0 : index
    %c0_9 = arith.constant 0 : index
    %8 = vector.load %arg4[%c0_7, %c0_8, %c0_9] : memref<4x1x128xf32, #tpu.memory_space<vmem>>, vector<4x1x128xf32>
    %9 = vector.broadcast %8 : vector<4x1x128xf32> to vector<4x8x128xf32>
    %10 = arith.mulf %7, %9 : vector<4x8x128xf32>
    %c0_10 = arith.constant 0 : index
    %c0_11 = arith.constant 0 : index
    %c0_12 = arith.constant 0 : index
    %11 = vector.load %arg5[%c0_10, %c0_11, %c0_12] : memref<4x1x128xf32, #tpu.memory_space<vmem>>, vector<4x1x128xf32>
    %12 = vector.broadcast %11 : vector<4x1x128xf32> to vector<4x8x128xf32>
    %13 = arith.addf %10, %12 : vector<4x8x128xf32>
    %cst_13 = arith.constant 0.000000e+00 : f32
    %14 = vector.broadcast %cst_13 : f32 to vector<4x8x128xf32>
    %15 = arith.maximumf %13, %14 : vector<4x8x128xf32>
    %c0_14 = arith.constant 0 : index
    %c0_15 = arith.constant 0 : index
    %c0_16 = arith.constant 0 : index
    %16 = vector.load %arg7[%c0_14, %c0_15, %c0_16] : memref<4x1x128xf32, #tpu.memory_space<vmem>>, vector<4x1x128xf32>
    %17 = vector.broadcast %16 : vector<4x1x128xf32> to vector<4x8x128xf32>
    %18 = arith.mulf %15, %17 : vector<4x8x128xf32>
    %19 = vector.shape_cast %18 : vector<4x8x128xf32> to vector<32x128xf32>
    %c0_17 = arith.constant 0 : index
    %c0_18 = arith.constant 0 : index
    %20 = vector.load %arg6[%c0_17, %c0_18] : memref<128x128xf32, #tpu.memory_space<vmem>>, vector<128x128xf32>
    %cst_19 = arith.constant dense<0.000000e+00> : vector<32x128xf32>
    %21 = tpu.matmul %19, %20, %cst_19 {dimension_numbers = #tpu.dot_dimension_numbers<[1], [0], [0], [1], [0, 0, 1, 1], [], []>, precision = #tpu.contract_precision<fp32>} : vector<32x128xf32>, vector<128x128xf32>, vector<32x128xf32> -> vector<32x128xf32>
    %22 = vector.shape_cast %21 : vector<32x128xf32> to vector<4x8x128xf32>
    %c0_20 = arith.constant 0 : index
    %c0_21 = arith.constant 0 : index
    %c0_22 = arith.constant 0 : index
    %23 = vector.load %arg8[%c0_20, %c0_21, %c0_22] : memref<4x1x128xf32, #tpu.memory_space<vmem>>, vector<4x1x128xf32>
    %24 = vector.broadcast %23 : vector<4x1x128xf32> to vector<4x8x128xf32>
    %25 = arith.mulf %22, %24 : vector<4x8x128xf32>
    %c0_23 = arith.constant 0 : index
    %c0_24 = arith.constant 0 : index
    %c0_25 = arith.constant 0 : index
    %26 = vector.load %arg9[%c0_23, %c0_24, %c0_25] : memref<4x1x128xf32, #tpu.memory_space<vmem>>, vector<4x1x128xf32>
    %27 = vector.broadcast %26 : vector<4x1x128xf32> to vector<4x8x128xf32>
    %28 = arith.addf %25, %27 : vector<4x8x128xf32>
    %cst_26 = arith.constant 0.000000e+00 : f32
    %29 = vector.broadcast %cst_26 : f32 to vector<4x8x128xf32>
    %30 = arith.maximumf %28, %29 : vector<4x8x128xf32>
    %c0_27 = arith.constant 0 : index
    %c0_28 = arith.constant 0 : index
    %c0_29 = arith.constant 0 : index
    %31 = vector.load %arg11[%c0_27, %c0_28, %c0_29] : memref<4x1x128xf32, #tpu.memory_space<vmem>>, vector<4x1x128xf32>
    %32 = vector.broadcast %31 : vector<4x1x128xf32> to vector<4x8x128xf32>
    %33 = arith.mulf %30, %32 : vector<4x8x128xf32>
    %34 = vector.shape_cast %33 : vector<4x8x128xf32> to vector<32x128xf32>
    %c0_30 = arith.constant 0 : index
    %c0_31 = arith.constant 0 : index
    %35 = vector.load %arg10[%c0_30, %c0_31] : memref<128x128xf32, #tpu.memory_space<vmem>>, vector<128x128xf32>
    %cst_32 = arith.constant dense<0.000000e+00> : vector<32x128xf32>
    %36 = tpu.matmul %34, %35, %cst_32 {dimension_numbers = #tpu.dot_dimension_numbers<[1], [0], [0], [1], [0, 0, 1, 1], [], []>, precision = #tpu.contract_precision<fp32>} : vector<32x128xf32>, vector<128x128xf32>, vector<32x128xf32> -> vector<32x128xf32>
    %37 = vector.shape_cast %36 : vector<32x128xf32> to vector<4x8x128xf32>
    %c0_33 = arith.constant 0 : index
    %c0_34 = arith.constant 0 : index
    %c0_35 = arith.constant 0 : index
    %38 = vector.load %arg12[%c0_33, %c0_34, %c0_35] : memref<4x1x128xf32, #tpu.memory_space<vmem>>, vector<4x1x128xf32>
    %39 = vector.broadcast %38 : vector<4x1x128xf32> to vector<4x8x128xf32>
    %40 = arith.mulf %37, %39 : vector<4x8x128xf32>
    %c0_36 = arith.constant 0 : index
    %c0_37 = arith.constant 0 : index
    %c0_38 = arith.constant 0 : index
    %41 = vector.load %arg13[%c0_36, %c0_37, %c0_38] : memref<4x1x128xf32, #tpu.memory_space<vmem>>, vector<4x1x128xf32>
    %42 = vector.broadcast %41 : vector<4x1x128xf32> to vector<4x8x128xf32>
    %43 = arith.addf %40, %42 : vector<4x8x128xf32>
    %c0_39 = arith.constant 0 : index
    %c0_40 = arith.constant 0 : index
    %c0_41 = arith.constant 0 : index
    %44 = vector.load %arg14[%c0_39, %c0_40, %c0_41] : memref<4x8x128xf32, #tpu.memory_space<vmem>>, vector<4x8x128xf32>
    tpu.vector_store %arg14[%c0_39, %c0_40, %c0_41], %43 {strides = array<i32>} : memref<4x8x128xf32, #tpu.memory_space<vmem>>, vector<4x8x128xf32>,
    return
  }
  func.func @transform_0(%arg0: i32) -> (i32, i32, i32) {
    %c0_i32 = arith.constant 0 : i32
    %c0_i32_0 = arith.constant 0 : i32
    %c0_i32_1 = arith.constant 0 : i32
    return %c0_i32, %arg0, %c0_i32_0 : i32, i32, i32
  }
  func.func @transform_1(%arg0: i32) -> (i32, i32) {
    %c0_i32 = arith.constant 0 : i32
    %c0_i32_0 = arith.constant 0 : i32
    %c0_i32_1 = arith.constant 0 : i32
    return %c0_i32, %c0_i32_0 : i32, i32
  }
  func.func @transform_2(%arg0: i32) -> (i32, i32, i32) {
    %c0_i32 = arith.constant 0 : i32
    %c0_i32_0 = arith.constant 0 : i32
    %c0_i32_1 = arith.constant 0 : i32
    %c0_i32_2 = arith.constant 0 : i32
    return %c0_i32, %c0_i32_0, %c0_i32_1 : i32, i32, i32
  }
  func.func @transform_3(%arg0: i32) -> (i32, i32, i32) {
    %c0_i32 = arith.constant 0 : i32
    %c0_i32_0 = arith.constant 0 : i32
    %c0_i32_1 = arith.constant 0 : i32
    %c0_i32_2 = arith.constant 0 : i32
    return %c0_i32, %c0_i32_0, %c0_i32_1 : i32, i32, i32
  }
  func.func @transform_4(%arg0: i32) -> (i32, i32, i32) {
    %c0_i32 = arith.constant 0 : i32
    %c0_i32_0 = arith.constant 0 : i32
    %c0_i32_1 = arith.constant 0 : i32
    %c0_i32_2 = arith.constant 0 : i32
    return %c0_i32, %c0_i32_0, %c0_i32_1 : i32, i32, i32
  }
  func.func @transform_5(%arg0: i32) -> (i32, i32) {
    %c0_i32 = arith.constant 0 : i32
    %c0_i32_0 = arith.constant 0 : i32
    %c0_i32_1 = arith.constant 0 : i32
    return %c0_i32, %c0_i32_0 : i32, i32
  }
  func.func @transform_6(%arg0: i32) -> (i32, i32, i32) {
    %c0_i32 = arith.constant 0 : i32
    %c0_i32_0 = arith.constant 0 : i32
    %c0_i32_1 = arith.constant 0 : i32
    %c0_i32_2 = arith.constant 0 : i32
    return %c0_i32, %c0_i32_0, %c0_i32_1 : i32, i32, i32
  }
  func.func @transform_7(%arg0: i32) -> (i32, i32, i32) {
    %c0_i32 = arith.constant 0 : i32
    %c0_i32_0 = arith.constant 0 : i32
    %c0_i32_1 = arith.constant 0 : i32
    %c0_i32_2 = arith.constant 0 : i32
    return %c0_i32, %c0_i32_0, %c0_i32_1 : i32, i32, i32
  }
  func.func @transform_8(%arg0: i32) -> (i32, i32, i32) {
    %c0_i32 = arith.constant 0 : i32
    %c0_i32_0 = arith.constant 0 : i32
    %c0_i32_1 = arith.constant 0 : i32
    %c0_i32_2 = arith.constant 0 : i32
    return %c0_i32, %c0_i32_0, %c0_i32_1 : i32, i32, i32
  }
  func.func @transform_9(%arg0: i32) -> (i32, i32) {
    %c0_i32 = arith.constant 0 : i32
    %c0_i32_0 = arith.constant 0 : i32
    %c0_i32_1 = arith.constant 0 : i32
    return %c0_i32, %c0_i32_0 : i32, i32
  }
  func.func @transform_10(%arg0: i32) -> (i32, i32, i32) {
    %c0_i32 = arith.constant 0 : i32
    %c0_i32_0 = arith.constant 0 : i32
    %c0_i32_1 = arith.constant 0 : i32
    %c0_i32_2 = arith.constant 0 : i32
    return %c0_i32, %c0_i32_0, %c0_i32_1 : i32, i32, i32
  }
  func.func @transform_11(%arg0: i32) -> (i32, i32, i32) {
    %c0_i32 = arith.constant 0 : i32
    %c0_i32_0 = arith.constant 0 : i32
    %c0_i32_1 = arith.constant 0 : i32
    %c0_i32_2 = arith.constant 0 : i32
    return %c0_i32, %c0_i32_0, %c0_i32_1 : i32, i32, i32
  }
  func.func @transform_12(%arg0: i32) -> (i32, i32, i32) {
    %c0_i32 = arith.constant 0 : i32
    %c0_i32_0 = arith.constant 0 : i32
    %c0_i32_1 = arith.constant 0 : i32
    %c0_i32_2 = arith.constant 0 : i32
    return %c0_i32, %c0_i32_0, %c0_i32_1 : i32, i32, i32
  }
  func.func @transform_13(%arg0: i32) -> (i32, i32, i32) {
    %c0_i32 = arith.constant 0 : i32
    %c0_i32_0 = arith.constant 0 : i32
    %c0_i32_1 = arith.constant 0 : i32
    return %c0_i32, %arg0, %c0_i32_0 : i32, i32, i32
  }
}

</mosaic_0001>

<llo_original>
// kernel: tpu_custom_call.1
$region0: #{tpu_custom_call.1}
  #allocation0 [shape = 'u32[]', space=smem, size = 0x4, offset = 0x4, fixed_abs, tag = 'smem constant byte address 0x4 - core index']
  #allocation1 [shape = 'u32[144,128]{1,0:T(1,128)}', space=vmem, size = 0x12000, scoped, tag = 'internal scratch']
  %s0 = inlined_call_operand.vmem [shape: f32[4,8,4], index: 0, kind: input, shape index: {}]
  %s1 = inlined_call_operand.vmem [shape: f32[4,128], index: 1, kind: input, shape index: {}]
  %s2 = inlined_call_operand.vmem [shape: f32[4,1,4], index: 2, kind: input, shape index: {}]
  %s3 = inlined_call_operand.vmem [shape: f32[4,1,128], index: 3, kind: input, shape index: {}]
  %s4 = inlined_call_operand.vmem [shape: f32[4,1,128], index: 4, kind: input, shape index: {}]
  %s5 = inlined_call_operand.hbm [shape: f32[128,128], index: 5, kind: input, shape index: {}]
  %s6 = inlined_call_operand.vmem [shape: f32[4,1,128], index: 6, kind: input, shape index: {}]
  %s7 = inlined_call_operand.vmem [shape: f32[4,1,128], index: 7, kind: input, shape index: {}]
  %s8 = inlined_call_operand.vmem [shape: f32[4,1,128], index: 8, kind: input, shape index: {}]
  %s9 = inlined_call_operand.hbm [shape: f32[128,128], index: 9, kind: input, shape index: {}]
  %s10 = inlined_call_operand.vmem [shape: f32[4,1,128], index: 10, kind: input, shape index: {}]
  %s11 = inlined_call_operand.vmem [shape: f32[4,1,128], index: 11, kind: input, shape index: {}]
  %s12 = inlined_call_operand.vmem [shape: f32[4,1,128], index: 12, kind: input, shape index: {}]
  %s13 = inlined_call_operand.hbm [shape: f32[4,8,128], index: 13, kind: output, shape index: {}]
  %s14 = sld [smem:[#allocation0]]
  $region70: #{tpu_custom_call.1} parent=0
    _
  %s16 = ssub.s32 1, %s14
  %s17 = scalar_select 0, %s16, %s14
  $region1: #{tpu_custom_call.1} parent=0
    #allocation2 [shape = 'u8[65536]{0}', space=vmem, size = 0x10000, scoped, tag = 'input window, operand 5, single buffered']
    #allocation3 [shape = 's32[1]{0}', space=sflag, size = 0x4, scoped, tag = 'scoped memory for tpu_custom_call.1']
    #allocation4 [shape = 's32[1]{0}', space=sflag, size = 0x4, scoped, tag = 'scoped memory for tpu_custom_call.1']
    #allocation5 [shape = 'u8[65536]{0}', space=vmem, size = 0x10000, scoped, tag = 'input window, operand 9, single buffered']
    #allocation6 [shape = 's32[1]{0}', space=sflag, size = 0x4, scoped, tag = 'scoped memory for tpu_custom_call.1']
    #allocation7 [shape = 'u8[16384]{0}', space=vmem, size = 0x4000, scoped, tag = 'output window, operand 0, single buffered']
    %18 = vsyncpa [#allocation3], 0
    %19 = vsyncpa [#allocation6], 0
    %20 = vsyncpa [#allocation4], 0
    // Predicated region
    $region2: #{tpu_custom_call.1} parent=1 // pred_check
      _
    $region3: #{tpu_custom_call.1} parent=1 // pred_check_branch
      %22 = sbr.rel (0) target = $region5
    $region4: #{tpu_custom_call.1} parent=1 // pred_region
      _
    $region5: #{tpu_custom_call.1} parent=1 // pred_fallthru
      _
    // Predicated region
    $region6: #{tpu_custom_call.1} parent=1 // pred_check
      _
    $region7: #{tpu_custom_call.1} parent=1 // pred_check_branch
      %24 = sbr.rel (0) target = $region9
    $region8: #{tpu_custom_call.1} parent=1 // pred_region
      _
    $region9: #{tpu_custom_call.1} parent=1 // pred_fallthru
      _
    // Predicated region
    $region10: #{tpu_custom_call.1} parent=1 // pred_check
      _
    $region11: #{tpu_custom_call.1} parent=1 // pred_check_branch
      %26 = sbr.rel (0) target = $region13
    $region12: #{tpu_custom_call.1} parent=1 // pred_region
      _
    $region13: #{tpu_custom_call.1} parent=1 // pred_fallthru
      _
    // Predicated region
    $region14: #{tpu_custom_call.1} parent=1 // pred_check
      _
    $region15: #{tpu_custom_call.1} parent=1 // pred_check_branch
      %28 = sbr.rel (0) target = $region17
    $region16: #{tpu_custom_call.1} parent=1 // pred_region
      _
    $region17: #{tpu_custom_call.1} parent=1 // pred_fallthru
      _
    // Predicated region
    $region18: #{tpu_custom_call.1} parent=1 // pred_check
      _
    $region19: #{tpu_custom_call.1} parent=1 // pred_check_branch
      %30 = sbr.rel (0) target = $region21
    $region20: #{tpu_custom_call.1} parent=1 // pred_region
      _
    $region21: #{tpu_custom_call.1} parent=1 // pred_fallthru
      _
    // Predicated region
    $region22: #{tpu_custom_call.1} parent=1 // pred_check
      _
    $region23: #{tpu_custom_call.1} parent=1 // pred_check_branch
      %32 = sbr.rel (0) target = $region25
    $region24: #{tpu_custom_call.1} parent=1 // pred_region
      %s34 = ssub.s32 2048, 2048
      %35 = vsyncadd [#allocation3], %s34
      %s36 = sshll.u32 [#allocation2], 4
      %s37 = int_to_ptr.vmem [resolvable:$true] %s36
      %42 = dma.hbm_to_vmem [thread:$0]  %s5, 2048, %s37, [#allocation3], 128, 128, 8
    $region25: #{tpu_custom_call.1} parent=1 // pred_fallthru
      _
    // Predicated region
    $region26: #{tpu_custom_call.1} parent=1 // pred_check
      _
    $region27: #{tpu_custom_call.1} parent=1 // pred_check_branch
      %44 = sbr.rel (0) target = $region29
    $region28: #{tpu_custom_call.1} parent=1 // pred_region
      _
    $region29: #{tpu_custom_call.1} parent=1 // pred_fallthru
      _
    // Predicated region
    $region30: #{tpu_custom_call.1} parent=1 // pred_check
      _
    $region31: #{tpu_custom_call.1} parent=1 // pred_check_branch
      %46 = sbr.rel (0) target = $region33
    $region32: #{tpu_custom_call.1} parent=1 // pred_region
      _
    $region33: #{tpu_custom_call.1} parent=1 // pred_fallthru
      _
    // Predicated region
    $region34: #{tpu_custom_call.1} parent=1 // pred_check
      _
    $region35: #{tpu_custom_call.1} parent=1 // pred_check_branch
      %48 = sbr.rel (0) target = $region37
    $region36: #{tpu_custom_call.1} parent=1 // pred_region
      _
    $region37: #{tpu_custom_call.1} parent=1 // pred_fallthru
      _
    // Predicated region
    $region38: #{tpu_custom_call.1} parent=1 // pred_check
      _
    $region39: #{tpu_custom_call.1} parent=1 // pred_check_branch
      %50 = sbr.rel (0) target = $region41
    $region40: #{tpu_custom_call.1} parent=1 // pred_region
      %s52 = ssub.s32 2048, 2048
      %53 = vsyncadd [#allocation6], %s52
      %s54 = sshll.u32 [#allocation5], 4
      %s55 = int_to_ptr.vmem [resolvable:$true] %s54
      %60 = dma.hbm_to_vmem [thread:$0]  %s9, 2048, %s55, [#allocation6], 128, 128, 8
    $region41: #{tpu_custom_call.1} parent=1 // pred_fallthru
      _
    // Predicated region
    $region42: #{tpu_custom_call.1} parent=1 // pred_check
      _
    $region43: #{tpu_custom_call.1} parent=1 // pred_check_branch
      %62 = sbr.rel (0) target = $region45
    $region44: #{tpu_custom_call.1} parent=1 // pred_region
      _
    $region45: #{tpu_custom_call.1} parent=1 // pred_fallthru
      _
    // Predicated region
    $region46: #{tpu_custom_call.1} parent=1 // pred_check
      _
    $region47: #{tpu_custom_call.1} parent=1 // pred_check_branch
      %64 = sbr.rel (0) target = $region49
    $region48: #{tpu_custom_call.1} parent=1 // pred_region
      _
    $region49: #{tpu_custom_call.1} parent=1 // pred_fallthru
      _
    // Predicated region
    $region50: #{tpu_custom_call.1} parent=1 // pred_check
      _
    $region51: #{tpu_custom_call.1} parent=1 // pred_check_branch
      %66 = sbr.rel (0) target = $region53
    $region52: #{tpu_custom_call.1} parent=1 // pred_region
      _
    $region53: #{tpu_custom_call.1} parent=1 // pred_fallthru
      _
    // Predicated region
    $region54: #{tpu_custom_call.1} parent=1 // pred_check
      _
    $region55: #{tpu_custom_call.1} parent=1 // pred_check_branch
      %68 = sbr.rel (0) target = $region57
    $region56: #{tpu_custom_call.1} parent=1 // pred_region
      %69 = dma.done [#allocation3], 2048
    $region57: #{tpu_custom_call.1} parent=1 // pred_fallthru
      _
    // Predicated region
    $region58: #{tpu_custom_call.1} parent=1 // pred_check
      _
    $region59: #{tpu_custom_call.1} parent=1 // pred_check_branch
      %71 = sbr.rel (0) target = $region61
    $region60: #{tpu_custom_call.1} parent=1 // pred_region
      %72 = dma.done [#allocation6], 2048
    $region61: #{tpu_custom_call.1} parent=1 // pred_fallthru
      _
    %v73 = vld [vmem:[%s0] sm:$0xff]
    %v74 = vld [vmem:[%s0 + $0x8] sm:$0xff]
    %v75 = vld [vmem:[%s0 + $0x10] sm:$0xff]
    %v76 = vld [vmem:[%s0 + $0x18] sm:$0xff]
    %v77 = vld [vmem:[%s2] sm:$0x1]
    %v78 = vld [vmem:[%s2 + $0x1] sm:$0x1]
    %v79 = vld [vmem:[%s2 + $0x2] sm:$0x1]
    %v80 = vld [vmem:[%s2 + $0x3] sm:$0x1]
    %v85 = vlaneseq
    %v86 = vshrl.u32 %v85, 7
    %v87 = vsub.s32 0, %v86
    %v88 = vrot.slane %v77, %v87
    %v89 = vlaneseq
    %v90 = vshrl.u32 %v89, 7
    %v91 = vsub.s32 0, %v90
    %v92 = vrot.slane %v78, %v91
    %v93 = vlaneseq
    %v94 = vshrl.u32 %v93, 7
    %v95 = vsub.s32 0, %v94
    %v96 = vrot.slane %v79, %v95
    %v97 = vlaneseq
    %v98 = vshrl.u32 %v97, 7
    %v99 = vsub.s32 0, %v98
    %v100 = vrot.slane %v80, %v99
    %v105 = vmul.f32 %v73, %v88
    %v106 = vmul.f32 %v74, %v92
    %v107 = vmul.f32 %v75, %v96
    %v108 = vmul.f32 %v76, %v100
    %v109 = vld [vmem:[%s1] sm:$0xf]
    %vm110 = vcmask 31744
    %v112 = vsel %vm110, %v105, 0
    %v115 = vsel %vm110, %v106, 0
    %v118 = vsel %vm110, %v107, 0
    %v121 = vsel %vm110, %v108, 0
    %vm123 = vcmask 1043456
    %v125 = vsel %vm123, %v109, 0
    %127 = vmatprep.subr.mxu0 0.0
    %v128 = vand.u32 %v125, 4294901760
    %129 = vmatpush1.msra.mxu0 %v128
    %130 = vmatprep.subr.mxu0 0.0
    %131 = vmatpush1.msra.mxu0 0.0
    %132 = vmatprep.subr.mxu0 0.0
    %133 = vmatpush1.msra.mxu0 0.0
    %134 = vmatprep.subr.mxu0 0.0
    %135 = vmatpush1.msra.mxu0 0.0
    %136 = vmatprep.subr.mxu0 0.0
    %137 = vmatpush1.msra.mxu0 0.0
    %138 = vmatprep.subr.mxu0 0.0
    %139 = vmatpush1.msra.mxu0 0.0
    %140 = vmatprep.subr.mxu0 0.0
    %141 = vmatpush1.msra.mxu0 0.0
    %142 = vmatprep.subr.mxu0 0.0
    %143 = vmatpush1.msra.mxu0 0.0
    %144 = vmatprep.subr.mxu0 0.0
    %145 = vmatpush1.msra.mxu0 0.0
    %146 = vmatprep.subr.mxu0 0.0
    %147 = vmatpush1.msra.mxu0 0.0
    %148 = vmatprep.subr.mxu0 0.0
    %149 = vmatpush1.msra.mxu0 0.0
    %150 = vmatprep.subr.mxu0 0.0
    %151 = vmatpush1.msra.mxu0 0.0
    %152 = vmatprep.subr.mxu0 0.0
    %153 = vmatpush1.msra.mxu0 0.0
    %154 = vmatprep.subr.mxu0 0.0
    %155 = vmatpush1.msra.mxu0 0.0
    %156 = vmatprep.subr.mxu0 0.0
    %157 = vmatpush1.msra.mxu0 0.0
    %158 = vmatprep.subr.mxu0 0.0
    %159 = vmatpush1.msra.mxu0 0.0
    %160 = vmatprep.subr.mxu0 0.0
    %161 = vmatpush1.msra.mxu0 0.0
    %162 = vmatprep.subr.mxu0 0.0
    %163 = vmatpush1.msra.mxu0 0.0
    %164 = vmatprep.subr.mxu0 0.0
    %165 = vmatpush1.msra.mxu0 0.0
    %166 = vmatprep.subr.mxu0 0.0
    %167 = vmatpush1.msra.mxu0 0.0
    %168 = vmatprep.subr.mxu0 0.0
    %169 = vmatpush1.msra.mxu0 0.0
    %170 = vmatprep.subr.mxu0 0.0
    %171 = vmatpush1.msra.mxu0 0.0
    %172 = vmatprep.subr.mxu0 0.0
    %173 = vmatpush1.msra.mxu0 0.0
    %174 = vmatprep.subr.mxu0 0.0
    %175 = vmatpush1.msra.mxu0 0.0
    %176 = vmatprep.subr.mxu0 0.0
    %177 = vmatpush1.msra.mxu0 0.0
    %178 = vmatprep.subr.mxu0 0.0
    %179 = vmatpush1.msra.mxu0 0.0
    %180 = vmatprep.subr.mxu0 0.0
    %181 = vmatpush1.msra.mxu0 0.0
    %182 = vmatprep.subr.mxu0 0.0
    %183 = vmatpush1.msra.mxu0 0.0
    %184 = vmatprep.subr.mxu0 0.0
    %185 = vmatpush1.msra.mxu0 0.0
    %186 = vmatprep.subr.mxu0 0.0
    %187 = vmatpush1.msra.mxu0 0.0
    %188 = vmatprep.subr.mxu0 0.0
    %189 = vmatpush1.msra.mxu0 0.0
    %190 = vmatprep.subr.mxu0 0.0
    %191 = vmatpush1.msra.mxu0 0.0
    %192 = vmatprep.mubr.f32.mxu0 0.0
    %v193 = vand.u32 %v112, 4294901760
    %v194 = vsub.f32 %v112, %v193
    %v195 = vand.u32 %v194, 4294901760
    %v196 = vsub.f32 %v194, %v195
    %v197 = vand.u32 %v196, 4294901760
    %198 = vmatmul.mubr.f32.gmra.mrb[0].mxu0 %v197
    %v199 = vpop.f32.mrb[0].mxu0
    %v200 = vadd.f32 0.0, %v199
    %v201 = vpop.f32.mrb[0].mxu0
    %202 = vmatprep.mubr.f32.mxu0 0.0
    %v203 = vand.u32 %v115, 4294901760
    %v204 = vsub.f32 %v115, %v203
    %v205 = vand.u32 %v204, 4294901760
    %v206 = vsub.f32 %v204, %v205
    %v207 = vand.u32 %v206, 4294901760
    %208 = vmatmul.mubr.f32.gmra.mrb[0].mxu0 %v207
    %v209 = vpop.f32.mrb[0].mxu0
    %v210 = vadd.f32 0.0, %v209
    %v211 = vpop.f32.mrb[0].mxu0
    %212 = vmatprep.mubr.f32.mxu0 0.0
    %v213 = vand.u32 %v118, 4294901760
    %v214 = vsub.f32 %v118, %v213
    %v215 = vand.u32 %v214, 4294901760
    %v216 = vsub.f32 %v214, %v215
    %v217 = vand.u32 %v216, 4294901760
    %218 = vmatmul.mubr.f32.gmra.mrb[0].mxu0 %v217
    %v219 = vpop.f32.mrb[0].mxu0
    %v220 = vadd.f32 0.0, %v219
    %v221 = vpop.f32.mrb[0].mxu0
    %222 = vmatprep.mubr.f32.mxu0 0.0
    %v223 = vand.u32 %v121, 4294901760
    %v224 = vsub.f32 %v121, %v223
    %v225 = vand.u32 %v224, 4294901760
    %v226 = vsub.f32 %v224, %v225
    %v227 = vand.u32 %v226, 4294901760
    %228 = vmatmul.mubr.f32.gmra.mrb[0].mxu0 %v227
    %v229 = vpop.f32.mrb[0].mxu0
    %v230 = vadd.f32 0.0, %v229
    %v231 = vpop.f32.mrb[0].mxu0
    %232 = vdwg.mxu0
    %233 = vmatprep.subr.mxu0 0.0
    %v234 = vand.u32 %v125, 4294901760
    %v235 = vsub.f32 %v125, %v234
    %v236 = vand.u32 %v235, 4294901760
    %v237 = vsub.f32 %v235, %v236
    %v238 = vand.u32 %v237, 4294901760
    %239 = vmatpush1.msra.mxu0 %v238
    %240 = vmatprep.subr.mxu0 0.0
    %241 = vmatpush1.msra.mxu0 0.0
    %242 = vmatprep.subr.mxu0 0.0
    %243 = vmatpush1.msra.mxu0 0.0
    %244 = vmatprep.subr.mxu0 0.0
    %245 = vmatpush1.msra.mxu0 0.0
    %246 = vmatprep.subr.mxu0 0.0
    %247 = vmatpush1.msra.mxu0 0.0
    %248 = vmatprep.subr.mxu0 0.0
    %249 = vmatpush1.msra.mxu0 0.0
    %250 = vmatprep.subr.mxu0 0.0
    %251 = vmatpush1.msra.mxu0 0.0
    %252 = vmatprep.subr.mxu0 0.0
    %253 = vmatpush1.msra.mxu0 0.0
    %254 = vmatprep.subr.mxu0 0.0
    %255 = vmatpush1.msra.mxu0 0.0
    %256 = vmatprep.subr.mxu0 0.0
    %257 = vmatpush1.msra.mxu0 0.0
    %258 = vmatprep.subr.mxu0 0.0
    %259 = vmatpush1.msra.mxu0 0.0
    %260 = vmatprep.subr.mxu0 0.0
    %261 = vmatpush1.msra.mxu0 0.0
    %262 = vmatprep.subr.mxu0 0.0
    %263 = vmatpush1.msra.mxu0 0.0
    %264 = vmatprep.subr.mxu0 0.0
    %265 = vmatpush1.msra.mxu0 0.0
    %266 = vmatprep.subr.mxu0 0.0
    %267 = vmatpush1.msra.mxu0 0.0
    %268 = vmatprep.subr.mxu0 0.0
    %269 = vmatpush1.msra.mxu0 0.0
    %270 = vmatprep.subr.mxu0 0.0
    %271 = vmatpush1.msra.mxu0 0.0
    %272 = vmatprep.subr.mxu0 0.0
    %273 = vmatpush1.msra.mxu0 0.0
    %274 = vmatprep.subr.mxu0 0.0
    %275 = vmatpush1.msra.mxu0 0.0
    %276 = vmatprep.subr.mxu0 0.0
    %277 = vmatpush1.msra.mxu0 0.0
    %278 = vmatprep.subr.mxu0 0.0
    %279 = vmatpush1.msra.mxu0 0.0
    %280 = vmatprep.subr.mxu0 0.0
    %281 = vmatpush1.msra.mxu0 0.0
    %282 = vmatprep.subr.mxu0 0.0
    %283 = vmatpush1.msra.mxu0 0.0
    %284 = vmatprep.subr.mxu0 0.0
    %285 = vmatpush1.msra.mxu0 0.0
    %286 = vmatprep.subr.mxu0 0.0
    %287 = vmatpush1.msra.mxu0 0.0
    %288 = vmatprep.subr.mxu0 0.0
    %289 = vmatpush1.msra.mxu0 0.0
    %290 = vmatprep.subr.mxu0 0.0
    %291 = vmatpush1.msra.mxu0 0.0
    %292 = vmatprep.subr.mxu0 0.0
    %293 = vmatpush1.msra.mxu0 0.0
    %294 = vmatprep.subr.mxu0 0.0
    %295 = vmatpush1.msra.mxu0 0.0
    %296 = vmatprep.subr.mxu0 0.0
    %297 = vmatpush1.msra.mxu0 0.0
    %298 = vmatprep.subr.mxu0 0.0
    %299 = vmatpush1.msra.mxu0 0.0
    %300 = vmatprep.subr.mxu0 0.0
    %301 = vmatpush1.msra.mxu0 0.0
    %302 = vmatprep.mubr.f32.mxu0 0.0
    %v303 = vand.u32 %v112, 4294901760
    %304 = vmatmul.mubr.f32.gmra.mrb[0].mxu0 %v303
    %v305 = vpop.f32.mrb[0].mxu0
    %v306 = vadd.f32 %v200, %v305
    %v307 = vpop.f32.mrb[0].mxu0
    %308 = vmatprep.mubr.f32.mxu0 0.0
    %v309 = vand.u32 %v115, 4294901760
    %310 = vmatmul.mubr.f32.gmra.mrb[0].mxu0 %v309
    %v311 = vpop.f32.mrb[0].mxu0
    %v312 = vadd.f32 %v210, %v311
    %v313 = vpop.f32.mrb[0].mxu0
    %314 = vmatprep.mubr.f32.mxu0 0.0
    %v315 = vand.u32 %v118, 4294901760
    %316 = vmatmul.mubr.f32.gmra.mrb[0].mxu0 %v315
    %v317 = vpop.f32.mrb[0].mxu0
    %v318 = vadd.f32 %v220, %v317
    %v319 = vpop.f32.mrb[0].mxu0
    %320 = vmatprep.mubr.f32.mxu0 0.0
    %v321 = vand.u32 %v121, 4294901760
    %322 = vmatmul.mubr.f32.gmra.mrb[0].mxu0 %v321
    %v323 = vpop.f32.mrb[0].mxu0
    %v324 = vadd.f32 %v230, %v323
    %v325 = vpop.f32.mrb[0].mxu0
    %326 = vdwg.mxu0
    %327 = vmatprep.subr.mxu0 0.0
    %v328 = vand.u32 %v125, 4294901760
    %v329 = vsub.f32 %v125, %v328
    %330 = vmatpush1.msra.mxu0 %v329
    %331 = vmatprep.subr.mxu0 0.0
    %332 = vmatpush1.msra.mxu0 0.0
    %333 = vmatprep.subr.mxu0 0.0
    %334 = vmatpush1.msra.mxu0 0.0
    %335 = vmatprep.subr.mxu0 0.0
    %336 = vmatpush1.msra.mxu0 0.0
    %337 = vmatprep.subr.mxu0 0.0
    %338 = vmatpush1.msra.mxu0 0.0
    %339 = vmatprep.subr.mxu0 0.0
    %340 = vmatpush1.msra.mxu0 0.0
    %341 = vmatprep.subr.mxu0 0.0
    %342 = vmatpush1.msra.mxu0 0.0
    %343 = vmatprep.subr.mxu0 0.0
    %344 = vmatpush1.msra.mxu0 0.0
    %345 = vmatprep.subr.mxu0 0.0
    %346 = vmatpush1.msra.mxu0 0.0
    %347 = vmatprep.subr.mxu0 0.0
    %348 = vmatpush1.msra.mxu0 0.0
    %349 = vmatprep.subr.mxu0 0.0
    %350 = vmatpush1.msra.mxu0 0.0
    %351 = vmatprep.subr.mxu0 0.0
    %352 = vmatpush1.msra.mxu0 0.0
    %353 = vmatprep.subr.mxu0 0.0
    %354 = vmatpush1.msra.mxu0 0.0
    %355 = vmatprep.subr.mxu0 0.0
    %356 = vmatpush1.msra.mxu0 0.0
    %357 = vmatprep.subr.mxu0 0.0
    %358 = vmatpush1.msra.mxu0 0.0
    %359 = vmatprep.subr.mxu0 0.0
    %360 = vmatpush1.msra.mxu0 0.0
    %361 = vmatprep.subr.mxu0 0.0
    %362 = vmatpush1.msra.mxu0 0.0
    %363 = vmatprep.subr.mxu0 0.0
    %364 = vmatpush1.msra.mxu0 0.0
    %365 = vmatprep.subr.mxu0 0.0
    %366 = vmatpush1.msra.mxu0 0.0
    %367 = vmatprep.subr.mxu0 0.0
    %368 = vmatpush1.msra.mxu0 0.0
    %369 = vmatprep.subr.mxu0 0.0
    %370 = vmatpush1.msra.mxu0 0.0
    %371 = vmatprep.subr.mxu0 0.0
    %372 = vmatpush1.msra.mxu0 0.0
    %373 = vmatprep.subr.mxu0 0.0
    %374 = vmatpush1.msra.mxu0 0.0
    %375 = vmatprep.subr.mxu0 0.0
    %376 = vmatpush1.msra.mxu0 0.0
    %377 = vmatprep.subr.mxu0 0.0
    %378 = vmatpush1.msra.mxu0 0.0
    %379 = vmatprep.subr.mxu0 0.0
    %380 = vmatpush1.msra.mxu0 0.0
    %381 = vmatprep.subr.mxu0 0.0
    %382 = vmatpush1.msra.mxu0 0.0
    %383 = vmatprep.subr.mxu0 0.0
    %384 = vmatpush1.msra.mxu0 0.0
    %385 = vmatprep.subr.mxu0 0.0
    %386 = vmatpush1.msra.mxu0 0.0
    %387 = vmatprep.subr.mxu0 0.0
    %388 = vmatpush1.msra.mxu0 0.0
    %389 = vmatprep.subr.mxu0 0.0
    %390 = vmatpush1.msra.mxu0 0.0
    %391 = vmatprep.subr.mxu0 0.0
    %392 = vmatpush1.msra.mxu0 0.0
    %393 = vmatprep.mubr.f32.mxu0 0.0
    %v394 = vand.u32 %v112, 4294901760
    %v395 = vsub.f32 %v112, %v394
    %396 = vmatmul.mubr.f32.gmra.mrb[0].mxu0 %v395
    %v397 = vpop.f32.mrb[0].mxu0
    %v398 = vadd.f32 %v306, %v397
    %v399 = vpop.f32.mrb[0].mxu0
    %400 = vmatprep.mubr.f32.mxu0 0.0
    %v401 = vand.u32 %v115, 4294901760
    %v402 = vsub.f32 %v115, %v401
    %403 = vmatmul.mubr.f32.gmra.mrb[0].mxu0 %v402
    %v404 = vpop.f32.mrb[0].mxu0
    %v405 = vadd.f32 %v312, %v404
    %v406 = vpop.f32.mrb[0].mxu0
    %407 = vmatprep.mubr.f32.mxu0 0.0
    %v408 = vand.u32 %v118, 4294901760
    %v409 = vsub.f32 %v118, %v408
    %410 = vmatmul.mubr.f32.gmra.mrb[0].mxu0 %v409
    %v411 = vpop.f32.mrb[0].mxu0
    %v412 = vadd.f32 %v318, %v411
    %v413 = vpop.f32.mrb[0].mxu0
    %414 = vmatprep.mubr.f32.mxu0 0.0
    %v415 = vand.u32 %v121, 4294901760
    %v416 = vsub.f32 %v121, %v415
    %417 = vmatmul.mubr.f32.gmra.mrb[0].mxu0 %v416
    %v418 = vpop.f32.mrb[0].mxu0
    %v419 = vadd.f32 %v324, %v418
    %v420 = vpop.f32.mrb[0].mxu0
    %421 = vdwg.mxu0
    %422 = vmatprep.subr.mxu0 0.0
    %v423 = vand.u32 %v125, 4294901760
    %424 = vmatpush1.msra.mxu0 %v423
    %425 = vmatprep.subr.mxu0 0.0
    %426 = vmatpush1.msra.mxu0 0.0
    %427 = vmatprep.subr.mxu0 0.0
    %428 = vmatpush1.msra.mxu0 0.0
    %429 = vmatprep.subr.mxu0 0.0
    %430 = vmatpush1.msra.mxu0 0.0
    %431 = vmatprep.subr.mxu0 0.0
    %432 = vmatpush1.msra.mxu0 0.0
    %433 = vmatprep.subr.mxu0 0.0
    %434 = vmatpush1.msra.mxu0 0.0
    %435 = vmatprep.subr.mxu0 0.0
    %436 = vmatpush1.msra.mxu0 0.0
    %437 = vmatprep.subr.mxu0 0.0
    %438 = vmatpush1.msra.mxu0 0.0
    %439 = vmatprep.subr.mxu0 0.0
    %440 = vmatpush1.msra.mxu0 0.0
    %441 = vmatprep.subr.mxu0 0.0
    %442 = vmatpush1.msra.mxu0 0.0
    %443 = vmatprep.subr.mxu0 0.0
    %444 = vmatpush1.msra.mxu0 0.0
    %445 = vmatprep.subr.mxu0 0.0
    %446 = vmatpush1.msra.mxu0 0.0
    %447 = vmatprep.subr.mxu0 0.0
    %448 = vmatpush1.msra.mxu0 0.0
    %449 = vmatprep.subr.mxu0 0.0
    %450 = vmatpush1.msra.mxu0 0.0
    %451 = vmatprep.subr.mxu0 0.0
    %452 = vmatpush1.msra.mxu0 0.0
    %453 = vmatprep.subr.mxu0 0.0
    %454 = vmatpush1.msra.mxu0 0.0
    %455 = vmatprep.subr.mxu0 0.0
    %456 = vmatpush1.msra.mxu0 0.0
    %457 = vmatprep.subr.mxu0 0.0
    %458 = vmatpush1.msra.mxu0 0.0
    %459 = vmatprep.subr.mxu0 0.0
    %460 = vmatpush1.msra.mxu0 0.0
    %461 = vmatprep.subr.mxu0 0.0
    %462 = vmatpush1.msra.mxu0 0.0
    %463 = vmatprep.subr.mxu0 0.0
    %464 = vmatpush1.msra.mxu0 0.0
    %465 = vmatprep.subr.mxu0 0.0
    %466 = vmatpush1.msra.mxu0 0.0
    %467 = vmatprep.subr.mxu0 0.0
    %468 = vmatpush1.msra.mxu0 0.0
    %469 = vmatprep.subr.mxu0 0.0
    %470 = vmatpush1.msra.mxu0 0.0
    %471 = vmatprep.subr.mxu0 0.0
    %472 = vmatpush1.msra.mxu0 0.0
    %473 = vmatprep.subr.mxu0 0.0
    %474 = vmatpush1.msra.mxu0 0.0
    %475 = vmatprep.subr.mxu0 0.0
    %476 = vmatpush1.msra.mxu0 0.0
    %477 = vmatprep.subr.mxu0 0.0
    %478 = vmatpush1.msra.mxu0 0.0
    %479 = vmatprep.subr.mxu0 0.0
    %480 = vmatpush1.msra.mxu0 0.0
    %481 = vmatprep.subr.mxu0 0.0
    %482 = vmatpush1.msra.mxu0 0.0
    %483 = vmatprep.subr.mxu0 0.0
    %484 = vmatpush1.msra.mxu0 0.0
    %485 = vmatprep.subr.mxu0 0.0
    %486 = vmatpush1.msra.mxu0 0.0
    %487 = vmatprep.mubr.f32.mxu0 0.0
    %v488 = vand.u32 %v112, 4294901760
    %v489 = vsub.f32 %v112, %v488
    %v490 = vand.u32 %v489, 4294901760
    %491 = vmatmul.mubr.f32.gmra.mrb[0].mxu0 %v490
    %v492 = vpop.f32.mrb[0].mxu0
    %v493 = vadd.f32 %v398, %v492
    %v494 = vpop.f32.mrb[0].mxu0
    %495 = vmatprep.mubr.f32.mxu0 0.0
    %v496 = vand.u32 %v115, 4294901760
    %v497 = vsub.f32 %v115, %v496
    %v498 = vand.u32 %v497, 4294901760
    %499 = vmatmul.mubr.f32.gmra.mrb[0].mxu0 %v498
    %v500 = vpop.f32.mrb[0].mxu0
    %v501 = vadd.f32 %v405, %v500
    %v502 = vpop.f32.mrb[0].mxu0
    %503 = vmatprep.mubr.f32.mxu0 0.0
    %v504 = vand.u32 %v118, 4294901760
    %v505 = vsub.f32 %v118, %v504
    %v506 = vand.u32 %v505, 4294901760
    %507 = vmatmul.mubr.f32.gmra.mrb[0].mxu0 %v506
    %v508 = vpop.f32.mrb[0].mxu0
    %v509 = vadd.f32 %v412, %v508
    %v510 = vpop.f32.mrb[0].mxu0
    %511 = vmatprep.mubr.f32.mxu0 0.0
    %v512 = vand.u32 %v121, 4294901760
    %v513 = vsub.f32 %v121, %v512
    %v514 = vand.u32 %v513, 4294901760
    %515 = vmatmul.mubr.f32.gmra.mrb[0].mxu0 %v514
    %v516 = vpop.f32.mrb[0].mxu0
    %v517 = vadd.f32 %v419, %v516
    %v518 = vpop.f32.mrb[0].mxu0
    %519 = vdwg.mxu0
    %520 = vmatprep.subr.mxu0 0.0
    %v521 = vand.u32 %v125, 4294901760
    %v522 = vsub.f32 %v125, %v521
    %v523 = vand.u32 %v522, 4294901760
    %524 = vmatpush1.msra.mxu0 %v523
    %525 = vmatprep.subr.mxu0 0.0
    %526 = vmatpush1.msra.mxu0 0.0
    %527 = vmatprep.subr.mxu0 0.0
    %528 = vmatpush1.msra.mxu0 0.0
    %529 = vmatprep.subr.mxu0 0.0
    %530 = vmatpush1.msra.mxu0 0.0
    %531 = vmatprep.subr.mxu0 0.0
    %532 = vmatpush1.msra.mxu0 0.0
    %533 = vmatprep.subr.mxu0 0.0
    %534 = vmatpush1.msra.mxu0 0.0
    %535 = vmatprep.subr.mxu0 0.0
    %536 = vmatpush1.msra.mxu0 0.0
    %537 = vmatprep.subr.mxu0 0.0
    %538 = vmatpush1.msra.mxu0 0.0
    %539 = vmatprep.subr.mxu0 0.0
    %540 = vmatpush1.msra.mxu0 0.0
    %541 = vmatprep.subr.mxu0 0.0
    %542 = vmatpush1.msra.mxu0 0.0
    %543 = vmatprep.subr.mxu0 0.0
    %544 = vmatpush1.msra.mxu0 0.0
    %545 = vmatprep.subr.mxu0 0.0
    %546 = vmatpush1.msra.mxu0 0.0
    %547 = vmatprep.subr.mxu0 0.0
    %548 = vmatpush1.msra.mxu0 0.0
    %549 = vmatprep.subr.mxu0 0.0
    %550 = vmatpush1.msra.mxu0 0.0
    %551 = vmatprep.subr.mxu0 0.0
    %552 = vmatpush1.msra.mxu0 0.0
    %553 = vmatprep.subr.mxu0 0.0
    %554 = vmatpush1.msra.mxu0 0.0
    %555 = vmatprep.subr.mxu0 0.0
    %556 = vmatpush1.msra.mxu0 0.0
    %557 = vmatprep.subr.mxu0 0.0
    %558 = vmatpush1.msra.mxu0 0.0
    %559 = vmatprep.subr.mxu0 0.0
    %560 = vmatpush1.msra.mxu0 0.0
    %561 = vmatprep.subr.mxu0 0.0
    %562 = vmatpush1.msra.mxu0 0.0
    %563 = vmatprep.subr.mxu0 0.0
    %564 = vmatpush1.msra.mxu0 0.0
    %565 = vmatprep.subr.mxu0 0.0
    %566 = vmatpush1.msra.mxu0 0.0
    %567 = vmatprep.subr.mxu0 0.0
    %568 = vmatpush1.msra.mxu0 0.0
    %569 = vmatprep.subr.mxu0 0.0
    %570 = vmatpush1.msra.mxu0 0.0
    %571 = vmatprep.subr.mxu0 0.0
    %572 = vmatpush1.msra.mxu0 0.0
    %573 = vmatprep.subr.mxu0 0.0
    %574 = vmatpush1.msra.mxu0 0.0
    %575 = vmatprep.subr.mxu0 0.0
    %576 = vmatpush1.msra.mxu0 0.0
    %577 = vmatprep.subr.mxu0 0.0
    %578 = vmatpush1.msra.mxu0 0.0
    %579 = vmatprep.subr.mxu0 0.0
    %580 = vmatpush1.msra.mxu0 0.0
    %581 = vmatprep.subr.mxu0 0.0
    %582 = vmatpush1.msra.mxu0 0.0
    %583 = vmatprep.subr.mxu0 0.0
    %584 = vmatpush1.msra.mxu0 0.0
    %585 = vmatprep.subr.mxu0 0.0
    %586 = vmatpush1.msra.mxu0 0.0
    %587 = vmatprep.mubr.f32.mxu0 0.0
    %v588 = vand.u32 %v112, 4294901760
    %589 = vmatmul.mubr.f32.gmra.mrb[0].mxu0 %v588
    %v590 = vpop.f32.mrb[0].mxu0
    %v591 = vadd.f32 %v493, %v590
    %v592 = vpop.f32.mrb[0].mxu0
    %593 = vmatprep.mubr.f32.mxu0 0.0
    %v594 = vand.u32 %v115, 4294901760
    %595 = vmatmul.mubr.f32.gmra.mrb[0].mxu0 %v594
    %v596 = vpop.f32.mrb[0].mxu0
    %v597 = vadd.f32 %v501, %v596
    %v598 = vpop.f32.mrb[0].mxu0
    %599 = vmatprep.mubr.f32.mxu0 0.0
    %v600 = vand.u32 %v118, 4294901760
    %601 = vmatmul.mubr.f32.gmra.mrb[0].mxu0 %v600
    %v602 = vpop.f32.mrb[0].mxu0
    %v603 = vadd.f32 %v509, %v602
    %v604 = vpop.f32.mrb[0].mxu0
    %605 = vmatprep.mubr.f32.mxu0 0.0
    %v606 = vand.u32 %v121, 4294901760
    %607 = vmatmul.mubr.f32.gmra.mrb[0].mxu0 %v606
    %v608 = vpop.f32.mrb[0].mxu0
    %v609 = vadd.f32 %v517, %v608
    %v610 = vpop.f32.mrb[0].mxu0
    %611 = vdwg.mxu0
    %612 = vmatprep.subr.mxu0 0.0
    %v613 = vand.u32 %v125, 4294901760
    %614 = vmatpush1.msra.mxu0 %v613
    %615 = vmatprep.subr.mxu0 0.0
    %616 = vmatpush1.msra.mxu0 0.0
    %617 = vmatprep.subr.mxu0 0.0
    %618 = vmatpush1.msra.mxu0 0.0
    %619 = vmatprep.subr.mxu0 0.0
    %620 = vmatpush1.msra.mxu0 0.0
    %621 = vmatprep.subr.mxu0 0.0
    %622 = vmatpush1.msra.mxu0 0.0
    %623 = vmatprep.subr.mxu0 0.0
    %624 = vmatpush1.msra.mxu0 0.0
    %625 = vmatprep.subr.mxu0 0.0
    %626 = vmatpush1.msra.mxu0 0.0
    %627 = vmatprep.subr.mxu0 0.0
    %628 = vmatpush1.msra.mxu0 0.0
    %629 = vmatprep.subr.mxu0 0.0
    %630 = vmatpush1.msra.mxu0 0.0
    %631 = vmatprep.subr.mxu0 0.0
    %632 = vmatpush1.msra.mxu0 0.0
    %633 = vmatprep.subr.mxu0 0.0
    %634 = vmatpush1.msra.mxu0 0.0
    %635 = vmatprep.subr.mxu0 0.0
    %636 = vmatpush1.msra.mxu0 0.0
    %637 = vmatprep.subr.mxu0 0.0
    %638 = vmatpush1.msra.mxu0 0.0
    %639 = vmatprep.subr.mxu0 0.0
    %640 = vmatpush1.msra.mxu0 0.0
    %641 = vmatprep.subr.mxu0 0.0
    %642 = vmatpush1.msra.mxu0 0.0
    %643 = vmatprep.subr.mxu0 0.0
    %644 = vmatpush1.msra.mxu0 0.0
    %645 = vmatprep.subr.mxu0 0.0
    %646 = vmatpush1.msra.mxu0 0.0
    %647 = vmatprep.subr.mxu0 0.0
    %648 = vmatpush1.msra.mxu0 0.0
    %649 = vmatprep.subr.mxu0 0.0
    %650 = vmatpush1.msra.mxu0 0.0
    %651 = vmatprep.subr.mxu0 0.0
    %652 = vmatpush1.msra.mxu0 0.0
    %653 = vmatprep.subr.mxu0 0.0
    %654 = vmatpush1.msra.mxu0 0.0
    %655 = vmatprep.subr.mxu0 0.0
    %656 = vmatpush1.msra.mxu0 0.0
    %657 = vmatprep.subr.mxu0 0.0
    %658 = vmatpush1.msra.mxu0 0.0
    %659 = vmatprep.subr.mxu0 0.0
    %660 = vmatpush1.msra.mxu0 0.0
    %661 = vmatprep.subr.mxu0 0.0
    %662 = vmatpush1.msra.mxu0 0.0
    %663 = vmatprep.subr.mxu0 0.0
    %664 = vmatpush1.msra.mxu0 0.0
    %665 = vmatprep.subr.mxu0 0.0
    %666 = vmatpush1.msra.mxu0 0.0
    %667 = vmatprep.subr.mxu0 0.0
    %668 = vmatpush1.msra.mxu0 0.0
    %669 = vmatprep.subr.mxu0 0.0
    %670 = vmatpush1.msra.mxu0 0.0
    %671 = vmatprep.subr.mxu0 0.0
    %672 = vmatpush1.msra.mxu0 0.0
    %673 = vmatprep.subr.mxu0 0.0
    %674 = vmatpush1.msra.mxu0 0.0
    %675 = vmatprep.subr.mxu0 0.0
    %676 = vmatpush1.msra.mxu0 0.0
    %677 = vmatprep.mubr.f32.mxu0 0.0
    %v678 = vand.u32 %v112, 4294901760
    %679 = vmatmul.mubr.f32.gmra.mrb[0].mxu0 %v678
    %v680 = vpop.f32.mrb[0].mxu0
    %v681 = vadd.f32 %v591, %v680
    %v682 = vpop.f32.mrb[0].mxu0
    %683 = vmatprep.mubr.f32.mxu0 0.0
    %v684 = vand.u32 %v115, 4294901760
    %685 = vmatmul.mubr.f32.gmra.mrb[0].mxu0 %v684
    %v686 = vpop.f32.mrb[0].mxu0
    %v687 = vadd.f32 %v597, %v686
    %v688 = vpop.f32.mrb[0].mxu0
    %689 = vmatprep.mubr.f32.mxu0 0.0
    %v690 = vand.u32 %v118, 4294901760
    %691 = vmatmul.mubr.f32.gmra.mrb[0].mxu0 %v690
    %v692 = vpop.f32.mrb[0].mxu0
    %v693 = vadd.f32 %v603, %v692
    %v694 = vpop.f32.mrb[0].mxu0
    %695 = vmatprep.mubr.f32.mxu0 0.0
    %v696 = vand.u32 %v121, 4294901760
    %697 = vmatmul.mubr.f32.gmra.mrb[0].mxu0 %v696
    %v698 = vpop.f32.mrb[0].mxu0
    %v699 = vadd.f32 %v609, %v698
    %v700 = vpop.f32.mrb[0].mxu0
    %701 = vdwg.mxu0
    %v702 = vld [vmem:[%s3] sm:$0x1]
    %v703 = vld [vmem:[%s3 + $0x1] sm:$0x1]
    %v704 = vld [vmem:[%s3 + $0x2] sm:$0x1]
    %v705 = vld [vmem:[%s3 + $0x3] sm:$0x1]
    %v710 = vlaneseq
    %v711 = vshrl.u32 %v710, 7
    %v712 = vsub.s32 0, %v711
    %v713 = vrot.slane %v702, %v712
    %v714 = vlaneseq
    %v715 = vshrl.u32 %v714, 7
    %v716 = vsub.s32 0, %v715
    %v717 = vrot.slane %v703, %v716
    %v718 = vlaneseq
    %v719 = vshrl.u32 %v718, 7
    %v720 = vsub.s32 0, %v719
    %v721 = vrot.slane %v704, %v720
    %v722 = vlaneseq
    %v723 = vshrl.u32 %v722, 7
    %v724 = vsub.s32 0, %v723
    %v725 = vrot.slane %v705, %v724
    %v730 = vmul.f32 %v681, %v713
    %v731 = vmul.f32 %v687, %v717
    %v732 = vmul.f32 %v693, %v721
    %v733 = vmul.f32 %v699, %v725
    %v734 = vld [vmem:[%s4] sm:$0x1]
    %v735 = vld [vmem:[%s4 + $0x1] sm:$0x1]
    %v736 = vld [vmem:[%s4 + $0x2] sm:$0x1]
    %v737 = vld [vmem:[%s4 + $0x3] sm:$0x1]
    %v742 = vlaneseq
    %v743 = vshrl.u32 %v742, 7
    %v744 = vsub.s32 0, %v743
    %v745 = vrot.slane %v734, %v744
    %v746 = vlaneseq
    %v747 = vshrl.u32 %v746, 7
    %v748 = vsub.s32 0, %v747
    %v749 = vrot.slane %v735, %v748
    %v750 = vlaneseq
    %v751 = vshrl.u32 %v750, 7
    %v752 = vsub.s32 0, %v751
    %v753 = vrot.slane %v736, %v752
    %v754 = vlaneseq
    %v755 = vshrl.u32 %v754, 7
    %v756 = vsub.s32 0, %v755
    %v757 = vrot.slane %v737, %v756
    %v762 = vadd.f32 %v730, %v745
    %v763 = vadd.f32 %v731, %v749
    %v764 = vadd.f32 %v732, %v753
    %v765 = vadd.f32 %v733, %v757
    %v766 = vmax.f32 %v762, 0.0
    %v767 = vmax.f32 %v763, 0.0
    %v768 = vmax.f32 %v764, 0.0
    %v769 = vmax.f32 %v765, 0.0
    %v770 = vld [vmem:[%s6] sm:$0x1]
    %v771 = vld [vmem:[%s6 + $0x1] sm:$0x1]
    %v772 = vld [vmem:[%s6 + $0x2] sm:$0x1]
    %v773 = vld [vmem:[%s6 + $0x3] sm:$0x1]
    %v778 = vlaneseq
    %v779 = vshrl.u32 %v778, 7
    %v780 = vsub.s32 0, %v779
    %v781 = vrot.slane %v770, %v780
    %v782 = vlaneseq
    %v783 = vshrl.u32 %v782, 7
    %v784 = vsub.s32 0, %v783
    %v785 = vrot.slane %v771, %v784
    %v786 = vlaneseq
    %v787 = vshrl.u32 %v786, 7
    %v788 = vsub.s32 0, %v787
    %v789 = vrot.slane %v772, %v788
    %v790 = vlaneseq
    %v791 = vshrl.u32 %v790, 7
    %v792 = vsub.s32 0, %v791
    %v793 = vrot.slane %v773, %v792
    %v798 = vmul.f32 %v766, %v781
    %v799 = vmul.f32 %v767, %v785
    %v800 = vmul.f32 %v768, %v789
    %v801 = vmul.f32 %v769, %v793
    %v802 = vld [vmem:[#allocation2] sm:$0xff]
    %v803 = vld [vmem:[#allocation2 + $0x8] sm:$0xff]
    %v804 = vld [vmem:[#allocation2 + $0x10] sm:$0xff]
    %v805 = vld [vmem:[#allocation2 + $0x18] sm:$0xff]
    %v806 = vld [vmem:[#allocation2 + $0x20] sm:$0xff]
    %v807 = vld [vmem:[#allocation2 + $0x28] sm:$0xff]
    %v808 = vld [vmem:[#allocation2 + $0x30] sm:$0xff]
    %v809 = vld [vmem:[#allocation2 + $0x38] sm:$0xff]
    %v810 = vld [vmem:[#allocation2 + $0x40] sm:$0xff]
    %v811 = vld [vmem:[#allocation2 + $0x48] sm:$0xff]
    %v812 = vld [vmem:[#allocation2 + $0x50] sm:$0xff]
    %v813 = vld [vmem:[#allocation2 + $0x58] sm:$0xff]
    %v814 = vld [vmem:[#allocation2 + $0x60] sm:$0xff]
    %v815 = vld [vmem:[#allocation2 + $0x68] sm:$0xff]
    %v816 = vld [vmem:[#allocation2 + $0x70] sm:$0xff]
    %v817 = vld [vmem:[#allocation2 + $0x78] sm:$0xff]
    %818 = vmatprep.subr.mxu0 0.0
    %v819 = vand.u32 %v802, 4294901760
    %820 = vmatpush1.msra.mxu0 %v819
    %821 = vmatprep.subr.mxu0 0.0
    %v822 = vand.u32 %v803, 4294901760
    %823 = vmatpush1.msra.mxu0 %v822
    %824 = vmatprep.subr.mxu0 0.0
    %v825 = vand.u32 %v804, 4294901760
    %826 = vmatpush1.msra.mxu0 %v825
    %827 = vmatprep.subr.mxu0 0.0
    %v828 = vand.u32 %v805, 4294901760
    %829 = vmatpush1.msra.mxu0 %v828
    %830 = vmatprep.subr.mxu0 0.0
    %v831 = vand.u32 %v806, 4294901760
    %832 = vmatpush1.msra.mxu0 %v831
    %833 = vmatprep.subr.mxu0 0.0
    %v834 = vand.u32 %v807, 4294901760
    %835 = vmatpush1.msra.mxu0 %v834
    %836 = vmatprep.subr.mxu0 0.0
    %v837 = vand.u32 %v808, 4294901760
    %838 = vmatpush1.msra.mxu0 %v837
    %839 = vmatprep.subr.mxu0 0.0
    %v840 = vand.u32 %v809, 4294901760
    %841 = vmatpush1.msra.mxu0 %v840
    %842 = vmatprep.subr.mxu0 0.0
    %v843 = vand.u32 %v810, 4294901760
    %844 = vmatpush1.msra.mxu0 %v843
    %845 = vmatprep.subr.mxu0 0.0
    %v846 = vand.u32 %v811, 4294901760
    %847 = vmatpush1.msra.mxu0 %v846
    %848 = vmatprep.subr.mxu0 0.0
    %v849 = vand.u32 %v812, 4294901760
    %850 = vmatpush1.msra.mxu0 %v849
    %851 = vmatprep.subr.mxu0 0.0
    %v852 = vand.u32 %v813, 4294901760
    %853 = vmatpush1.msra.mxu0 %v852
    %854 = vmatprep.subr.mxu0 0.0
    %v855 = vand.u32 %v814, 4294901760
    %856 = vmatpush1.msra.mxu0 %v855
    %857 = vmatprep.subr.mxu0 0.0
    %v858 = vand.u32 %v815, 4294901760
    %859 = vmatpush1.msra.mxu0 %v858
    %860 = vmatprep.subr.mxu0 0.0
    %v861 = vand.u32 %v816, 4294901760
    %862 = vmatpush1.msra.mxu0 %v861
    %863 = vmatprep.subr.mxu0 0.0
    %v864 = vand.u32 %v817, 4294901760
    %865 = vmatpush1.msra.mxu0 %v864
    %866 = vmatprep.subr.mxu0 0.0
    %867 = vmatpush1.msra.mxu0 0.0
    %868 = vmatprep.subr.mxu0 0.0
    %869 = vmatpush1.msra.mxu0 0.0
    %870 = vmatprep.subr.mxu0 0.0
    %871 = vmatpush1.msra.mxu0 0.0
    %872 = vmatprep.subr.mxu0 0.0
    %873 = vmatpush1.msra.mxu0 0.0
    %874 = vmatprep.subr.mxu0 0.0
    %875 = vmatpush1.msra.mxu0 0.0
    %876 = vmatprep.subr.mxu0 0.0
    %877 = vmatpush1.msra.mxu0 0.0
    %878 = vmatprep.subr.mxu0 0.0
    %879 = vmatpush1.msra.mxu0 0.0
    %880 = vmatprep.subr.mxu0 0.0
    %881 = vmatpush1.msra.mxu0 0.0
    %882 = vmatprep.subr.mxu0 0.0
    %883 = vmatpush1.msra.mxu0 0.0
    %884 = vmatprep.subr.mxu0 0.0
    %885 = vmatpush1.msra.mxu0 0.0
    %886 = vmatprep.subr.mxu0 0.0
    %887 = vmatpush1.msra.mxu0 0.0
    %888 = vmatprep.subr.mxu0 0.0
    %889 = vmatpush1.msra.mxu0 0.0
    %890 = vmatprep.subr.mxu0 0.0
    %891 = vmatpush1.msra.mxu0 0.0
    %892 = vmatprep.subr.mxu0 0.0
    %893 = vmatpush1.msra.mxu0 0.0
    %894 = vmatprep.subr.mxu0 0.0
    %895 = vmatpush1.msra.mxu0 0.0
    %896 = vmatprep.subr.mxu0 0.0
    %897 = vmatpush1.msra.mxu0 0.0
    %898 = vmatprep.mubr.f32.mxu0 0.0
    %v899 = vand.u32 %v798, 4294901760
    %v900 = vsub.f32 %v798, %v899
    %v901 = vand.u32 %v900, 4294901760
    %v902 = vsub.f32 %v900, %v901
    %v903 = vand.u32 %v902, 4294901760
    %904 = vmatmul.mubr.f32.gmra.mrb[0].mxu0 %v903
    %v905 = vpop.f32.mrb[0].mxu0
    %v906 = vadd.f32 0.0, %v905
    %v907 = vpop.f32.mrb[0].mxu0
    %908 = vmatprep.mubr.f32.mxu0 0.0
    %v909 = vand.u32 %v799, 4294901760
    %v910 = vsub.f32 %v799, %v909
    %v911 = vand.u32 %v910, 4294901760
    %v912 = vsub.f32 %v910, %v911
    %v913 = vand.u32 %v912, 4294901760
    %914 = vmatmul.mubr.f32.gmra.mrb[0].mxu0 %v913
    %v915 = vpop.f32.mrb[0].mxu0
    %v916 = vadd.f32 0.0, %v915
    %v917 = vpop.f32.mrb[0].mxu0
    %918 = vmatprep.mubr.f32.mxu0 0.0
    %v919 = vand.u32 %v800, 4294901760
    %v920 = vsub.f32 %v800, %v919
    %v921 = vand.u32 %v920, 4294901760
    %v922 = vsub.f32 %v920, %v921
    %v923 = vand.u32 %v922, 4294901760
    %924 = vmatmul.mubr.f32.gmra.mrb[0].mxu0 %v923
    %v925 = vpop.f32.mrb[0].mxu0
    %v926 = vadd.f32 0.0, %v925
    %v927 = vpop.f32.mrb[0].mxu0
    %928 = vmatprep.mubr.f32.mxu0 0.0
    %v929 = vand.u32 %v801, 4294901760
    %v930 = vsub.f32 %v801, %v929
    %v931 = vand.u32 %v930, 4294901760
    %v932 = vsub.f32 %v930, %v931
    %v933 = vand.u32 %v932, 4294901760
    %934 = vmatmul.mubr.f32.gmra.mrb[0].mxu0 %v933
    %v935 = vpop.f32.mrb[0].mxu0
    %v936 = vadd.f32 0.0, %v935
    %v937 = vpop.f32.mrb[0].mxu0
    %938 = vdwg.mxu0
    %939 = vmatprep.subr.mxu0 0.0
    %v940 = vand.u32 %v802, 4294901760
    %v941 = vsub.f32 %v802, %v940
    %v942 = vand.u32 %v941, 4294901760
    %v943 = vsub.f32 %v941, %v942
    %v944 = vand.u32 %v943, 4294901760
    %945 = vmatpush1.msra.mxu0 %v944
    %946 = vmatprep.subr.mxu0 0.0
    %v947 = vand.u32 %v803, 4294901760
    %v948 = vsub.f32 %v803, %v947
    %v949 = vand.u32 %v948, 4294901760
    %v950 = vsub.f32 %v948, %v949
    %v951 = vand.u32 %v950, 4294901760
    %952 = vmatpush1.msra.mxu0 %v951
    %953 = vmatprep.subr.mxu0 0.0
    %v954 = vand.u32 %v804, 4294901760
    %v955 = vsub.f32 %v804, %v954
    %v956 = vand.u32 %v955, 4294901760
    %v957 = vsub.f32 %v955, %v956
    %v958 = vand.u32 %v957, 4294901760
    %959 = vmatpush1.msra.mxu0 %v958
    %960 = vmatprep.subr.mxu0 0.0
    %v961 = vand.u32 %v805, 4294901760
    %v962 = vsub.f32 %v805, %v961
    %v963 = vand.u32 %v962, 4294901760
    %v964 = vsub.f32 %v962, %v963
    %v965 = vand.u32 %v964, 4294901760
    %966 = vmatpush1.msra.mxu0 %v965
    %967 = vmatprep.subr.mxu0 0.0
    %v968 = vand.u32 %v806, 4294901760
    %v969 = vsub.f32 %v806, %v968
    %v970 = vand.u32 %v969, 4294901760
    %v971 = vsub.f32 %v969, %v970
    %v972 = vand.u32 %v971, 4294901760
    %973 = vmatpush1.msra.mxu0 %v972
    %974 = vmatprep.subr.mxu0 0.0
    %v975 = vand.u32 %v807, 4294901760
    %v976 = vsub.f32 %v807, %v975
    %v977 = vand.u32 %v976, 4294901760
    %v978 = vsub.f32 %v976, %v977
    %v979 = vand.u32 %v978, 4294901760
    %980 = vmatpush1.msra.mxu0 %v979
    %981 = vmatprep.subr.mxu0 0.0
    %v982 = vand.u32 %v808, 4294901760
    %v983 = vsub.f32 %v808, %v982
    %v984 = vand.u32 %v983, 4294901760
    %v985 = vsub.f32 %v983, %v984
    %v986 = vand.u32 %v985, 4294901760
    %987 = vmatpush1.msra.mxu0 %v986
    %988 = vmatprep.subr.mxu0 0.0
    %v989 = vand.u32 %v809, 4294901760
    %v990 = vsub.f32 %v809, %v989
    %v991 = vand.u32 %v990, 4294901760
    %v992 = vsub.f32 %v990, %v991
    %v993 = vand.u32 %v992, 4294901760
    %994 = vmatpush1.msra.mxu0 %v993
    %995 = vmatprep.subr.mxu0 0.0
    %v996 = vand.u32 %v810, 4294901760
    %v997 = vsub.f32 %v810, %v996
    %v998 = vand.u32 %v997, 4294901760
    %v999 = vsub.f32 %v997, %v998
    %v1000 = vand.u32 %v999, 4294901760
    %1001 = vmatpush1.msra.mxu0 %v1000
    %1002 = vmatprep.subr.mxu0 0.0
    %v1003 = vand.u32 %v811, 4294901760
    %v1004 = vsub.f32 %v811, %v1003
    %v1005 = vand.u32 %v1004, 4294901760
    %v1006 = vsub.f32 %v1004, %v1005
    %v1007 = vand.u32 %v1006, 4294901760
    %1008 = vmatpush1.msra.mxu0 %v1007
    %1009 = vmatprep.subr.mxu0 0.0
    %v1010 = vand.u32 %v812, 4294901760
    %v1011 = vsub.f32 %v812, %v1010
    %v1012 = vand.u32 %v1011, 4294901760
    %v1013 = vsub.f32 %v1011, %v1012
    %v1014 = vand.u32 %v1013, 4294901760
    %1015 = vmatpush1.msra.mxu0 %v1014
    %1016 = vmatprep.subr.mxu0 0.0
    %v1017 = vand.u32 %v813, 4294901760
    %v1018 = vsub.f32 %v813, %v1017
    %v1019 = vand.u32 %v1018, 4294901760
    %v1020 = vsub.f32 %v1018, %v1019
    %v1021 = vand.u32 %v1020, 4294901760
    %1022 = vmatpush1.msra.mxu0 %v1021
    %1023 = vmatprep.subr.mxu0 0.0
    %v1024 = vand.u32 %v814, 4294901760
    %v1025 = vsub.f32 %v814, %v1024
    %v1026 = vand.u32 %v1025, 4294901760
    %v1027 = vsub.f32 %v1025, %v1026
    %v1028 = vand.u32 %v1027, 4294901760
    %1029 = vmatpush1.msra.mxu0 %v1028
    %1030 = vmatprep.subr.mxu0 0.0
    %v1031 = vand.u32 %v815, 4294901760
    %v1032 = vsub.f32 %v815, %v1031
    %v1033 = vand.u32 %v1032, 4294901760
    %v1034 = vsub.f32 %v1032, %v1033
    %v1035 = vand.u32 %v1034, 4294901760
    %1036 = vmatpush1.msra.mxu0 %v1035
    %1037 = vmatprep.subr.mxu0 0.0
    %v1038 = vand.u32 %v816, 4294901760
    %v1039 = vsub.f32 %v816, %v1038
    %v1040 = vand.u32 %v1039, 4294901760
    %v1041 = vsub.f32 %v1039, %v1040
    %v1042 = vand.u32 %v1041, 4294901760
    %1043 = vmatpush1.msra.mxu0 %v1042
    %1044 = vmatprep.subr.mxu0 0.0
    %v1045 = vand.u32 %v817, 4294901760
    %v1046 = vsub.f32 %v817, %v1045
    %v1047 = vand.u32 %v1046, 4294901760
    %v1048 = vsub.f32 %v1046, %v1047
    %v1049 = vand.u32 %v1048, 4294901760
    %1050 = vmatpush1.msra.mxu0 %v1049
    %1051 = vmatprep.subr.mxu0 0.0
    %1052 = vmatpush1.msra.mxu0 0.0
    %1053 = vmatprep.subr.mxu0 0.0
    %1054 = vmatpush1.msra.mxu0 0.0
    %1055 = vmatprep.subr.mxu0 0.0
    %1056 = vmatpush1.msra.mxu0 0.0
    %1057 = vmatprep.subr.mxu0 0.0
    %1058 = vmatpush1.msra.mxu0 0.0
    %1059 = vmatprep.subr.mxu0 0.0
    %1060 = vmatpush1.msra.mxu0 0.0
    %1061 = vmatprep.subr.mxu0 0.0
    %1062 = vmatpush1.msra.mxu0 0.0
    %1063 = vmatprep.subr.mxu0 0.0
    %1064 = vmatpush1.msra.mxu0 0.0
    %1065 = vmatprep.subr.mxu0 0.0
    %1066 = vmatpush1.msra.mxu0 0.0
    %1067 = vmatprep.subr.mxu0 0.0
    %1068 = vmatpush1.msra.mxu0 0.0
    %1069 = vmatprep.subr.mxu0 0.0
    %1070 = vmatpush1.msra.mxu0 0.0
    %1071 = vmatprep.subr.mxu0 0.0
    %1072 = vmatpush1.msra.mxu0 0.0
    %1073 = vmatprep.subr.mxu0 0.0
    %1074 = vmatpush1.msra.mxu0 0.0
    %1075 = vmatprep.subr.mxu0 0.0
    %1076 = vmatpush1.msra.mxu0 0.0
    %1077 = vmatprep.subr.mxu0 0.0
    %1078 = vmatpush1.msra.mxu0 0.0
    %1079 = vmatprep.subr.mxu0 0.0
    %1080 = vmatpush1.msra.mxu0 0.0
    %1081 = vmatprep.subr.mxu0 0.0
    %1082 = vmatpush1.msra.mxu0 0.0
    %1083 = vmatprep.mubr.f32.mxu0 0.0
    %v1084 = vand.u32 %v798, 4294901760
    %1085 = vmatmul.mubr.f32.gmra.mrb[0].mxu0 %v1084
    %v1086 = vpop.f32.mrb[0].mxu0
    %v1087 = vadd.f32 %v906, %v1086
    %v1088 = vpop.f32.mrb[0].mxu0
    %1089 = vmatprep.mubr.f32.mxu0 0.0
    %v1090 = vand.u32 %v799, 4294901760
    %1091 = vmatmul.mubr.f32.gmra.mrb[0].mxu0 %v1090
    %v1092 = vpop.f32.mrb[0].mxu0
    %v1093 = vadd.f32 %v916, %v1092
    %v1094 = vpop.f32.mrb[0].mxu0
    %1095 = vmatprep.mubr.f32.mxu0 0.0
    %v1096 = vand.u32 %v800, 4294901760
    %1097 = vmatmul.mubr.f32.gmra.mrb[0].mxu0 %v1096
    %v1098 = vpop.f32.mrb[0].mxu0
    %v1099 = vadd.f32 %v926, %v1098
    %v1100 = vpop.f32.mrb[0].mxu0
    %1101 = vmatprep.mubr.f32.mxu0 0.0
    %v1102 = vand.u32 %v801, 4294901760
    %1103 = vmatmul.mubr.f32.gmra.mrb[0].mxu0 %v1102
    %v1104 = vpop.f32.mrb[0].mxu0
    %v1105 = vadd.f32 %v936, %v1104
    %v1106 = vpop.f32.mrb[0].mxu0
    %1107 = vdwg.mxu0
    %1108 = vmatprep.subr.mxu0 0.0
    %v1109 = vand.u32 %v802, 4294901760
    %v1110 = vsub.f32 %v802, %v1109
    %1111 = vmatpush1.msra.mxu0 %v1110
    %1112 = vmatprep.subr.mxu0 0.0
    %v1113 = vand.u32 %v803, 4294901760
    %v1114 = vsub.f32 %v803, %v1113
    %1115 = vmatpush1.msra.mxu0 %v1114
    %1116 = vmatprep.subr.mxu0 0.0
    %v1117 = vand.u32 %v804, 4294901760
    %v1118 = vsub.f32 %v804, %v1117
    %1119 = vmatpush1.msra.mxu0 %v1118
    %1120 = vmatprep.subr.mxu0 0.0
    %v1121 = vand.u32 %v805, 4294901760
    %v1122 = vsub.f32 %v805, %v1121
    %1123 = vmatpush1.msra.mxu0 %v1122
    %1124 = vmatprep.subr.mxu0 0.0
    %v1125 = vand.u32 %v806, 4294901760
    %v1126 = vsub.f32 %v806, %v1125
    %1127 = vmatpush1.msra.mxu0 %v1126
    %1128 = vmatprep.subr.mxu0 0.0
    %v1129 = vand.u32 %v807, 4294901760
    %v1130 = vsub.f32 %v807, %v1129
    %1131 = vmatpush1.msra.mxu0 %v1130
    %1132 = vmatprep.subr.mxu0 0.0
    %v1133 = vand.u32 %v808, 4294901760
    %v1134 = vsub.f32 %v808, %v1133
    %1135 = vmatpush1.msra.mxu0 %v1134
    %1136 = vmatprep.subr.mxu0 0.0
    %v1137 = vand.u32 %v809, 4294901760
    %v1138 = vsub.f32 %v809, %v1137
    %1139 = vmatpush1.msra.mxu0 %v1138
    %1140 = vmatprep.subr.mxu0 0.0
    %v1141 = vand.u32 %v810, 4294901760
    %v1142 = vsub.f32 %v810, %v1141
    %1143 = vmatpush1.msra.mxu0 %v1142
    %1144 = vmatprep.subr.mxu0 0.0
    %v1145 = vand.u32 %v811, 4294901760
    %v1146 = vsub.f32 %v811, %v1145
    %1147 = vmatpush1.msra.mxu0 %v1146
    %1148 = vmatprep.subr.mxu0 0.0
    %v1149 = vand.u32 %v812, 4294901760
    %v1150 = vsub.f32 %v812, %v1149
    %1151 = vmatpush1.msra.mxu0 %v1150
    %1152 = vmatprep.subr.mxu0 0.0
    %v1153 = vand.u32 %v813, 4294901760
    %v1154 = vsub.f32 %v813, %v1153
    %1155 = vmatpush1.msra.mxu0 %v1154
    %1156 = vmatprep.subr.mxu0 0.0
    %v1157 = vand.u32 %v814, 4294901760
    %v1158 = vsub.f32 %v814, %v1157
    %1159 = vmatpush1.msra.mxu0 %v1158
    %1160 = vmatprep.subr.mxu0 0.0
    %v1161 = vand.u32 %v815, 4294901760
    %v1162 = vsub.f32 %v815, %v1161
    %1163 = vmatpush1.msra.mxu0 %v1162
    %1164 = vmatprep.subr.mxu0 0.0
    %v1165 = vand.u32 %v816, 4294901760
    %v1166 = vsub.f32 %v816, %v1165
    %1167 = vmatpush1.msra.mxu0 %v1166
    %1168 = vmatprep.subr.mxu0 0.0
    %v1169 = vand.u32 %v817, 4294901760
    %v1170 = vsub.f32 %v817, %v1169
    %1171 = vmatpush1.msra.mxu0 %v1170
    %1172 = vmatprep.subr.mxu0 0.0
    %1173 = vmatpush1.msra.mxu0 0.0
    %1174 = vmatprep.subr.mxu0 0.0
    %1175 = vmatpush1.msra.mxu0 0.0
    %1176 = vmatprep.subr.mxu0 0.0
    %1177 = vmatpush1.msra.mxu0 0.0
    %1178 = vmatprep.subr.mxu0 0.0
    %1179 = vmatpush1.msra.mxu0 0.0
    %1180 = vmatprep.subr.mxu0 0.0
    %1181 = vmatpush1.msra.mxu0 0.0
    %1182 = vmatprep.subr.mxu0 0.0
    %1183 = vmatpush1.msra.mxu0 0.0
    %1184 = vmatprep.subr.mxu0 0.0
    %1185 = vmatpush1.msra.mxu0 0.0
    %1186 = vmatprep.subr.mxu0 0.0
    %1187 = vmatpush1.msra.mxu0 0.0
    %1188 = vmatprep.subr.mxu0 0.0
    %1189 = vmatpush1.msra.mxu0 0.0
    %1190 = vmatprep.subr.mxu0 0.0
    %1191 = vmatpush1.msra.mxu0 0.0
    %1192 = vmatprep.subr.mxu0 0.0
    %1193 = vmatpush1.msra.mxu0 0.0
    %1194 = vmatprep.subr.mxu0 0.0
    %1195 = vmatpush1.msra.mxu0 0.0
    %1196 = vmatprep.subr.mxu0 0.0
    %1197 = vmatpush1.msra.mxu0 0.0
    %1198 = vmatprep.subr.mxu0 0.0
    %1199 = vmatpush1.msra.mxu0 0.0
    %1200 = vmatprep.subr.mxu0 0.0
    %1201 = vmatpush1.msra.mxu0 0.0
    %1202 = vmatprep.subr.mxu0 0.0
    %1203 = vmatpush1.msra.mxu0 0.0
    %1204 = vmatprep.mubr.f32.mxu0 0.0
    %v1205 = vand.u32 %v798, 4294901760
    %v1206 = vsub.f32 %v798, %v1205
    %1207 = vmatmul.mubr.f32.gmra.mrb[0].mxu0 %v1206
    %v1208 = vpop.f32.mrb[0].mxu0
    %v1209 = vadd.f32 %v1087, %v1208
    %v1210 = vpop.f32.mrb[0].mxu0
    %1211 = vmatprep.mubr.f32.mxu0 0.0
    %v1212 = vand.u32 %v799, 4294901760
    %v1213 = vsub.f32 %v799, %v1212
    %1214 = vmatmul.mubr.f32.gmra.mrb[0].mxu0 %v1213
    %v1215 = vpop.f32.mrb[0].mxu0
    %v1216 = vadd.f32 %v1093, %v1215
    %v1217 = vpop.f32.mrb[0].mxu0
    %1218 = vmatprep.mubr.f32.mxu0 0.0
    %v1219 = vand.u32 %v800, 4294901760
    %v1220 = vsub.f32 %v800, %v1219
    %1221 = vmatmul.mubr.f32.gmra.mrb[0].mxu0 %v1220
    %v1222 = vpop.f32.mrb[0].mxu0
    %v1223 = vadd.f32 %v1099, %v1222
    %v1224 = vpop.f32.mrb[0].mxu0
    %1225 = vmatprep.mubr.f32.mxu0 0.0
    %v1226 = vand.u32 %v801, 4294901760
    %v1227 = vsub.f32 %v801, %v1226
    %1228 = vmatmul.mubr.f32.gmra.mrb[0].mxu0 %v1227
    %v1229 = vpop.f32.mrb[0].mxu0
    %v1230 = vadd.f32 %v1105, %v1229
    %v1231 = vpop.f32.mrb[0].mxu0
    %1232 = vdwg.mxu0
    %1233 = vmatprep.subr.mxu0 0.0
    %v1234 = vand.u32 %v802, 4294901760
    %1235 = vmatpush1.msra.mxu0 %v1234
    %1236 = vmatprep.subr.mxu0 0.0
    %v1237 = vand.u32 %v803, 4294901760
    %1238 = vmatpush1.msra.mxu0 %v1237
    %1239 = vmatprep.subr.mxu0 0.0
    %v1240 = vand.u32 %v804, 4294901760
    %1241 = vmatpush1.msra.mxu0 %v1240
    %1242 = vmatprep.subr.mxu0 0.0
    %v1243 = vand.u32 %v805, 4294901760
    %1244 = vmatpush1.msra.mxu0 %v1243
    %1245 = vmatprep.subr.mxu0 0.0
    %v1246 = vand.u32 %v806, 4294901760
    %1247 = vmatpush1.msra.mxu0 %v1246
    %1248 = vmatprep.subr.mxu0 0.0
    %v1249 = vand.u32 %v807, 4294901760
    %1250 = vmatpush1.msra.mxu0 %v1249
    %1251 = vmatprep.subr.mxu0 0.0
    %v1252 = vand.u32 %v808, 4294901760
    %1253 = vmatpush1.msra.mxu0 %v1252
    %1254 = vmatprep.subr.mxu0 0.0
    %v1255 = vand.u32 %v809, 4294901760
    %1256 = vmatpush1.msra.mxu0 %v1255
    %1257 = vmatprep.subr.mxu0 0.0
    %v1258 = vand.u32 %v810, 4294901760
    %1259 = vmatpush1.msra.mxu0 %v1258
    %1260 = vmatprep.subr.mxu0 0.0
    %v1261 = vand.u32 %v811, 4294901760
    %1262 = vmatpush1.msra.mxu0 %v1261
    %1263 = vmatprep.subr.mxu0 0.0
    %v1264 = vand.u32 %v812, 4294901760
    %1265 = vmatpush1.msra.mxu0 %v1264
    %1266 = vmatprep.subr.mxu0 0.0
    %v1267 = vand.u32 %v813, 4294901760
    %1268 = vmatpush1.msra.mxu0 %v1267
    %1269 = vmatprep.subr.mxu0 0.0
    %v1270 = vand.u32 %v814, 4294901760
    %1271 = vmatpush1.msra.mxu0 %v1270
    %1272 = vmatprep.subr.mxu0 0.0
    %v1273 = vand.u32 %v815, 4294901760
    %1274 = vmatpush1.msra.mxu0 %v1273
    %1275 = vmatprep.subr.mxu0 0.0
    %v1276 = vand.u32 %v816, 4294901760
    %1277 = vmatpush1.msra.mxu0 %v1276
    %1278 = vmatprep.subr.mxu0 0.0
    %v1279 = vand.u32 %v817, 4294901760
    %1280 = vmatpush1.msra.mxu0 %v1279
    %1281 = vmatprep.subr.mxu0 0.0
    %1282 = vmatpush1.msra.mxu0 0.0
    %1283 = vmatprep.subr.mxu0 0.0
    %1284 = vmatpush1.msra.mxu0 0.0
    %1285 = vmatprep.subr.mxu0 0.0
    %1286 = vmatpush1.msra.mxu0 0.0
    %1287 = vmatprep.subr.mxu0 0.0
    %1288 = vmatpush1.msra.mxu0 0.0
    %1289 = vmatprep.subr.mxu0 0.0
    %1290 = vmatpush1.msra.mxu0 0.0
    %1291 = vmatprep.subr.mxu0 0.0
    %1292 = vmatpush1.msra.mxu0 0.0
    %1293 = vmatprep.subr.mxu0 0.0
    %1294 = vmatpush1.msra.mxu0 0.0
    %1295 = vmatprep.subr.mxu0 0.0
    %1296 = vmatpush1.msra.mxu0 0.0
    %1297 = vmatprep.subr.mxu0 0.0
    %1298 = vmatpush1.msra.mxu0 0.0
    %1299 = vmatprep.subr.mxu0 0.0
    %1300 = vmatpush1.msra.mxu0 0.0
    %1301 = vmatprep.subr.mxu0 0.0
    %1302 = vmatpush1.msra.mxu0 0.0
    %1303 = vmatprep.subr.mxu0 0.0
    %1304 = vmatpush1.msra.mxu0 0.0
    %1305 = vmatprep.subr.mxu0 0.0
    %1306 = vmatpush1.msra.mxu0 0.0
    %1307 = vmatprep.subr.mxu0 0.0
    %1308 = vmatpush1.msra.mxu0 0.0
    %1309 = vmatprep.subr.mxu0 0.0
    %1310 = vmatpush1.msra.mxu0 0.0
    %1311 = vmatprep.subr.mxu0 0.0
    %1312 = vmatpush1.msra.mxu0 0.0
    %1313 = vmatprep.mubr.f32.mxu0 0.0
    %v1314 = vand.u32 %v798, 4294901760
    %v1315 = vsub.f32 %v798, %v1314
    %v1316 = vand.u32 %v1315, 4294901760
    %1317 = vmatmul.mubr.f32.gmra.mrb[0].mxu0 %v1316
    %v1318 = vpop.f32.mrb[0].mxu0
    %v1319 = vadd.f32 %v1209, %v1318
    %v1320 = vpop.f32.mrb[0].mxu0
    %1321 = vmatprep.mubr.f32.mxu0 0.0
    %v1322 = vand.u32 %v799, 4294901760
    %v1323 = vsub.f32 %v799, %v1322
    %v1324 = vand.u32 %v1323, 4294901760
    %1325 = vmatmul.mubr.f32.gmra.mrb[0].mxu0 %v1324
    %v1326 = vpop.f32.mrb[0].mxu0
    %v1327 = vadd.f32 %v1216, %v1326
    %v1328 = vpop.f32.mrb[0].mxu0
    %1329 = vmatprep.mubr.f32.mxu0 0.0
    %v1330 = vand.u32 %v800, 4294901760
    %v1331 = vsub.f32 %v800, %v1330
    %v1332 = vand.u32 %v1331, 4294901760
    %1333 = vmatmul.mubr.f32.gmra.mrb[0].mxu0 %v1332
    %v1334 = vpop.f32.mrb[0].mxu0
    %v1335 = vadd.f32 %v1223, %v1334
    %v1336 = vpop.f32.mrb[0].mxu0
    %1337 = vmatprep.mubr.f32.mxu0 0.0
    %v1338 = vand.u32 %v801, 4294901760
    %v1339 = vsub.f32 %v801, %v1338
    %v1340 = vand.u32 %v1339, 4294901760
    %1341 = vmatmul.mubr.f32.gmra.mrb[0].mxu0 %v1340
    %v1342 = vpop.f32.mrb[0].mxu0
    %v1343 = vadd.f32 %v1230, %v1342
    %v1344 = vpop.f32.mrb[0].mxu0
    %1345 = vdwg.mxu0
    %1346 = vmatprep.subr.mxu0 0.0
    %v1347 = vand.u32 %v802, 4294901760
    %v1348 = vsub.f32 %v802, %v1347
    %v1349 = vand.u32 %v1348, 4294901760
    %1350 = vmatpush1.msra.mxu0 %v1349
    %1351 = vmatprep.subr.mxu0 0.0
    %v1352 = vand.u32 %v803, 4294901760
    %v1353 = vsub.f32 %v803, %v1352
    %v1354 = vand.u32 %v1353, 4294901760
    %1355 = vmatpush1.msra.mxu0 %v1354
    %1356 = vmatprep.subr.mxu0 0.0
    %v1357 = vand.u32 %v804, 4294901760
    %v1358 = vsub.f32 %v804, %v1357
    %v1359 = vand.u32 %v1358, 4294901760
    %1360 = vmatpush1.msra.mxu0 %v1359
    %1361 = vmatprep.subr.mxu0 0.0
    %v1362 = vand.u32 %v805, 4294901760
    %v1363 = vsub.f32 %v805, %v1362
    %v1364 = vand.u32 %v1363, 4294901760
    %1365 = vmatpush1.msra.mxu0 %v1364
    %1366 = vmatprep.subr.mxu0 0.0
    %v1367 = vand.u32 %v806, 4294901760
    %v1368 = vsub.f32 %v806, %v1367
    %v1369 = vand.u32 %v1368, 4294901760
    %1370 = vmatpush1.msra.mxu0 %v1369
    %1371 = vmatprep.subr.mxu0 0.0
    %v1372 = vand.u32 %v807, 4294901760
    %v1373 = vsub.f32 %v807, %v1372
    %v1374 = vand.u32 %v1373, 4294901760
    %1375 = vmatpush1.msra.mxu0 %v1374
    %1376 = vmatprep.subr.mxu0 0.0
    %v1377 = vand.u32 %v808, 4294901760
    %v1378 = vsub.f32 %v808, %v1377
    %v1379 = vand.u32 %v1378, 4294901760
    %1380 = vmatpush1.msra.mxu0 %v1379
    %1381 = vmatprep.subr.mxu0 0.0
    %v1382 = vand.u32 %v809, 4294901760
    %v1383 = vsub.f32 %v809, %v1382
    %v1384 = vand.u32 %v1383, 4294901760
    %1385 = vmatpush1.msra.mxu0 %v1384
    %1386 = vmatprep.subr.mxu0 0.0
    %v1387 = vand.u32 %v810, 4294901760
    %v1388 = vsub.f32 %v810, %v1387
    %v1389 = vand.u32 %v1388, 4294901760
    %1390 = vmatpush1.msra.mxu0 %v1389
    %1391 = vmatprep.subr.mxu0 0.0
    %v1392 = vand.u32 %v811, 4294901760
    %v1393 = vsub.f32 %v811, %v1392
    %v1394 = vand.u32 %v1393, 4294901760
    %1395 = vmatpush1.msra.mxu0 %v1394
    %1396 = vmatprep.subr.mxu0 0.0
    %v1397 = vand.u32 %v812, 4294901760
    %v1398 = vsub.f32 %v812, %v1397
    %v1399 = vand.u32 %v1398, 4294901760
    %1400 = vmatpush1.msra.mxu0 %v1399
    %1401 = vmatprep.subr.mxu0 0.0
    %v1402 = vand.u32 %v813, 4294901760
    %v1403 = vsub.f32 %v813, %v1402
    %v1404 = vand.u32 %v1403, 4294901760
    %1405 = vmatpush1.msra.mxu0 %v1404
    %1406 = vmatprep.subr.mxu0 0.0
    %v1407 = vand.u32 %v814, 4294901760
    %v1408 = vsub.f32 %v814, %v1407
    %v1409 = vand.u32 %v1408, 4294901760
    %1410 = vmatpush1.msra.mxu0 %v1409
    %1411 = vmatprep.subr.mxu0 0.0
    %v1412 = vand.u32 %v815, 4294901760
    %v1413 = vsub.f32 %v815, %v1412
    %v1414 = vand.u32 %v1413, 4294901760
    %1415 = vmatpush1.msra.mxu0 %v1414
    %1416 = vmatprep.subr.mxu0 0.0
    %v1417 = vand.u32 %v816, 4294901760
    %v1418 = vsub.f32 %v816, %v1417
    %v1419 = vand.u32 %v1418, 4294901760
    %1420 = vmatpush1.msra.mxu0 %v1419
    %1421 = vmatprep.subr.mxu0 0.0
    %v1422 = vand.u32 %v817, 4294901760
    %v1423 = vsub.f32 %v817, %v1422
    %v1424 = vand.u32 %v1423, 4294901760
    %1425 = vmatpush1.msra.mxu0 %v1424
    %1426 = vmatprep.subr.mxu0 0.0
    %1427 = vmatpush1.msra.mxu0 0.0
    %1428 = vmatprep.subr.mxu0 0.0
    %1429 = vmatpush1.msra.mxu0 0.0
    %1430 = vmatprep.subr.mxu0 0.0
    %1431 = vmatpush1.msra.mxu0 0.0
    %1432 = vmatprep.subr.mxu0 0.0
    %1433 = vmatpush1.msra.mxu0 0.0
    %1434 = vmatprep.subr.mxu0 0.0
    %1435 = vmatpush1.msra.mxu0 0.0
    %1436 = vmatprep.subr.mxu0 0.0
    %1437 = vmatpush1.msra.mxu0 0.0
    %1438 = vmatprep.subr.mxu0 0.0
    %1439 = vmatpush1.msra.mxu0 0.0
    %1440 = vmatprep.subr.mxu0 0.0
    %1441 = vmatpush1.msra.mxu0 0.0
    %1442 = vmatprep.subr.mxu0 0.0
    %1443 = vmatpush1.msra.mxu0 0.0
    %1444 = vmatprep.subr.mxu0 0.0
    %1445 = vmatpush1.msra.mxu0 0.0
    %1446 = vmatprep.subr.mxu0 0.0
    %1447 = vmatpush1.msra.mxu0 0.0
    %1448 = vmatprep.subr.mxu0 0.0
    %1449 = vmatpush1.msra.mxu0 0.0
    %1450 = vmatprep.subr.mxu0 0.0
    %1451 = vmatpush1.msra.mxu0 0.0
    %1452 = vmatprep.subr.mxu0 0.0
    %1453 = vmatpush1.msra.mxu0 0.0
    %1454 = vmatprep.subr.mxu0 0.0
    %1455 = vmatpush1.msra.mxu0 0.0
    %1456 = vmatprep.subr.mxu0 0.0
    %1457 = vmatpush1.msra.mxu0 0.0
    %1458 = vmatprep.mubr.f32.mxu0 0.0
    %v1459 = vand.u32 %v798, 4294901760
    %1460 = vmatmul.mubr.f32.gmra.mrb[0].mxu0 %v1459
    %v1461 = vpop.f32.mrb[0].mxu0
    %v1462 = vadd.f32 %v1319, %v1461
    %v1463 = vpop.f32.mrb[0].mxu0
    %1464 = vmatprep.mubr.f32.mxu0 0.0
    %v1465 = vand.u32 %v799, 4294901760
    %1466 = vmatmul.mubr.f32.gmra.mrb[0].mxu0 %v1465
    %v1467 = vpop.f32.mrb[0].mxu0
    %v1468 = vadd.f32 %v1327, %v1467
    %v1469 = vpop.f32.mrb[0].mxu0
    %1470 = vmatprep.mubr.f32.mxu0 0.0
    %v1471 = vand.u32 %v800, 4294901760
    %1472 = vmatmul.mubr.f32.gmra.mrb[0].mxu0 %v1471
    %v1473 = vpop.f32.mrb[0].mxu0
    %v1474 = vadd.f32 %v1335, %v1473
    %v1475 = vpop.f32.mrb[0].mxu0
    %1476 = vmatprep.mubr.f32.mxu0 0.0
    %v1477 = vand.u32 %v801, 4294901760
    %1478 = vmatmul.mubr.f32.gmra.mrb[0].mxu0 %v1477
    %v1479 = vpop.f32.mrb[0].mxu0
    %v1480 = vadd.f32 %v1343, %v1479
    %v1481 = vpop.f32.mrb[0].mxu0
    %1482 = vdwg.mxu0
    %1483 = vmatprep.subr.mxu0 0.0
    %v1484 = vand.u32 %v802, 4294901760
    %1485 = vmatpush1.msra.mxu0 %v1484
    %1486 = vmatprep.subr.mxu0 0.0
    %v1487 = vand.u32 %v803, 4294901760
    %1488 = vmatpush1.msra.mxu0 %v1487
    %1489 = vmatprep.subr.mxu0 0.0
    %v1490 = vand.u32 %v804, 4294901760
    %1491 = vmatpush1.msra.mxu0 %v1490
    %1492 = vmatprep.subr.mxu0 0.0
    %v1493 = vand.u32 %v805, 4294901760
    %1494 = vmatpush1.msra.mxu0 %v1493
    %1495 = vmatprep.subr.mxu0 0.0
    %v1496 = vand.u32 %v806, 4294901760
    %1497 = vmatpush1.msra.mxu0 %v1496
    %1498 = vmatprep.subr.mxu0 0.0
    %v1499 = vand.u32 %v807, 4294901760
    %1500 = vmatpush1.msra.mxu0 %v1499
    %1501 = vmatprep.subr.mxu0 0.0
    %v1502 = vand.u32 %v808, 4294901760
    %1503 = vmatpush1.msra.mxu0 %v1502
    %1504 = vmatprep.subr.mxu0 0.0
    %v1505 = vand.u32 %v809, 4294901760
    %1506 = vmatpush1.msra.mxu0 %v1505
    %1507 = vmatprep.subr.mxu0 0.0
    %v1508 = vand.u32 %v810, 4294901760
    %1509 = vmatpush1.msra.mxu0 %v1508
    %1510 = vmatprep.subr.mxu0 0.0
    %v1511 = vand.u32 %v811, 4294901760
    %1512 = vmatpush1.msra.mxu0 %v1511
    %1513 = vmatprep.subr.mxu0 0.0
    %v1514 = vand.u32 %v812, 4294901760
    %1515 = vmatpush1.msra.mxu0 %v1514
    %1516 = vmatprep.subr.mxu0 0.0
    %v1517 = vand.u32 %v813, 4294901760
    %1518 = vmatpush1.msra.mxu0 %v1517
    %1519 = vmatprep.subr.mxu0 0.0
    %v1520 = vand.u32 %v814, 4294901760
    %1521 = vmatpush1.msra.mxu0 %v1520
    %1522 = vmatprep.subr.mxu0 0.0
    %v1523 = vand.u32 %v815, 4294901760
    %1524 = vmatpush1.msra.mxu0 %v1523
    %1525 = vmatprep.subr.mxu0 0.0
    %v1526 = vand.u32 %v816, 4294901760
    %1527 = vmatpush1.msra.mxu0 %v1526
    %1528 = vmatprep.subr.mxu0 0.0
    %v1529 = vand.u32 %v817, 4294901760
    %1530 = vmatpush1.msra.mxu0 %v1529
    %1531 = vmatprep.subr.mxu0 0.0
    %1532 = vmatpush1.msra.mxu0 0.0
    %1533 = vmatprep.subr.mxu0 0.0
    %1534 = vmatpush1.msra.mxu0 0.0
    %1535 = vmatprep.subr.mxu0 0.0
    %1536 = vmatpush1.msra.mxu0 0.0
    %1537 = vmatprep.subr.mxu0 0.0
    %1538 = vmatpush1.msra.mxu0 0.0
    %1539 = vmatprep.subr.mxu0 0.0
    %1540 = vmatpush1.msra.mxu0 0.0
    %1541 = vmatprep.subr.mxu0 0.0
    %1542 = vmatpush1.msra.mxu0 0.0
    %1543 = vmatprep.subr.mxu0 0.0
    %1544 = vmatpush1.msra.mxu0 0.0
    %1545 = vmatprep.subr.mxu0 0.0
    %1546 = vmatpush1.msra.mxu0 0.0
    %1547 = vmatprep.subr.mxu0 0.0
    %1548 = vmatpush1.msra.mxu0 0.0
    %1549 = vmatprep.subr.mxu0 0.0
    %1550 = vmatpush1.msra.mxu0 0.0
    %1551 = vmatprep.subr.mxu0 0.0
    %1552 = vmatpush1.msra.mxu0 0.0
    %1553 = vmatprep.subr.mxu0 0.0
    %1554 = vmatpush1.msra.mxu0 0.0
    %1555 = vmatprep.subr.mxu0 0.0
    %1556 = vmatpush1.msra.mxu0 0.0
    %1557 = vmatprep.subr.mxu0 0.0
    %1558 = vmatpush1.msra.mxu0 0.0
    %1559 = vmatprep.subr.mxu0 0.0
    %1560 = vmatpush1.msra.mxu0 0.0
    %1561 = vmatprep.subr.mxu0 0.0
    %1562 = vmatpush1.msra.mxu0 0.0
    %1563 = vmatprep.mubr.f32.mxu0 0.0
    %v1564 = vand.u32 %v798, 4294901760
    %1565 = vmatmul.mubr.f32.gmra.mrb[0].mxu0 %v1564
    %v1566 = vpop.f32.mrb[0].mxu0
    %v1567 = vadd.f32 %v1462, %v1566
    %v1568 = vpop.f32.mrb[0].mxu0
    %1569 = vmatprep.mubr.f32.mxu0 0.0
    %v1570 = vand.u32 %v799, 4294901760
    %1571 = vmatmul.mubr.f32.gmra.mrb[0].mxu0 %v1570
    %v1572 = vpop.f32.mrb[0].mxu0
    %v1573 = vadd.f32 %v1468, %v1572
    %v1574 = vpop.f32.mrb[0].mxu0
    %1575 = vmatprep.mubr.f32.mxu0 0.0
    %v1576 = vand.u32 %v800, 4294901760
    %1577 = vmatmul.mubr.f32.gmra.mrb[0].mxu0 %v1576
    %v1578 = vpop.f32.mrb[0].mxu0
    %v1579 = vadd.f32 %v1474, %v1578
    %v1580 = vpop.f32.mrb[0].mxu0
    %1581 = vmatprep.mubr.f32.mxu0 0.0
    %v1582 = vand.u32 %v801, 4294901760
    %1583 = vmatmul.mubr.f32.gmra.mrb[0].mxu0 %v1582
    %v1584 = vpop.f32.mrb[0].mxu0
    %v1585 = vadd.f32 %v1480, %v1584
    %v1586 = vpop.f32.mrb[0].mxu0
    %1587 = vdwg.mxu0
    %v1588 = vld [vmem:[%s7] sm:$0x1]
    %v1589 = vld [vmem:[%s7 + $0x1] sm:$0x1]
    %v1590 = vld [vmem:[%s7 + $0x2] sm:$0x1]
    %v1591 = vld [vmem:[%s7 + $0x3] sm:$0x1]
    %v1596 = vlaneseq
    %v1597 = vshrl.u32 %v1596, 7
    %v1598 = vsub.s32 0, %v1597
    %v1599 = vrot.slane %v1588, %v1598
    %v1600 = vlaneseq
    %v1601 = vshrl.u32 %v1600, 7
    %v1602 = vsub.s32 0, %v1601
    %v1603 = vrot.slane %v1589, %v1602
    %v1604 = vlaneseq
    %v1605 = vshrl.u32 %v1604, 7
    %v1606 = vsub.s32 0, %v1605
    %v1607 = vrot.slane %v1590, %v1606
    %v1608 = vlaneseq
    %v1609 = vshrl.u32 %v1608, 7
    %v1610 = vsub.s32 0, %v1609
    %v1611 = vrot.slane %v1591, %v1610
    %v1616 = vmul.f32 %v1567, %v1599
    %v1617 = vmul.f32 %v1573, %v1603
    %v1618 = vmul.f32 %v1579, %v1607
    %v1619 = vmul.f32 %v1585, %v1611
    %v1620 = vld [vmem:[%s8] sm:$0x1]
    %v1621 = vld [vmem:[%s8 + $0x1] sm:$0x1]
    %v1622 = vld [vmem:[%s8 + $0x2] sm:$0x1]
    %v1623 = vld [vmem:[%s8 + $0x3] sm:$0x1]
    %v1628 = vlaneseq
    %v1629 = vshrl.u32 %v1628, 7
    %v1630 = vsub.s32 0, %v1629
    %v1631 = vrot.slane %v1620, %v1630
    %v1632 = vlaneseq
    %v1633 = vshrl.u32 %v1632, 7
    %v1634 = vsub.s32 0, %v1633
    %v1635 = vrot.slane %v1621, %v1634
    %v1636 = vlaneseq
    %v1637 = vshrl.u32 %v1636, 7
    %v1638 = vsub.s32 0, %v1637
    %v1639 = vrot.slane %v1622, %v1638
    %v1640 = vlaneseq
    %v1641 = vshrl.u32 %v1640, 7
    %v1642 = vsub.s32 0, %v1641
    %v1643 = vrot.slane %v1623, %v1642
    %v1648 = vadd.f32 %v1616, %v1631
    %v1649 = vadd.f32 %v1617, %v1635
    %v1650 = vadd.f32 %v1618, %v1639
    %v1651 = vadd.f32 %v1619, %v1643
    %v1652 = vmax.f32 %v1648, 0.0
    %v1653 = vmax.f32 %v1649, 0.0
    %v1654 = vmax.f32 %v1650, 0.0
    %v1655 = vmax.f32 %v1651, 0.0
    %v1656 = vld [vmem:[%s10] sm:$0x1]
    %v1657 = vld [vmem:[%s10 + $0x1] sm:$0x1]
    %v1658 = vld [vmem:[%s10 + $0x2] sm:$0x1]
    %v1659 = vld [vmem:[%s10 + $0x3] sm:$0x1]
    %v1664 = vlaneseq
    %v1665 = vshrl.u32 %v1664, 7
    %v1666 = vsub.s32 0, %v1665
    %v1667 = vrot.slane %v1656, %v1666
    %v1668 = vlaneseq
    %v1669 = vshrl.u32 %v1668, 7
    %v1670 = vsub.s32 0, %v1669
    %v1671 = vrot.slane %v1657, %v1670
    %v1672 = vlaneseq
    %v1673 = vshrl.u32 %v1672, 7
    %v1674 = vsub.s32 0, %v1673
    %v1675 = vrot.slane %v1658, %v1674
    %v1676 = vlaneseq
    %v1677 = vshrl.u32 %v1676, 7
    %v1678 = vsub.s32 0, %v1677
    %v1679 = vrot.slane %v1659, %v1678
    %v1684 = vmul.f32 %v1652, %v1667
    %v1685 = vmul.f32 %v1653, %v1671
    %v1686 = vmul.f32 %v1654, %v1675
    %v1687 = vmul.f32 %v1655, %v1679
    %v1688 = vld [vmem:[#allocation5] sm:$0xff]
    %v1689 = vld [vmem:[#allocation5 + $0x8] sm:$0xff]
    %v1690 = vld [vmem:[#allocation5 + $0x10] sm:$0xff]
    %v1691 = vld [vmem:[#allocation5 + $0x18] sm:$0xff]
    %v1692 = vld [vmem:[#allocation5 + $0x20] sm:$0xff]
    %v1693 = vld [vmem:[#allocation5 + $0x28] sm:$0xff]
    %v1694 = vld [vmem:[#allocation5 + $0x30] sm:$0xff]
    %v1695 = vld [vmem:[#allocation5 + $0x38] sm:$0xff]
    %v1696 = vld [vmem:[#allocation5 + $0x40] sm:$0xff]
    %v1697 = vld [vmem:[#allocation5 + $0x48] sm:$0xff]
    %v1698 = vld [vmem:[#allocation5 + $0x50] sm:$0xff]
    %v1699 = vld [vmem:[#allocation5 + $0x58] sm:$0xff]
    %v1700 = vld [vmem:[#allocation5 + $0x60] sm:$0xff]
    %v1701 = vld [vmem:[#allocation5 + $0x68] sm:$0xff]
    %v1702 = vld [vmem:[#allocation5 + $0x70] sm:$0xff]
    %v1703 = vld [vmem:[#allocation5 + $0x78] sm:$0xff]
    %1704 = vmatprep.subr.mxu0 0.0
    %v1705 = vand.u32 %v1688, 4294901760
    %1706 = vmatpush1.msra.mxu0 %v1705
    %1707 = vmatprep.subr.mxu0 0.0
    %v1708 = vand.u32 %v1689, 4294901760
    %1709 = vmatpush1.msra.mxu0 %v1708
    %1710 = vmatprep.subr.mxu0 0.0
    %v1711 = vand.u32 %v1690, 4294901760
    %1712 = vmatpush1.msra.mxu0 %v1711
    %1713 = vmatprep.subr.mxu0 0.0
    %v1714 = vand.u32 %v1691, 4294901760
    %1715 = vmatpush1.msra.mxu0 %v1714
    %1716 = vmatprep.subr.mxu0 0.0
    %v1717 = vand.u32 %v1692, 4294901760
    %1718 = vmatpush1.msra.mxu0 %v1717
    %1719 = vmatprep.subr.mxu0 0.0
    %v1720 = vand.u32 %v1693, 4294901760
    %1721 = vmatpush1.msra.mxu0 %v1720
    %1722 = vmatprep.subr.mxu0 0.0
    %v1723 = vand.u32 %v1694, 4294901760
    %1724 = vmatpush1.msra.mxu0 %v1723
    %1725 = vmatprep.subr.mxu0 0.0
    %v1726 = vand.u32 %v1695, 4294901760
    %1727 = vmatpush1.msra.mxu0 %v1726
    %1728 = vmatprep.subr.mxu0 0.0
    %v1729 = vand.u32 %v1696, 4294901760
    %1730 = vmatpush1.msra.mxu0 %v1729
    %1731 = vmatprep.subr.mxu0 0.0
    %v1732 = vand.u32 %v1697, 4294901760
    %1733 = vmatpush1.msra.mxu0 %v1732
    %1734 = vmatprep.subr.mxu0 0.0
    %v1735 = vand.u32 %v1698, 4294901760
    %1736 = vmatpush1.msra.mxu0 %v1735
    %1737 = vmatprep.subr.mxu0 0.0
    %v1738 = vand.u32 %v1699, 4294901760
    %1739 = vmatpush1.msra.mxu0 %v1738
    %1740 = vmatprep.subr.mxu0 0.0
    %v1741 = vand.u32 %v1700, 4294901760
    %1742 = vmatpush1.msra.mxu0 %v1741
    %1743 = vmatprep.subr.mxu0 0.0
    %v1744 = vand.u32 %v1701, 4294901760
    %1745 = vmatpush1.msra.mxu0 %v1744
    %1746 = vmatprep.subr.mxu0 0.0
    %v1747 = vand.u32 %v1702, 4294901760
    %1748 = vmatpush1.msra.mxu0 %v1747
    %1749 = vmatprep.subr.mxu0 0.0
    %v1750 = vand.u32 %v1703, 4294901760
    %1751 = vmatpush1.msra.mxu0 %v1750
    %1752 = vmatprep.subr.mxu0 0.0
    %1753 = vmatpush1.msra.mxu0 0.0
    %1754 = vmatprep.subr.mxu0 0.0
    %1755 = vmatpush1.msra.mxu0 0.0
    %1756 = vmatprep.subr.mxu0 0.0
    %1757 = vmatpush1.msra.mxu0 0.0
    %1758 = vmatprep.subr.mxu0 0.0
    %1759 = vmatpush1.msra.mxu0 0.0
    %1760 = vmatprep.subr.mxu0 0.0
    %1761 = vmatpush1.msra.mxu0 0.0
    %1762 = vmatprep.subr.mxu0 0.0
    %1763 = vmatpush1.msra.mxu0 0.0
    %1764 = vmatprep.subr.mxu0 0.0
    %1765 = vmatpush1.msra.mxu0 0.0
    %1766 = vmatprep.subr.mxu0 0.0
    %1767 = vmatpush1.msra.mxu0 0.0
    %1768 = vmatprep.subr.mxu0 0.0
    %1769 = vmatpush1.msra.mxu0 0.0
    %1770 = vmatprep.subr.mxu0 0.0
    %1771 = vmatpush1.msra.mxu0 0.0
    %1772 = vmatprep.subr.mxu0 0.0
    %1773 = vmatpush1.msra.mxu0 0.0
    %1774 = vmatprep.subr.mxu0 0.0
    %1775 = vmatpush1.msra.mxu0 0.0
    %1776 = vmatprep.subr.mxu0 0.0
    %1777 = vmatpush1.msra.mxu0 0.0
    %1778 = vmatprep.subr.mxu0 0.0
    %1779 = vmatpush1.msra.mxu0 0.0
    %1780 = vmatprep.subr.mxu0 0.0
    %1781 = vmatpush1.msra.mxu0 0.0
    %1782 = vmatprep.subr.mxu0 0.0
    %1783 = vmatpush1.msra.mxu0 0.0
    %1784 = vmatprep.mubr.f32.mxu0 0.0
    %v1785 = vand.u32 %v1684, 4294901760
    %v1786 = vsub.f32 %v1684, %v1785
    %v1787 = vand.u32 %v1786, 4294901760
    %v1788 = vsub.f32 %v1786, %v1787
    %v1789 = vand.u32 %v1788, 4294901760
    %1790 = vmatmul.mubr.f32.gmra.mrb[0].mxu0 %v1789
    %v1791 = vpop.f32.mrb[0].mxu0
    %v1792 = vadd.f32 0.0, %v1791
    %v1793 = vpop.f32.mrb[0].mxu0
    %1794 = vmatprep.mubr.f32.mxu0 0.0
    %v1795 = vand.u32 %v1685, 4294901760
    %v1796 = vsub.f32 %v1685, %v1795
    %v1797 = vand.u32 %v1796, 4294901760
    %v1798 = vsub.f32 %v1796, %v1797
    %v1799 = vand.u32 %v1798, 4294901760
    %1800 = vmatmul.mubr.f32.gmra.mrb[0].mxu0 %v1799
    %v1801 = vpop.f32.mrb[0].mxu0
    %v1802 = vadd.f32 0.0, %v1801
    %v1803 = vpop.f32.mrb[0].mxu0
    %1804 = vmatprep.mubr.f32.mxu0 0.0
    %v1805 = vand.u32 %v1686, 4294901760
    %v1806 = vsub.f32 %v1686, %v1805
    %v1807 = vand.u32 %v1806, 4294901760
    %v1808 = vsub.f32 %v1806, %v1807
    %v1809 = vand.u32 %v1808, 4294901760
    %1810 = vmatmul.mubr.f32.gmra.mrb[0].mxu0 %v1809
    %v1811 = vpop.f32.mrb[0].mxu0
    %v1812 = vadd.f32 0.0, %v1811
    %v1813 = vpop.f32.mrb[0].mxu0
    %1814 = vmatprep.mubr.f32.mxu0 0.0
    %v1815 = vand.u32 %v1687, 4294901760
    %v1816 = vsub.f32 %v1687, %v1815
    %v1817 = vand.u32 %v1816, 4294901760
    %v1818 = vsub.f32 %v1816, %v1817
    %v1819 = vand.u32 %v1818, 4294901760
    %1820 = vmatmul.mubr.f32.gmra.mrb[0].mxu0 %v1819
    %v1821 = vpop.f32.mrb[0].mxu0
    %v1822 = vadd.f32 0.0, %v1821
    %v1823 = vpop.f32.mrb[0].mxu0
    %1824 = vdwg.mxu0
    %1825 = vmatprep.subr.mxu0 0.0
    %v1826 = vand.u32 %v1688, 4294901760
    %v1827 = vsub.f32 %v1688, %v1826
    %v1828 = vand.u32 %v1827, 4294901760
    %v1829 = vsub.f32 %v1827, %v1828
    %v1830 = vand.u32 %v1829, 4294901760
    %1831 = vmatpush1.msra.mxu0 %v1830
    %1832 = vmatprep.subr.mxu0 0.0
    %v1833 = vand.u32 %v1689, 4294901760
    %v1834 = vsub.f32 %v1689, %v1833
    %v1835 = vand.u32 %v1834, 4294901760
    %v1836 = vsub.f32 %v1834, %v1835
    %v1837 = vand.u32 %v1836, 4294901760
    %1838 = vmatpush1.msra.mxu0 %v1837
    %1839 = vmatprep.subr.mxu0 0.0
    %v1840 = vand.u32 %v1690, 4294901760
    %v1841 = vsub.f32 %v1690, %v1840
    %v1842 = vand.u32 %v1841, 4294901760
    %v1843 = vsub.f32 %v1841, %v1842
    %v1844 = vand.u32 %v1843, 4294901760
    %1845 = vmatpush1.msra.mxu0 %v1844
    %1846 = vmatprep.subr.mxu0 0.0
    %v1847 = vand.u32 %v1691, 4294901760
    %v1848 = vsub.f32 %v1691, %v1847
    %v1849 = vand.u32 %v1848, 4294901760
    %v1850 = vsub.f32 %v1848, %v1849
    %v1851 = vand.u32 %v1850, 4294901760
    %1852 = vmatpush1.msra.mxu0 %v1851
    %1853 = vmatprep.subr.mxu0 0.0
    %v1854 = vand.u32 %v1692, 4294901760
    %v1855 = vsub.f32 %v1692, %v1854
    %v1856 = vand.u32 %v1855, 4294901760
    %v1857 = vsub.f32 %v1855, %v1856
    %v1858 = vand.u32 %v1857, 4294901760
    %1859 = vmatpush1.msra.mxu0 %v1858
    %1860 = vmatprep.subr.mxu0 0.0
    %v1861 = vand.u32 %v1693, 4294901760
    %v1862 = vsub.f32 %v1693, %v1861
    %v1863 = vand.u32 %v1862, 4294901760
    %v1864 = vsub.f32 %v1862, %v1863
    %v1865 = vand.u32 %v1864, 4294901760
    %1866 = vmatpush1.msra.mxu0 %v1865
    %1867 = vmatprep.subr.mxu0 0.0
    %v1868 = vand.u32 %v1694, 4294901760
    %v1869 = vsub.f32 %v1694, %v1868
    %v1870 = vand.u32 %v1869, 4294901760
    %v1871 = vsub.f32 %v1869, %v1870
    %v1872 = vand.u32 %v1871, 4294901760
    %1873 = vmatpush1.msra.mxu0 %v1872
    %1874 = vmatprep.subr.mxu0 0.0
    %v1875 = vand.u32 %v1695, 4294901760
    %v1876 = vsub.f32 %v1695, %v1875
    %v1877 = vand.u32 %v1876, 4294901760
    %v1878 = vsub.f32 %v1876, %v1877
    %v1879 = vand.u32 %v1878, 4294901760
    %1880 = vmatpush1.msra.mxu0 %v1879
    %1881 = vmatprep.subr.mxu0 0.0
    %v1882 = vand.u32 %v1696, 4294901760
    %v1883 = vsub.f32 %v1696, %v1882
    %v1884 = vand.u32 %v1883, 4294901760
    %v1885 = vsub.f32 %v1883, %v1884
    %v1886 = vand.u32 %v1885, 4294901760
    %1887 = vmatpush1.msra.mxu0 %v1886
    %1888 = vmatprep.subr.mxu0 0.0
    %v1889 = vand.u32 %v1697, 4294901760
    %v1890 = vsub.f32 %v1697, %v1889
    %v1891 = vand.u32 %v1890, 4294901760
    %v1892 = vsub.f32 %v1890, %v1891
    %v1893 = vand.u32 %v1892, 4294901760
    %1894 = vmatpush1.msra.mxu0 %v1893
    %1895 = vmatprep.subr.mxu0 0.0
    %v1896 = vand.u32 %v1698, 4294901760
    %v1897 = vsub.f32 %v1698, %v1896
    %v1898 = vand.u32 %v1897, 4294901760
    %v1899 = vsub.f32 %v1897, %v1898
    %v1900 = vand.u32 %v1899, 4294901760
    %1901 = vmatpush1.msra.mxu0 %v1900
    %1902 = vmatprep.subr.mxu0 0.0
    %v1903 = vand.u32 %v1699, 4294901760
    %v1904 = vsub.f32 %v1699, %v1903
    %v1905 = vand.u32 %v1904, 4294901760
    %v1906 = vsub.f32 %v1904, %v1905
    %v1907 = vand.u32 %v1906, 4294901760
    %1908 = vmatpush1.msra.mxu0 %v1907
    %1909 = vmatprep.subr.mxu0 0.0
    %v1910 = vand.u32 %v1700, 4294901760
    %v1911 = vsub.f32 %v1700, %v1910
    %v1912 = vand.u32 %v1911, 4294901760
    %v1913 = vsub.f32 %v1911, %v1912
    %v1914 = vand.u32 %v1913, 4294901760
    %1915 = vmatpush1.msra.mxu0 %v1914
    %1916 = vmatprep.subr.mxu0 0.0
    %v1917 = vand.u32 %v1701, 4294901760
    %v1918 = vsub.f32 %v1701, %v1917
    %v1919 = vand.u32 %v1918, 4294901760
    %v1920 = vsub.f32 %v1918, %v1919
    %v1921 = vand.u32 %v1920, 4294901760
    %1922 = vmatpush1.msra.mxu0 %v1921
    %1923 = vmatprep.subr.mxu0 0.0
    %v1924 = vand.u32 %v1702, 4294901760
    %v1925 = vsub.f32 %v1702, %v1924
    %v1926 = vand.u32 %v1925, 4294901760
    %v1927 = vsub.f32 %v1925, %v1926
    %v1928 = vand.u32 %v1927, 4294901760
    %1929 = vmatpush1.msra.mxu0 %v1928
    %1930 = vmatprep.subr.mxu0 0.0
    %v1931 = vand.u32 %v1703, 4294901760
    %v1932 = vsub.f32 %v1703, %v1931
    %v1933 = vand.u32 %v1932, 4294901760
    %v1934 = vsub.f32 %v1932, %v1933
    %v1935 = vand.u32 %v1934, 4294901760
    %1936 = vmatpush1.msra.mxu0 %v1935
    %1937 = vmatprep.subr.mxu0 0.0
    %1938 = vmatpush1.msra.mxu0 0.0
    %1939 = vmatprep.subr.mxu0 0.0
    %1940 = vmatpush1.msra.mxu0 0.0
    %1941 = vmatprep.subr.mxu0 0.0
    %1942 = vmatpush1.msra.mxu0 0.0
    %1943 = vmatprep.subr.mxu0 0.0
    %1944 = vmatpush1.msra.mxu0 0.0
    %1945 = vmatprep.subr.mxu0 0.0
    %1946 = vmatpush1.msra.mxu0 0.0
    %1947 = vmatprep.subr.mxu0 0.0
    %1948 = vmatpush1.msra.mxu0 0.0
    %1949 = vmatprep.subr.mxu0 0.0
    %1950 = vmatpush1.msra.mxu0 0.0
    %1951 = vmatprep.subr.mxu0 0.0
    %1952 = vmatpush1.msra.mxu0 0.0
    %1953 = vmatprep.subr.mxu0 0.0
    %1954 = vmatpush1.msra.mxu0 0.0
    %1955 = vmatprep.subr.mxu0 0.0
    %1956 = vmatpush1.msra.mxu0 0.0
    %1957 = vmatprep.subr.mxu0 0.0
    %1958 = vmatpush1.msra.mxu0 0.0
    %1959 = vmatprep.subr.mxu0 0.0
    %1960 = vmatpush1.msra.mxu0 0.0
    %1961 = vmatprep.subr.mxu0 0.0
    %1962 = vmatpush1.msra.mxu0 0.0
    %1963 = vmatprep.subr.mxu0 0.0
    %1964 = vmatpush1.msra.mxu0 0.0
    %1965 = vmatprep.subr.mxu0 0.0
    %1966 = vmatpush1.msra.mxu0 0.0
    %1967 = vmatprep.subr.mxu0 0.0
    %1968 = vmatpush1.msra.mxu0 0.0
    %1969 = vmatprep.mubr.f32.mxu0 0.0
    %v1970 = vand.u32 %v1684, 4294901760
    %1971 = vmatmul.mubr.f32.gmra.mrb[0].mxu0 %v1970
    %v1972 = vpop.f32.mrb[0].mxu0
    %v1973 = vadd.f32 %v1792, %v1972
    %v1974 = vpop.f32.mrb[0].mxu0
    %1975 = vmatprep.mubr.f32.mxu0 0.0
    %v1976 = vand.u32 %v1685, 4294901760
    %1977 = vmatmul.mubr.f32.gmra.mrb[0].mxu0 %v1976
    %v1978 = vpop.f32.mrb[0].mxu0
    %v1979 = vadd.f32 %v1802, %v1978
    %v1980 = vpop.f32.mrb[0].mxu0
    %1981 = vmatprep.mubr.f32.mxu0 0.0
    %v1982 = vand.u32 %v1686, 4294901760
    %1983 = vmatmul.mubr.f32.gmra.mrb[0].mxu0 %v1982
    %v1984 = vpop.f32.mrb[0].mxu0
    %v1985 = vadd.f32 %v1812, %v1984
    %v1986 = vpop.f32.mrb[0].mxu0
    %1987 = vmatprep.mubr.f32.mxu0 0.0
    %v1988 = vand.u32 %v1687, 4294901760
    %1989 = vmatmul.mubr.f32.gmra.mrb[0].mxu0 %v1988
    %v1990 = vpop.f32.mrb[0].mxu0
    %v1991 = vadd.f32 %v1822, %v1990
    %v1992 = vpop.f32.mrb[0].mxu0
    %1993 = vdwg.mxu0
    %1994 = vmatprep.subr.mxu0 0.0
    %v1995 = vand.u32 %v1688, 4294901760
    %v1996 = vsub.f32 %v1688, %v1995
    %1997 = vmatpush1.msra.mxu0 %v1996
    %1998 = vmatprep.subr.mxu0 0.0
    %v1999 = vand.u32 %v1689, 4294901760
    %v2000 = vsub.f32 %v1689, %v1999
    %2001 = vmatpush1.msra.mxu0 %v2000
    %2002 = vmatprep.subr.mxu0 0.0
    %v2003 = vand.u32 %v1690, 4294901760
    %v2004 = vsub.f32 %v1690, %v2003
    %2005 = vmatpush1.msra.mxu0 %v2004
    %2006 = vmatprep.subr.mxu0 0.0
    %v2007 = vand.u32 %v1691, 4294901760
    %v2008 = vsub.f32 %v1691, %v2007
    %2009 = vmatpush1.msra.mxu0 %v2008
    %2010 = vmatprep.subr.mxu0 0.0
    %v2011 = vand.u32 %v1692, 4294901760
    %v2012 = vsub.f32 %v1692, %v2011
    %2013 = vmatpush1.msra.mxu0 %v2012
    %2014 = vmatprep.subr.mxu0 0.0
    %v2015 = vand.u32 %v1693, 4294901760
    %v2016 = vsub.f32 %v1693, %v2015
    %2017 = vmatpush1.msra.mxu0 %v2016
    %2018 = vmatprep.subr.mxu0 0.0
    %v2019 = vand.u32 %v1694, 4294901760
    %v2020 = vsub.f32 %v1694, %v2019
    %2021 = vmatpush1.msra.mxu0 %v2020
    %2022 = vmatprep.subr.mxu0 0.0
    %v2023 = vand.u32 %v1695, 4294901760
    %v2024 = vsub.f32 %v1695, %v2023
    %2025 = vmatpush1.msra.mxu0 %v2024
    %2026 = vmatprep.subr.mxu0 0.0
    %v2027 = vand.u32 %v1696, 4294901760
    %v2028 = vsub.f32 %v1696, %v2027
    %2029 = vmatpush1.msra.mxu0 %v2028
    %2030 = vmatprep.subr.mxu0 0.0
    %v2031 = vand.u32 %v1697, 4294901760
    %v2032 = vsub.f32 %v1697, %v2031
    %2033 = vmatpush1.msra.mxu0 %v2032
    %2034 = vmatprep.subr.mxu0 0.0
    %v2035 = vand.u32 %v1698, 4294901760
    %v2036 = vsub.f32 %v1698, %v2035
    %2037 = vmatpush1.msra.mxu0 %v2036
    %2038 = vmatprep.subr.mxu0 0.0
    %v2039 = vand.u32 %v1699, 4294901760
    %v2040 = vsub.f32 %v1699, %v2039
    %2041 = vmatpush1.msra.mxu0 %v2040
    %2042 = vmatprep.subr.mxu0 0.0
    %v2043 = vand.u32 %v1700, 4294901760
    %v2044 = vsub.f32 %v1700, %v2043
    %2045 = vmatpush1.msra.mxu0 %v2044
    %2046 = vmatprep.subr.mxu0 0.0
    %v2047 = vand.u32 %v1701, 4294901760
    %v2048 = vsub.f32 %v1701, %v2047
    %2049 = vmatpush1.msra.mxu0 %v2048
    %2050 = vmatprep.subr.mxu0 0.0
    %v2051 = vand.u32 %v1702, 4294901760
    %v2052 = vsub.f32 %v1702, %v2051
    %2053 = vmatpush1.msra.mxu0 %v2052
    %2054 = vmatprep.subr.mxu0 0.0
    %v2055 = vand.u32 %v1703, 4294901760
    %v2056 = vsub.f32 %v1703, %v2055
    %2057 = vmatpush1.msra.mxu0 %v2056
    %2058 = vmatprep.subr.mxu0 0.0
    %2059 = vmatpush1.msra.mxu0 0.0
    %2060 = vmatprep.subr.mxu0 0.0
    %2061 = vmatpush1.msra.mxu0 0.0
    %2062 = vmatprep.subr.mxu0 0.0
    %2063 = vmatpush1.msra.mxu0 0.0
    %2064 = vmatprep.subr.mxu0 0.0
    %2065 = vmatpush1.msra.mxu0 0.0
    %2066 = vmatprep.subr.mxu0 0.0
    %2067 = vmatpush1.msra.mxu0 0.0
    %2068 = vmatprep.subr.mxu0 0.0
    %2069 = vmatpush1.msra.mxu0 0.0
    %2070 = vmatprep.subr.mxu0 0.0
    %2071 = vmatpush1.msra.mxu0 0.0
    %2072 = vmatprep.subr.mxu0 0.0
    %2073 = vmatpush1.msra.mxu0 0.0
    %2074 = vmatprep.subr.mxu0 0.0
    %2075 = vmatpush1.msra.mxu0 0.0
    %2076 = vmatprep.subr.mxu0 0.0
    %2077 = vmatpush1.msra.mxu0 0.0
    %2078 = vmatprep.subr.mxu0 0.0
    %2079 = vmatpush1.msra.mxu0 0.0
    %2080 = vmatprep.subr.mxu0 0.0
    %2081 = vmatpush1.msra.mxu0 0.0
    %2082 = vmatprep.subr.mxu0 0.0
    %2083 = vmatpush1.msra.mxu0 0.0
    %2084 = vmatprep.subr.mxu0 0.0
    %2085 = vmatpush1.msra.mxu0 0.0
    %2086 = vmatprep.subr.mxu0 0.0
    %2087 = vmatpush1.msra.mxu0 0.0
    %2088 = vmatprep.subr.mxu0 0.0
    %2089 = vmatpush1.msra.mxu0 0.0
    %2090 = vmatprep.mubr.f32.mxu0 0.0
    %v2091 = vand.u32 %v1684, 4294901760
    %v2092 = vsub.f32 %v1684, %v2091
    %2093 = vmatmul.mubr.f32.gmra.mrb[0].mxu0 %v2092
    %v2094 = vpop.f32.mrb[0].mxu0
    %v2095 = vadd.f32 %v1973, %v2094
    %v2096 = vpop.f32.mrb[0].mxu0
    %2097 = vmatprep.mubr.f32.mxu0 0.0
    %v2098 = vand.u32 %v1685, 4294901760
    %v2099 = vsub.f32 %v1685, %v2098
    %2100 = vmatmul.mubr.f32.gmra.mrb[0].mxu0 %v2099
    %v2101 = vpop.f32.mrb[0].mxu0
    %v2102 = vadd.f32 %v1979, %v2101
    %v2103 = vpop.f32.mrb[0].mxu0
    %2104 = vmatprep.mubr.f32.mxu0 0.0
    %v2105 = vand.u32 %v1686, 4294901760
    %v2106 = vsub.f32 %v1686, %v2105
    %2107 = vmatmul.mubr.f32.gmra.mrb[0].mxu0 %v2106
    %v2108 = vpop.f32.mrb[0].mxu0
    %v2109 = vadd.f32 %v1985, %v2108
    %v2110 = vpop.f32.mrb[0].mxu0
    %2111 = vmatprep.mubr.f32.mxu0 0.0
    %v2112 = vand.u32 %v1687, 4294901760
    %v2113 = vsub.f32 %v1687, %v2112
    %2114 = vmatmul.mubr.f32.gmra.mrb[0].mxu0 %v2113
    %v2115 = vpop.f32.mrb[0].mxu0
    %v2116 = vadd.f32 %v1991, %v2115
    %v2117 = vpop.f32.mrb[0].mxu0
    %2118 = vdwg.mxu0
    %2119 = vmatprep.subr.mxu0 0.0
    %v2120 = vand.u32 %v1688, 4294901760
    %2121 = vmatpush1.msra.mxu0 %v2120
    %2122 = vmatprep.subr.mxu0 0.0
    %v2123 = vand.u32 %v1689, 4294901760
    %2124 = vmatpush1.msra.mxu0 %v2123
    %2125 = vmatprep.subr.mxu0 0.0
    %v2126 = vand.u32 %v1690, 4294901760
    %2127 = vmatpush1.msra.mxu0 %v2126
    %2128 = vmatprep.subr.mxu0 0.0
    %v2129 = vand.u32 %v1691, 4294901760
    %2130 = vmatpush1.msra.mxu0 %v2129
    %2131 = vmatprep.subr.mxu0 0.0
    %v2132 = vand.u32 %v1692, 4294901760
    %2133 = vmatpush1.msra.mxu0 %v2132
    %2134 = vmatprep.subr.mxu0 0.0
    %v2135 = vand.u32 %v1693, 4294901760
    %2136 = vmatpush1.msra.mxu0 %v2135
    %2137 = vmatprep.subr.mxu0 0.0
    %v2138 = vand.u32 %v1694, 4294901760
    %2139 = vmatpush1.msra.mxu0 %v2138
    %2140 = vmatprep.subr.mxu0 0.0
    %v2141 = vand.u32 %v1695, 4294901760
    %2142 = vmatpush1.msra.mxu0 %v2141
    %2143 = vmatprep.subr.mxu0 0.0
    %v2144 = vand.u32 %v1696, 4294901760
    %2145 = vmatpush1.msra.mxu0 %v2144
    %2146 = vmatprep.subr.mxu0 0.0
    %v2147 = vand.u32 %v1697, 4294901760
    %2148 = vmatpush1.msra.mxu0 %v2147
    %2149 = vmatprep.subr.mxu0 0.0
    %v2150 = vand.u32 %v1698, 4294901760
    %2151 = vmatpush1.msra.mxu0 %v2150
    %2152 = vmatprep.subr.mxu0 0.0
    %v2153 = vand.u32 %v1699, 4294901760
    %2154 = vmatpush1.msra.mxu0 %v2153
    %2155 = vmatprep.subr.mxu0 0.0
    %v2156 = vand.u32 %v1700, 4294901760
    %2157 = vmatpush1.msra.mxu0 %v2156
    %2158 = vmatprep.subr.mxu0 0.0
    %v2159 = vand.u32 %v1701, 4294901760
    %2160 = vmatpush1.msra.mxu0 %v2159
    %2161 = vmatprep.subr.mxu0 0.0
    %v2162 = vand.u32 %v1702, 4294901760
    %2163 = vmatpush1.msra.mxu0 %v2162
    %2164 = vmatprep.subr.mxu0 0.0
    %v2165 = vand.u32 %v1703, 4294901760
    %2166 = vmatpush1.msra.mxu0 %v2165
    %2167 = vmatprep.subr.mxu0 0.0
    %2168 = vmatpush1.msra.mxu0 0.0
    %2169 = vmatprep.subr.mxu0 0.0
    %2170 = vmatpush1.msra.mxu0 0.0
    %2171 = vmatprep.subr.mxu0 0.0
    %2172 = vmatpush1.msra.mxu0 0.0
    %2173 = vmatprep.subr.mxu0 0.0
    %2174 = vmatpush1.msra.mxu0 0.0
    %2175 = vmatprep.subr.mxu0 0.0
    %2176 = vmatpush1.msra.mxu0 0.0
    %2177 = vmatprep.subr.mxu0 0.0
    %2178 = vmatpush1.msra.mxu0 0.0
    %2179 = vmatprep.subr.mxu0 0.0
    %2180 = vmatpush1.msra.mxu0 0.0
    %2181 = vmatprep.subr.mxu0 0.0
    %2182 = vmatpush1.msra.mxu0 0.0
    %2183 = vmatprep.subr.mxu0 0.0
    %2184 = vmatpush1.msra.mxu0 0.0
    %2185 = vmatprep.subr.mxu0 0.0
    %2186 = vmatpush1.msra.mxu0 0.0
    %2187 = vmatprep.subr.mxu0 0.0
    %2188 = vmatpush1.msra.mxu0 0.0
    %2189 = vmatprep.subr.mxu0 0.0
    %2190 = vmatpush1.msra.mxu0 0.0
    %2191 = vmatprep.subr.mxu0 0.0
    %2192 = vmatpush1.msra.mxu0 0.0
    %2193 = vmatprep.subr.mxu0 0.0
    %2194 = vmatpush1.msra.mxu0 0.0
    %2195 = vmatprep.subr.mxu0 0.0
    %2196 = vmatpush1.msra.mxu0 0.0
    %2197 = vmatprep.subr.mxu0 0.0
    %2198 = vmatpush1.msra.mxu0 0.0
    %2199 = vmatprep.mubr.f32.mxu0 0.0
    %v2200 = vand.u32 %v1684, 4294901760
    %v2201 = vsub.f32 %v1684, %v2200
    %v2202 = vand.u32 %v2201, 4294901760
    %2203 = vmatmul.mubr.f32.gmra.mrb[0].mxu0 %v2202
    %v2204 = vpop.f32.mrb[0].mxu0
    %v2205 = vadd.f32 %v2095, %v2204
    %v2206 = vpop.f32.mrb[0].mxu0
    %2207 = vmatprep.mubr.f32.mxu0 0.0
    %v2208 = vand.u32 %v1685, 4294901760
    %v2209 = vsub.f32 %v1685, %v2208
    %v2210 = vand.u32 %v2209, 4294901760
    %2211 = vmatmul.mubr.f32.gmra.mrb[0].mxu0 %v2210
    %v2212 = vpop.f32.mrb[0].mxu0
    %v2213 = vadd.f32 %v2102, %v2212
    %v2214 = vpop.f32.mrb[0].mxu0
    %2215 = vmatprep.mubr.f32.mxu0 0.0
    %v2216 = vand.u32 %v1686, 4294901760
    %v2217 = vsub.f32 %v1686, %v2216
    %v2218 = vand.u32 %v2217, 4294901760
    %2219 = vmatmul.mubr.f32.gmra.mrb[0].mxu0 %v2218
    %v2220 = vpop.f32.mrb[0].mxu0
    %v2221 = vadd.f32 %v2109, %v2220
    %v2222 = vpop.f32.mrb[0].mxu0
    %2223 = vmatprep.mubr.f32.mxu0 0.0
    %v2224 = vand.u32 %v1687, 4294901760
    %v2225 = vsub.f32 %v1687, %v2224
    %v2226 = vand.u32 %v2225, 4294901760
    %2227 = vmatmul.mubr.f32.gmra.mrb[0].mxu0 %v2226
    %v2228 = vpop.f32.mrb[0].mxu0
    %v2229 = vadd.f32 %v2116, %v2228
    %v2230 = vpop.f32.mrb[0].mxu0
    %2231 = vdwg.mxu0
    %2232 = vmatprep.subr.mxu0 0.0
    %v2233 = vand.u32 %v1688, 4294901760
    %v2234 = vsub.f32 %v1688, %v2233
    %v2235 = vand.u32 %v2234, 4294901760
    %2236 = vmatpush1.msra.mxu0 %v2235
    %2237 = vmatprep.subr.mxu0 0.0
    %v2238 = vand.u32 %v1689, 4294901760
    %v2239 = vsub.f32 %v1689, %v2238
    %v2240 = vand.u32 %v2239, 4294901760
    %2241 = vmatpush1.msra.mxu0 %v2240
    %2242 = vmatprep.subr.mxu0 0.0
    %v2243 = vand.u32 %v1690, 4294901760
    %v2244 = vsub.f32 %v1690, %v2243
    %v2245 = vand.u32 %v2244, 4294901760
    %2246 = vmatpush1.msra.mxu0 %v2245
    %2247 = vmatprep.subr.mxu0 0.0
    %v2248 = vand.u32 %v1691, 4294901760
    %v2249 = vsub.f32 %v1691, %v2248
    %v2250 = vand.u32 %v2249, 4294901760
    %2251 = vmatpush1.msra.mxu0 %v2250
    %2252 = vmatprep.subr.mxu0 0.0
    %v2253 = vand.u32 %v1692, 4294901760
    %v2254 = vsub.f32 %v1692, %v2253
    %v2255 = vand.u32 %v2254, 4294901760
    %2256 = vmatpush1.msra.mxu0 %v2255
    %2257 = vmatprep.subr.mxu0 0.0
    %v2258 = vand.u32 %v1693, 4294901760
    %v2259 = vsub.f32 %v1693, %v2258
    %v2260 = vand.u32 %v2259, 4294901760
    %2261 = vmatpush1.msra.mxu0 %v2260
    %2262 = vmatprep.subr.mxu0 0.0
    %v2263 = vand.u32 %v1694, 4294901760
    %v2264 = vsub.f32 %v1694, %v2263
    %v2265 = vand.u32 %v2264, 4294901760
    %2266 = vmatpush1.msra.mxu0 %v2265
    %2267 = vmatprep.subr.mxu0 0.0
    %v2268 = vand.u32 %v1695, 4294901760
    %v2269 = vsub.f32 %v1695, %v2268
    %v2270 = vand.u32 %v2269, 4294901760
    %2271 = vmatpush1.msra.mxu0 %v2270
    %2272 = vmatprep.subr.mxu0 0.0
    %v2273 = vand.u32 %v1696, 4294901760
    %v2274 = vsub.f32 %v1696, %v2273
    %v2275 = vand.u32 %v2274, 4294901760
    %2276 = vmatpush1.msra.mxu0 %v2275
    %2277 = vmatprep.subr.mxu0 0.0
    %v2278 = vand.u32 %v1697, 4294901760
    %v2279 = vsub.f32 %v1697, %v2278
    %v2280 = vand.u32 %v2279, 4294901760
    %2281 = vmatpush1.msra.mxu0 %v2280
    %2282 = vmatprep.subr.mxu0 0.0
    %v2283 = vand.u32 %v1698, 4294901760
    %v2284 = vsub.f32 %v1698, %v2283
    %v2285 = vand.u32 %v2284, 4294901760
    %2286 = vmatpush1.msra.mxu0 %v2285
    %2287 = vmatprep.subr.mxu0 0.0
    %v2288 = vand.u32 %v1699, 4294901760
    %v2289 = vsub.f32 %v1699, %v2288
    %v2290 = vand.u32 %v2289, 4294901760
    %2291 = vmatpush1.msra.mxu0 %v2290
    %2292 = vmatprep.subr.mxu0 0.0
    %v2293 = vand.u32 %v1700, 4294901760
    %v2294 = vsub.f32 %v1700, %v2293
    %v2295 = vand.u32 %v2294, 4294901760
    %2296 = vmatpush1.msra.mxu0 %v2295
    %2297 = vmatprep.subr.mxu0 0.0
    %v2298 = vand.u32 %v1701, 4294901760
    %v2299 = vsub.f32 %v1701, %v2298
    %v2300 = vand.u32 %v2299, 4294901760
    %2301 = vmatpush1.msra.mxu0 %v2300
    %2302 = vmatprep.subr.mxu0 0.0
    %v2303 = vand.u32 %v1702, 4294901760
    %v2304 = vsub.f32 %v1702, %v2303
    %v2305 = vand.u32 %v2304, 4294901760
    %2306 = vmatpush1.msra.mxu0 %v2305
    %2307 = vmatprep.subr.mxu0 0.0
    %v2308 = vand.u32 %v1703, 4294901760
    %v2309 = vsub.f32 %v1703, %v2308
    %v2310 = vand.u32 %v2309, 4294901760
    %2311 = vmatpush1.msra.mxu0 %v2310
    %2312 = vmatprep.subr.mxu0 0.0
    %2313 = vmatpush1.msra.mxu0 0.0
    %2314 = vmatprep.subr.mxu0 0.0
    %2315 = vmatpush1.msra.mxu0 0.0
    %2316 = vmatprep.subr.mxu0 0.0
    %2317 = vmatpush1.msra.mxu0 0.0
    %2318 = vmatprep.subr.mxu0 0.0
    %2319 = vmatpush1.msra.mxu0 0.0
    %2320 = vmatprep.subr.mxu0 0.0
    %2321 = vmatpush1.msra.mxu0 0.0
    %2322 = vmatprep.subr.mxu0 0.0
    %2323 = vmatpush1.msra.mxu0 0.0
    %2324 = vmatprep.subr.mxu0 0.0
    %2325 = vmatpush1.msra.mxu0 0.0
    %2326 = vmatprep.subr.mxu0 0.0
    %2327 = vmatpush1.msra.mxu0 0.0
    %2328 = vmatprep.subr.mxu0 0.0
    %2329 = vmatpush1.msra.mxu0 0.0
    %2330 = vmatprep.subr.mxu0 0.0
    %2331 = vmatpush1.msra.mxu0 0.0
    %2332 = vmatprep.subr.mxu0 0.0
    %2333 = vmatpush1.msra.mxu0 0.0
    %2334 = vmatprep.subr.mxu0 0.0
    %2335 = vmatpush1.msra.mxu0 0.0
    %2336 = vmatprep.subr.mxu0 0.0
    %2337 = vmatpush1.msra.mxu0 0.0
    %2338 = vmatprep.subr.mxu0 0.0
    %2339 = vmatpush1.msra.mxu0 0.0
    %2340 = vmatprep.subr.mxu0 0.0
    %2341 = vmatpush1.msra.mxu0 0.0
    %2342 = vmatprep.subr.mxu0 0.0
    %2343 = vmatpush1.msra.mxu0 0.0
    %2344 = vmatprep.mubr.f32.mxu0 0.0
    %v2345 = vand.u32 %v1684, 4294901760
    %2346 = vmatmul.mubr.f32.gmra.mrb[0].mxu0 %v2345
    %v2347 = vpop.f32.mrb[0].mxu0
    %v2348 = vadd.f32 %v2205, %v2347
    %v2349 = vpop.f32.mrb[0].mxu0
    %2350 = vmatprep.mubr.f32.mxu0 0.0
    %v2351 = vand.u32 %v1685, 4294901760
    %2352 = vmatmul.mubr.f32.gmra.mrb[0].mxu0 %v2351
    %v2353 = vpop.f32.mrb[0].mxu0
    %v2354 = vadd.f32 %v2213, %v2353
    %v2355 = vpop.f32.mrb[0].mxu0
    %2356 = vmatprep.mubr.f32.mxu0 0.0
    %v2357 = vand.u32 %v1686, 4294901760
    %2358 = vmatmul.mubr.f32.gmra.mrb[0].mxu0 %v2357
    %v2359 = vpop.f32.mrb[0].mxu0
    %v2360 = vadd.f32 %v2221, %v2359
    %v2361 = vpop.f32.mrb[0].mxu0
    %2362 = vmatprep.mubr.f32.mxu0 0.0
    %v2363 = vand.u32 %v1687, 4294901760
    %2364 = vmatmul.mubr.f32.gmra.mrb[0].mxu0 %v2363
    %v2365 = vpop.f32.mrb[0].mxu0
    %v2366 = vadd.f32 %v2229, %v2365
    %v2367 = vpop.f32.mrb[0].mxu0
    %2368 = vdwg.mxu0
    %2369 = vmatprep.subr.mxu0 0.0
    %v2370 = vand.u32 %v1688, 4294901760
    %2371 = vmatpush1.msra.mxu0 %v2370
    %2372 = vmatprep.subr.mxu0 0.0
    %v2373 = vand.u32 %v1689, 4294901760
    %2374 = vmatpush1.msra.mxu0 %v2373
    %2375 = vmatprep.subr.mxu0 0.0
    %v2376 = vand.u32 %v1690, 4294901760
    %2377 = vmatpush1.msra.mxu0 %v2376
    %2378 = vmatprep.subr.mxu0 0.0
    %v2379 = vand.u32 %v1691, 4294901760
    %2380 = vmatpush1.msra.mxu0 %v2379
    %2381 = vmatprep.subr.mxu0 0.0
    %v2382 = vand.u32 %v1692, 4294901760
    %2383 = vmatpush1.msra.mxu0 %v2382
    %2384 = vmatprep.subr.mxu0 0.0
    %v2385 = vand.u32 %v1693, 4294901760
    %2386 = vmatpush1.msra.mxu0 %v2385
    %2387 = vmatprep.subr.mxu0 0.0
    %v2388 = vand.u32 %v1694, 4294901760
    %2389 = vmatpush1.msra.mxu0 %v2388
    %2390 = vmatprep.subr.mxu0 0.0
    %v2391 = vand.u32 %v1695, 4294901760
    %2392 = vmatpush1.msra.mxu0 %v2391
    %2393 = vmatprep.subr.mxu0 0.0
    %v2394 = vand.u32 %v1696, 4294901760
    %2395 = vmatpush1.msra.mxu0 %v2394
    %2396 = vmatprep.subr.mxu0 0.0
    %v2397 = vand.u32 %v1697, 4294901760
    %2398 = vmatpush1.msra.mxu0 %v2397
    %2399 = vmatprep.subr.mxu0 0.0
    %v2400 = vand.u32 %v1698, 4294901760
    %2401 = vmatpush1.msra.mxu0 %v2400
    %2402 = vmatprep.subr.mxu0 0.0
    %v2403 = vand.u32 %v1699, 4294901760
    %2404 = vmatpush1.msra.mxu0 %v2403
    %2405 = vmatprep.subr.mxu0 0.0
    %v2406 = vand.u32 %v1700, 4294901760
    %2407 = vmatpush1.msra.mxu0 %v2406
    %2408 = vmatprep.subr.mxu0 0.0
    %v2409 = vand.u32 %v1701, 4294901760
    %2410 = vmatpush1.msra.mxu0 %v2409
    %2411 = vmatprep.subr.mxu0 0.0
    %v2412 = vand.u32 %v1702, 4294901760
    %2413 = vmatpush1.msra.mxu0 %v2412
    %2414 = vmatprep.subr.mxu0 0.0
    %v2415 = vand.u32 %v1703, 4294901760
    %2416 = vmatpush1.msra.mxu0 %v2415
    %2417 = vmatprep.subr.mxu0 0.0
    %2418 = vmatpush1.msra.mxu0 0.0
    %2419 = vmatprep.subr.mxu0 0.0
    %2420 = vmatpush1.msra.mxu0 0.0
    %2421 = vmatprep.subr.mxu0 0.0
    %2422 = vmatpush1.msra.mxu0 0.0
    %2423 = vmatprep.subr.mxu0 0.0
    %2424 = vmatpush1.msra.mxu0 0.0
    %2425 = vmatprep.subr.mxu0 0.0
    %2426 = vmatpush1.msra.mxu0 0.0
    %2427 = vmatprep.subr.mxu0 0.0
    %2428 = vmatpush1.msra.mxu0 0.0
    %2429 = vmatprep.subr.mxu0 0.0
    %2430 = vmatpush1.msra.mxu0 0.0
    %2431 = vmatprep.subr.mxu0 0.0
    %2432 = vmatpush1.msra.mxu0 0.0
    %2433 = vmatprep.subr.mxu0 0.0
    %2434 = vmatpush1.msra.mxu0 0.0
    %2435 = vmatprep.subr.mxu0 0.0
    %2436 = vmatpush1.msra.mxu0 0.0
    %2437 = vmatprep.subr.mxu0 0.0
    %2438 = vmatpush1.msra.mxu0 0.0
    %2439 = vmatprep.subr.mxu0 0.0
    %2440 = vmatpush1.msra.mxu0 0.0
    %2441 = vmatprep.subr.mxu0 0.0
    %2442 = vmatpush1.msra.mxu0 0.0
    %2443 = vmatprep.subr.mxu0 0.0
    %2444 = vmatpush1.msra.mxu0 0.0
    %2445 = vmatprep.subr.mxu0 0.0
    %2446 = vmatpush1.msra.mxu0 0.0
    %2447 = vmatprep.subr.mxu0 0.0
    %2448 = vmatpush1.msra.mxu0 0.0
    %2449 = vmatprep.mubr.f32.mxu0 0.0
    %v2450 = vand.u32 %v1684, 4294901760
    %2451 = vmatmul.mubr.f32.gmra.mrb[0].mxu0 %v2450
    %v2452 = vpop.f32.mrb[0].mxu0
    %v2453 = vadd.f32 %v2348, %v2452
    %v2454 = vpop.f32.mrb[0].mxu0
    %2455 = vmatprep.mubr.f32.mxu0 0.0
    %v2456 = vand.u32 %v1685, 4294901760
    %2457 = vmatmul.mubr.f32.gmra.mrb[0].mxu0 %v2456
    %v2458 = vpop.f32.mrb[0].mxu0
    %v2459 = vadd.f32 %v2354, %v2458
    %v2460 = vpop.f32.mrb[0].mxu0
    %2461 = vmatprep.mubr.f32.mxu0 0.0
    %v2462 = vand.u32 %v1686, 4294901760
    %2463 = vmatmul.mubr.f32.gmra.mrb[0].mxu0 %v2462
    %v2464 = vpop.f32.mrb[0].mxu0
    %v2465 = vadd.f32 %v2360, %v2464
    %v2466 = vpop.f32.mrb[0].mxu0
    %2467 = vmatprep.mubr.f32.mxu0 0.0
    %v2468 = vand.u32 %v1687, 4294901760
    %2469 = vmatmul.mubr.f32.gmra.mrb[0].mxu0 %v2468
    %v2470 = vpop.f32.mrb[0].mxu0
    %v2471 = vadd.f32 %v2366, %v2470
    %v2472 = vpop.f32.mrb[0].mxu0
    %2473 = vdwg.mxu0
    %v2474 = vld [vmem:[%s11] sm:$0x1]
    %v2475 = vld [vmem:[%s11 + $0x1] sm:$0x1]
    %v2476 = vld [vmem:[%s11 + $0x2] sm:$0x1]
    %v2477 = vld [vmem:[%s11 + $0x3] sm:$0x1]
    %v2482 = vlaneseq
    %v2483 = vshrl.u32 %v2482, 7
    %v2484 = vsub.s32 0, %v2483
    %v2485 = vrot.slane %v2474, %v2484
    %v2486 = vlaneseq
    %v2487 = vshrl.u32 %v2486, 7
    %v2488 = vsub.s32 0, %v2487
    %v2489 = vrot.slane %v2475, %v2488
    %v2490 = vlaneseq
    %v2491 = vshrl.u32 %v2490, 7
    %v2492 = vsub.s32 0, %v2491
    %v2493 = vrot.slane %v2476, %v2492
    %v2494 = vlaneseq
    %v2495 = vshrl.u32 %v2494, 7
    %v2496 = vsub.s32 0, %v2495
    %v2497 = vrot.slane %v2477, %v2496
    %v2502 = vmul.f32 %v2453, %v2485
    %v2503 = vmul.f32 %v2459, %v2489
    %v2504 = vmul.f32 %v2465, %v2493
    %v2505 = vmul.f32 %v2471, %v2497
    %v2506 = vld [vmem:[%s12] sm:$0x1]
    %v2507 = vld [vmem:[%s12 + $0x1] sm:$0x1]
    %v2508 = vld [vmem:[%s12 + $0x2] sm:$0x1]
    %v2509 = vld [vmem:[%s12 + $0x3] sm:$0x1]
    %v2514 = vlaneseq
    %v2515 = vshrl.u32 %v2514, 7
    %v2516 = vsub.s32 0, %v2515
    %v2517 = vrot.slane %v2506, %v2516
    %v2518 = vlaneseq
    %v2519 = vshrl.u32 %v2518, 7
    %v2520 = vsub.s32 0, %v2519
    %v2521 = vrot.slane %v2507, %v2520
    %v2522 = vlaneseq
    %v2523 = vshrl.u32 %v2522, 7
    %v2524 = vsub.s32 0, %v2523
    %v2525 = vrot.slane %v2508, %v2524
    %v2526 = vlaneseq
    %v2527 = vshrl.u32 %v2526, 7
    %v2528 = vsub.s32 0, %v2527
    %v2529 = vrot.slane %v2509, %v2528
    %v2534 = vadd.f32 %v2502, %v2517
    %v2535 = vadd.f32 %v2503, %v2521
    %v2536 = vadd.f32 %v2504, %v2525
    %v2537 = vadd.f32 %v2505, %v2529
    %2538 = vst [vmem:[#allocation7] sm:$0xff] %v2534
    %2539 = vst [vmem:[#allocation7 + $0x8] sm:$0xff] %v2535
    %2540 = vst [vmem:[#allocation7 + $0x10] sm:$0xff] %v2536
    %2541 = vst [vmem:[#allocation7 + $0x18] sm:$0xff] %v2537
    // Predicated region
    $region62: #{tpu_custom_call.1} parent=1 // pred_check
      _
    $region63: #{tpu_custom_call.1} parent=1 // pred_check_branch
      %2543 = sbr.rel (0) target = $region65
    $region64: #{tpu_custom_call.1} parent=1 // pred_region
      %s2545 = ssub.s32 512, 512
      %2546 = vsyncadd [#allocation4], %s2545
      %s2547 = sshll.u32 [#allocation7], 4
      %s2548 = int_to_ptr.vmem [resolvable:$true] %s2547
      %2553 = dma.vmem_to_hbm [thread:$0]  %s2548, 512, %s13, [#allocation4], 128, 128, 8
    $region65: #{tpu_custom_call.1} parent=1 // pred_fallthru
      _
    // Predicated region
    $region66: #{tpu_custom_call.1} parent=1 // pred_check
      _
    $region67: #{tpu_custom_call.1} parent=1 // pred_check_branch
      %2555 = sbr.rel (0) target = $region69
    $region68: #{tpu_custom_call.1} parent=1 // pred_region
      %2556 = dma.done [#allocation4], 512
    $region69: #{tpu_custom_call.1} parent=1 // pred_fallthru
      _
    %2557 = vsyncpa [#allocation3], 1
    %2558 = vsyncpa [#allocation6], 1
    %2559 = vsyncpa [#allocation4], 1

// kernel: tpu_custom_call.1
$region0: #{tpu_custom_call.1}
  #allocation0 [shape = 'u32[]', space=smem, size = 0x4, offset = 0x4, fixed_abs, tag = 'smem constant byte address 0x4 - core index']
  #allocation1 [shape = 'u32[144,128]{1,0:T(1,128)}', space=vmem, size = 0x12000, scoped, tag = 'internal scratch']
  %s0 = inlined_call_operand.vmem [shape: f32[4,8,4], index: 0, kind: input, shape index: {}]
  %s1 = inlined_call_operand.vmem [shape: f32[4,128], index: 1, kind: input, shape index: {}]
  %s2 = inlined_call_operand.vmem [shape: f32[4,1,4], index: 2, kind: input, shape index: {}]
  %s3 = inlined_call_operand.vmem [shape: f32[4,1,128], index: 3, kind: input, shape index: {}]
  %s4 = inlined_call_operand.vmem [shape: f32[4,1,128], index: 4, kind: input, shape index: {}]
  %s5 = inlined_call_operand.hbm [shape: f32[128,128], index: 5, kind: input, shape index: {}]
  %s6 = inlined_call_operand.vmem [shape: f32[4,1,128], index: 6, kind: input, shape index: {}]
  %s7 = inlined_call_operand.vmem [shape: f32[4,1,128], index: 7, kind: input, shape index: {}]
  %s8 = inlined_call_operand.vmem [shape: f32[4,1,128], index: 8, kind: input, shape index: {}]
  %s9 = inlined_call_operand.hbm [shape: f32[128,128], index: 9, kind: input, shape index: {}]
  %s10 = inlined_call_operand.vmem [shape: f32[4,1,128], index: 10, kind: input, shape index: {}]
  %s11 = inlined_call_operand.vmem [shape: f32[4,1,128], index: 11, kind: input, shape index: {}]
  %s12 = inlined_call_operand.vmem [shape: f32[4,1,128], index: 12, kind: input, shape index: {}]
  %s13 = inlined_call_operand.hbm [shape: f32[4,8,128], index: 13, kind: output, shape index: {}]
  %s14 = sld [smem:[#allocation0]]
  $region70: #{tpu_custom_call.1} parent=0
    _
  %s16 = ssub.s32 1, %s14
  %s17 = scalar_select 0, %s16, %s14
  $region1: #{tpu_custom_call.1} parent=0
    #allocation2 [shape = 'u8[65536]{0}', space=vmem, size = 0x10000, scoped, tag = 'input window, operand 5, single buffered']
    #allocation3 [shape = 's32[1]{0}', space=sflag, size = 0x4, scoped, tag = 'scoped memory for tpu_custom_call.1']
    #allocation4 [shape = 's32[1]{0}', space=sflag, size = 0x4, scoped, tag = 'scoped memory for tpu_custom_call.1']
    #allocation5 [shape = 'u8[65536]{0}', space=vmem, size = 0x10000, scoped, tag = 'input window, operand 9, single buffered']
    #allocation6 [shape = 's32[1]{0}', space=sflag, size = 0x4, scoped, tag = 'scoped memory for tpu_custom_call.1']
    #allocation7 [shape = 'u8[16384]{0}', space=vmem, size = 0x4000, scoped, tag = 'output window, operand 0, single buffered']
    %18 = vsyncpa [#allocation3], 0
    %19 = vsyncpa [#allocation6], 0
    %20 = vsyncpa [#allocation4], 0
    // Predicated region
    $region2: #{tpu_custom_call.1} parent=1 // pred_check
      _
    $region3: #{tpu_custom_call.1} parent=1 // pred_check_branch
      %22 = sbr.rel (0) target = $region5
    $region4: #{tpu_custom_call.1} parent=1 // pred_region
      _
    $region5: #{tpu_custom_call.1} parent=1 // pred_fallthru
      _
    // Predicated region
    $region6: #{tpu_custom_call.1} parent=1 // pred_check
      _
    $region7: #{tpu_custom_call.1} parent=1 // pred_check_branch
      %24 = sbr.rel (0) target = $region9
    $region8: #{tpu_custom_call.1} parent=1 // pred_region
      _
    $region9: #{tpu_custom_call.1} parent=1 // pred_fallthru
      _
    // Predicated region
    $region10: #{tpu_custom_call.1} parent=1 // pred_check
      _
    $region11: #{tpu_custom_call.1} parent=1 // pred_check_branch
      %26 = sbr.rel (0) target = $region13
    $region12: #{tpu_custom_call.1} parent=1 // pred_region
      _
    $region13: #{tpu_custom_call.1} parent=1 // pred_fallthru
      _
    // Predicated region
    $region14: #{tpu_custom_call.1} parent=1 // pred_check
      _
    $region15: #{tpu_custom_call.1} parent=1 // pred_check_branch
      %28 = sbr.rel (0) target = $region17
    $region16: #{tpu_custom_call.1} parent=1 // pred_region
      _
    $region17: #{tpu_custom_call.1} parent=1 // pred_fallthru
      _
    // Predicated region
    $region18: #{tpu_custom_call.1} parent=1 // pred_check
      _
    $region19: #{tpu_custom_call.1} parent=1 // pred_check_branch
      %30 = sbr.rel (0) target = $region21
    $region20: #{tpu_custom_call.1} parent=1 // pred_region
      _
    $region21: #{tpu_custom_call.1} parent=1 // pred_fallthru
      _
    // Predicated region
    $region22: #{tpu_custom_call.1} parent=1 // pred_check
      _
    $region23: #{tpu_custom_call.1} parent=1 // pred_check_branch
      %32 = sbr.rel (0) target = $region25
    $region24: #{tpu_custom_call.1} parent=1 // pred_region
      %s34 = ssub.s32 2048, 2048
      %35 = vsyncadd [#allocation3], %s34
      %s36 = sshll.u32 [#allocation2], 4
      %s37 = int_to_ptr.vmem [resolvable:$true] %s36
      %42 = dma.hbm_to_vmem [thread:$0]  %s5, 2048, %s37, [#allocation3], 128, 128, 8
    $region25: #{tpu_custom_call.1} parent=1 // pred_fallthru
      _
    // Predicated region
    $region26: #{tpu_custom_call.1} parent=1 // pred_check
      _
    $region27: #{tpu_custom_call.1} parent=1 // pred_check_branch
      %44 = sbr.rel (0) target = $region29
    $region28: #{tpu_custom_call.1} parent=1 // pred_region
      _
    $region29: #{tpu_custom_call.1} parent=1 // pred_fallthru
      _
    // Predicated region
    $region30: #{tpu_custom_call.1} parent=1 // pred_check
      _
    $region31: #{tpu_custom_call.1} parent=1 // pred_check_branch
      %46 = sbr.rel (0) target = $region33
    $region32: #{tpu_custom_call.1} parent=1 // pred_region
      _
    $region33: #{tpu_custom_call.1} parent=1 // pred_fallthru
      _
    // Predicated region
    $region34: #{tpu_custom_call.1} parent=1 // pred_check
      _
    $region35: #{tpu_custom_call.1} parent=1 // pred_check_branch
      %48 = sbr.rel (0) target = $region37
    $region36: #{tpu_custom_call.1} parent=1 // pred_region
      _
    $region37: #{tpu_custom_call.1} parent=1 // pred_fallthru
      _
    // Predicated region
    $region38: #{tpu_custom_call.1} parent=1 // pred_check
      _
    $region39: #{tpu_custom_call.1} parent=1 // pred_check_branch
      %50 = sbr.rel (0) target = $region41
    $region40: #{tpu_custom_call.1} parent=1 // pred_region
      %s52 = ssub.s32 2048, 2048
      %53 = vsyncadd [#allocation6], %s52
      %s54 = sshll.u32 [#allocation5], 4
      %s55 = int_to_ptr.vmem [resolvable:$true] %s54
      %60 = dma.hbm_to_vmem [thread:$0]  %s9, 2048, %s55, [#allocation6], 128, 128, 8
    $region41: #{tpu_custom_call.1} parent=1 // pred_fallthru
      _
    // Predicated region
    $region42: #{tpu_custom_call.1} parent=1 // pred_check
      _
    $region43: #{tpu_custom_call.1} parent=1 // pred_check_branch
      %62 = sbr.rel (0) target = $region45
    $region44: #{tpu_custom_call.1} parent=1 // pred_region
      _
    $region45: #{tpu_custom_call.1} parent=1 // pred_fallthru
      _
    // Predicated region
    $region46: #{tpu_custom_call.1} parent=1 // pred_check
      _
    $region47: #{tpu_custom_call.1} parent=1 // pred_check_branch
      %64 = sbr.rel (0) target = $region49
    $region48: #{tpu_custom_call.1} parent=1 // pred_region
      _
    $region49: #{tpu_custom_call.1} parent=1 // pred_fallthru
      _
    // Predicated region
    $region50: #{tpu_custom_call.1} parent=1 // pred_check
      _
    $region51: #{tpu_custom_call.1} parent=1 // pred_check_branch
      %66 = sbr.rel (0) target = $region53
    $region52: #{tpu_custom_call.1} parent=1 // pred_region
      _
    $region53: #{tpu_custom_call.1} parent=1 // pred_fallthru
      _
    // Predicated region
    $region54: #{tpu_custom_call.1} parent=1 // pred_check
      _
    $region55: #{tpu_custom_call.1} parent=1 // pred_check_branch
      %68 = sbr.rel (0) target = $region57
    $region56: #{tpu_custom_call.1} parent=1 // pred_region
      %69 = dma.done [#allocation3], 2048
    $region57: #{tpu_custom_call.1} parent=1 // pred_fallthru
      _
    // Predicated region
    $region58: #{tpu_custom_call.1} parent=1 // pred_check
      _
    $region59: #{tpu_custom_call.1} parent=1 // pred_check_branch
      %71 = sbr.rel (0) target = $region61
    $region60: #{tpu_custom_call.1} parent=1 // pred_region
      %72 = dma.done [#allocation6], 2048
    $region61: #{tpu_custom_call.1} parent=1 // pred_fallthru
      _
    %v73 = vld [vmem:[%s0] sm:$0xff]
    %v74 = vld [vmem:[%s0 + $0x8] sm:$0xff]
    %v75 = vld [vmem:[%s0 + $0x10] sm:$0xff]
    %v76 = vld [vmem:[%s0 + $0x18] sm:$0xff]
    %v77 = vld [vmem:[%s2] sm:$0x1]
    %v78 = vld [vmem:[%s2 + $0x1] sm:$0x1]
    %v79 = vld [vmem:[%s2 + $0x2] sm:$0x1]
    %v80 = vld [vmem:[%s2 + $0x3] sm:$0x1]
    %v85 = vlaneseq
    %v86 = vshrl.u32 %v85, 7
    %v87 = vsub.s32 0, %v86
    %v88 = vrot.slane %v77, %v87
    %v89 = vlaneseq
    %v90 = vshrl.u32 %v89, 7
    %v91 = vsub.s32 0, %v90
    %v92 = vrot.slane %v78, %v91
    %v93 = vlaneseq
    %v94 = vshrl.u32 %v93, 7
    %v95 = vsub.s32 0, %v94
    %v96 = vrot.slane %v79, %v95
    %v97 = vlaneseq
    %v98 = vshrl.u32 %v97, 7
    %v99 = vsub.s32 0, %v98
    %v100 = vrot.slane %v80, %v99
    %v105 = vmul.f32 %v73, %v88
    %v106 = vmul.f32 %v74, %v92
    %v107 = vmul.f32 %v75, %v96
    %v108 = vmul.f32 %v76, %v100
    %v109 = vld [vmem:[%s1] sm:$0xf]
    %vm110 = vcmask 31744
    %v112 = vsel %vm110, %v105, 0
    %v115 = vsel %vm110, %v106, 0
    %v118 = vsel %vm110, %v107, 0
    %v121 = vsel %vm110, %v108, 0
    %vm123 = vcmask 1043456
    %v125 = vsel %vm123, %v109, 0
    %127 = vmatprep.subr.mxu0 0.0
    %v128 = vand.u32 %v125, 4294901760
    %129 = vmatpush1.msra.mxu0 %v128
    %130 = vmatprep.subr.mxu0 0.0
    %131 = vmatpush1.msra.mxu0 0.0
    %132 = vmatprep.subr.mxu0 0.0
    %133 = vmatpush1.msra.mxu0 0.0
    %134 = vmatprep.subr.mxu0 0.0
    %135 = vmatpush1.msra.mxu0 0.0
    %136 = vmatprep.subr.mxu0 0.0
    %137 = vmatpush1.msra.mxu0 0.0
    %138 = vmatprep.subr.mxu0 0.0
    %139 = vmatpush1.msra.mxu0 0.0
    %140 = vmatprep.subr.mxu0 0.0
    %141 = vmatpush1.msra.mxu0 0.0
    %142 = vmatprep.subr.mxu0 0.0
    %143 = vmatpush1.msra.mxu0 0.0
    %144 = vmatprep.subr.mxu0 0.0
    %145 = vmatpush1.msra.mxu0 0.0
    %146 = vmatprep.subr.mxu0 0.0
    %147 = vmatpush1.msra.mxu0 0.0
    %148 = vmatprep.subr.mxu0 0.0
    %149 = vmatpush1.msra.mxu0 0.0
    %150 = vmatprep.subr.mxu0 0.0
    %151 = vmatpush1.msra.mxu0 0.0
    %152 = vmatprep.subr.mxu0 0.0
    %153 = vmatpush1.msra.mxu0 0.0
    %154 = vmatprep.subr.mxu0 0.0
    %155 = vmatpush1.msra.mxu0 0.0
    %156 = vmatprep.subr.mxu0 0.0
    %157 = vmatpush1.msra.mxu0 0.0
    %158 = vmatprep.subr.mxu0 0.0
    %159 = vmatpush1.msra.mxu0 0.0
    %160 = vmatprep.subr.mxu0 0.0
    %161 = vmatpush1.msra.mxu0 0.0
    %162 = vmatprep.subr.mxu0 0.0
    %163 = vmatpush1.msra.mxu0 0.0
    %164 = vmatprep.subr.mxu0 0.0
    %165 = vmatpush1.msra.mxu0 0.0
    %166 = vmatprep.subr.mxu0 0.0
    %167 = vmatpush1.msra.mxu0 0.0
    %168 = vmatprep.subr.mxu0 0.0
    %169 = vmatpush1.msra.mxu0 0.0
    %170 = vmatprep.subr.mxu0 0.0
    %171 = vmatpush1.msra.mxu0 0.0
    %172 = vmatprep.subr.mxu0 0.0
    %173 = vmatpush1.msra.mxu0 0.0
    %174 = vmatprep.subr.mxu0 0.0
    %175 = vmatpush1.msra.mxu0 0.0
    %176 = vmatprep.subr.mxu0 0.0
    %177 = vmatpush1.msra.mxu0 0.0
    %178 = vmatprep.subr.mxu0 0.0
    %179 = vmatpush1.msra.mxu0 0.0
    %180 = vmatprep.subr.mxu0 0.0
    %181 = vmatpush1.msra.mxu0 0.0
    %182 = vmatprep.subr.mxu0 0.0
    %183 = vmatpush1.msra.mxu0 0.0
    %184 = vmatprep.subr.mxu0 0.0
    %185 = vmatpush1.msra.mxu0 0.0
    %186 = vmatprep.subr.mxu0 0.0
    %187 = vmatpush1.msra.mxu0 0.0
    %188 = vmatprep.subr.mxu0 0.0
    %189 = vmatpush1.msra.mxu0 0.0
    %190 = vmatprep.subr.mxu0 0.0
    %191 = vmatpush1.msra.mxu0 0.0
    %192 = vmatprep.mubr.f32.mxu0 0.0
    %v193 = vand.u32 %v112, 4294901760
    %v194 = vsub.f32 %v112, %v193
    %v195 = vand.u32 %v194, 4294901760
    %v196 = vsub.f32 %v194, %v195
    %v197 = vand.u32 %v196, 4294901760
    %198 = vmatmul.mubr.f32.gmra.mrb[0].mxu0 %v197
    %v199 = vpop.f32.mrb[0].mxu0
    %v200 = vadd.f32 0.0, %v199
    %v201 = vpop.f32.mrb[0].mxu0
    %202 = vmatprep.mubr.f32.mxu0 0.0
    %v203 = vand.u32 %v115, 4294901760
    %v204 = vsub.f32 %v115, %v203
    %v205 = vand.u32 %v204, 4294901760
    %v206 = vsub.f32 %v204, %v205
    %v207 = vand.u32 %v206, 4294901760
    %208 = vmatmul.mubr.f32.gmra.mrb[0].mxu0 %v207
    %v209 = vpop.f32.mrb[0].mxu0
    %v210 = vadd.f32 0.0, %v209
    %v211 = vpop.f32.mrb[0].mxu0
    %212 = vmatprep.mubr.f32.mxu0 0.0
    %v213 = vand.u32 %v118, 4294901760
    %v214 = vsub.f32 %v118, %v213
    %v215 = vand.u32 %v214, 4294901760
    %v216 = vsub.f32 %v214, %v215
    %v217 = vand.u32 %v216, 4294901760
    %218 = vmatmul.mubr.f32.gmra.mrb[0].mxu0 %v217
    %v219 = vpop.f32.mrb[0].mxu0
    %v220 = vadd.f32 0.0, %v219
    %v221 = vpop.f32.mrb[0].mxu0
    %222 = vmatprep.mubr.f32.mxu0 0.0
    %v223 = vand.u32 %v121, 4294901760
    %v224 = vsub.f32 %v121, %v223
    %v225 = vand.u32 %v224, 4294901760
    %v226 = vsub.f32 %v224, %v225
    %v227 = vand.u32 %v226, 4294901760
    %228 = vmatmul.mubr.f32.gmra.mrb[0].mxu0 %v227
    %v229 = vpop.f32.mrb[0].mxu0
    %v230 = vadd.f32 0.0, %v229
    %v231 = vpop.f32.mrb[0].mxu0
    %232 = vdwg.mxu0
    %233 = vmatprep.subr.mxu0 0.0
    %v234 = vand.u32 %v125, 4294901760
    %v235 = vsub.f32 %v125, %v234
    %v236 = vand.u32 %v235, 4294901760
    %v237 = vsub.f32 %v235, %v236
    %v238 = vand.u32 %v237, 4294901760
    %239 = vmatpush1.msra.mxu0 %v238
    %240 = vmatprep.subr.mxu0 0.0
    %241 = vmatpush1.msra.mxu0 0.0
    %242 = vmatprep.subr.mxu0 0.0
    %243 = vmatpush1.msra.mxu0 0.0
    %244 = vmatprep.subr.mxu0 0.0
    %245 = vmatpush1.msra.mxu0 0.0
    %246 = vmatprep.subr.mxu0 0.0
    %247 = vmatpush1.msra.mxu0 0.0
    %248 = vmatprep.subr.mxu0 0.0
    %249 = vmatpush1.msra.mxu0 0.0
    %250 = vmatprep.subr.mxu0 0.0
    %251 = vmatpush1.msra.mxu0 0.0
    %252 = vmatprep.subr.mxu0 0.0
    %253 = vmatpush1.msra.mxu0 0.0
    %254 = vmatprep.subr.mxu0 0.0
    %255 = vmatpush1.msra.mxu0 0.0
    %256 = vmatprep.subr.mxu0 0.0
    %257 = vmatpush1.msra.mxu0 0.0
    %258 = vmatprep.subr.mxu0 0.0
    %259 = vmatpush1.msra.mxu0 0.0
    %260 = vmatprep.subr.mxu0 0.0
    %261 = vmatpush1.msra.mxu0 0.0
    %262 = vmatprep.subr.mxu0 0.0
    %263 = vmatpush1.msra.mxu0 0.0
    %264 = vmatprep.subr.mxu0 0.0
    %265 = vmatpush1.msra.mxu0 0.0
    %266 = vmatprep.subr.mxu0 0.0
    %267 = vmatpush1.msra.mxu0 0.0
    %268 = vmatprep.subr.mxu0 0.0
    %269 = vmatpush1.msra.mxu0 0.0
    %270 = vmatprep.subr.mxu0 0.0
    %271 = vmatpush1.msra.mxu0 0.0
    %272 = vmatprep.subr.mxu0 0.0
    %273 = vmatpush1.msra.mxu0 0.0
    %274 = vmatprep.subr.mxu0 0.0
    %275 = vmatpush1.msra.mxu0 0.0
    %276 = vmatprep.subr.mxu0 0.0
    %277 = vmatpush1.msra.mxu0 0.0
    %278 = vmatprep.subr.mxu0 0.0
    %279 = vmatpush1.msra.mxu0 0.0
    %280 = vmatprep.subr.mxu0 0.0
    %281 = vmatpush1.msra.mxu0 0.0
    %282 = vmatprep.subr.mxu0 0.0
    %283 = vmatpush1.msra.mxu0 0.0
    %284 = vmatprep.subr.mxu0 0.0
    %285 = vmatpush1.msra.mxu0 0.0
    %286 = vmatprep.subr.mxu0 0.0
    %287 = vmatpush1.msra.mxu0 0.0
    %288 = vmatprep.subr.mxu0 0.0
    %289 = vmatpush1.msra.mxu0 0.0
    %290 = vmatprep.subr.mxu0 0.0
    %291 = vmatpush1.msra.mxu0 0.0
    %292 = vmatprep.subr.mxu0 0.0
    %293 = vmatpush1.msra.mxu0 0.0
    %294 = vmatprep.subr.mxu0 0.0
    %295 = vmatpush1.msra.mxu0 0.0
    %296 = vmatprep.subr.mxu0 0.0
    %297 = vmatpush1.msra.mxu0 0.0
    %298 = vmatprep.subr.mxu0 0.0
    %299 = vmatpush1.msra.mxu0 0.0
    %300 = vmatprep.subr.mxu0 0.0
    %301 = vmatpush1.msra.mxu0 0.0
    %302 = vmatprep.mubr.f32.mxu0 0.0
    %v303 = vand.u32 %v112, 4294901760
    %304 = vmatmul.mubr.f32.gmra.mrb[0].mxu0 %v303
    %v305 = vpop.f32.mrb[0].mxu0
    %v306 = vadd.f32 %v200, %v305
    %v307 = vpop.f32.mrb[0].mxu0
    %308 = vmatprep.mubr.f32.mxu0 0.0
    %v309 = vand.u32 %v115, 4294901760
    %310 = vmatmul.mubr.f32.gmra.mrb[0].mxu0 %v309
    %v311 = vpop.f32.mrb[0].mxu0
    %v312 = vadd.f32 %v210, %v311
    %v313 = vpop.f32.mrb[0].mxu0
    %314 = vmatprep.mubr.f32.mxu0 0.0
    %v315 = vand.u32 %v118, 4294901760
    %316 = vmatmul.mubr.f32.gmra.mrb[0].mxu0 %v315
    %v317 = vpop.f32.mrb[0].mxu0
    %v318 = vadd.f32 %v220, %v317
    %v319 = vpop.f32.mrb[0].mxu0
    %320 = vmatprep.mubr.f32.mxu0 0.0
    %v321 = vand.u32 %v121, 4294901760
    %322 = vmatmul.mubr.f32.gmra.mrb[0].mxu0 %v321
    %v323 = vpop.f32.mrb[0].mxu0
    %v324 = vadd.f32 %v230, %v323
    %v325 = vpop.f32.mrb[0].mxu0
    %326 = vdwg.mxu0
    %327 = vmatprep.subr.mxu0 0.0
    %v328 = vand.u32 %v125, 4294901760
    %v329 = vsub.f32 %v125, %v328
    %330 = vmatpush1.msra.mxu0 %v329
    %331 = vmatprep.subr.mxu0 0.0
    %332 = vmatpush1.msra.mxu0 0.0
    %333 = vmatprep.subr.mxu0 0.0
    %334 = vmatpush1.msra.mxu0 0.0
    %335 = vmatprep.subr.mxu0 0.0
    %336 = vmatpush1.msra.mxu0 0.0
    %337 = vmatprep.subr.mxu0 0.0
    %338 = vmatpush1.msra.mxu0 0.0
    %339 = vmatprep.subr.mxu0 0.0
    %340 = vmatpush1.msra.mxu0 0.0
    %341 = vmatprep.subr.mxu0 0.0
    %342 = vmatpush1.msra.mxu0 0.0
    %343 = vmatprep.subr.mxu0 0.0
    %344 = vmatpush1.msra.mxu0 0.0
    %345 = vmatprep.subr.mxu0 0.0
    %346 = vmatpush1.msra.mxu0 0.0
    %347 = vmatprep.subr.mxu0 0.0
    %348 = vmatpush1.msra.mxu0 0.0
    %349 = vmatprep.subr.mxu0 0.0
    %350 = vmatpush1.msra.mxu0 0.0
    %351 = vmatprep.subr.mxu0 0.0
    %352 = vmatpush1.msra.mxu0 0.0
    %353 = vmatprep.subr.mxu0 0.0
    %354 = vmatpush1.msra.mxu0 0.0
    %355 = vmatprep.subr.mxu0 0.0
    %356 = vmatpush1.msra.mxu0 0.0
    %357 = vmatprep.subr.mxu0 0.0
    %358 = vmatpush1.msra.mxu0 0.0
    %359 = vmatprep.subr.mxu0 0.0
    %360 = vmatpush1.msra.mxu0 0.0
    %361 = vmatprep.subr.mxu0 0.0
    %362 = vmatpush1.msra.mxu0 0.0
    %363 = vmatprep.subr.mxu0 0.0
    %364 = vmatpush1.msra.mxu0 0.0
    %365 = vmatprep.subr.mxu0 0.0
    %366 = vmatpush1.msra.mxu0 0.0
    %367 = vmatprep.subr.mxu0 0.0
    %368 = vmatpush1.msra.mxu0 0.0
    %369 = vmatprep.subr.mxu0 0.0
    %370 = vmatpush1.msra.mxu0 0.0
    %371 = vmatprep.subr.mxu0 0.0
    %372 = vmatpush1.msra.mxu0 0.0
    %373 = vmatprep.subr.mxu0 0.0
    %374 = vmatpush1.msra.mxu0 0.0
    %375 = vmatprep.subr.mxu0 0.0
    %376 = vmatpush1.msra.mxu0 0.0
    %377 = vmatprep.subr.mxu0 0.0
    %378 = vmatpush1.msra.mxu0 0.0
    %379 = vmatprep.subr.mxu0 0.0
    %380 = vmatpush1.msra.mxu0 0.0
    %381 = vmatprep.subr.mxu0 0.0
    %382 = vmatpush1.msra.mxu0 0.0
    %383 = vmatprep.subr.mxu0 0.0
    %384 = vmatpush1.msra.mxu0 0.0
    %385 = vmatprep.subr.mxu0 0.0
    %386 = vmatpush1.msra.mxu0 0.0
    %387 = vmatprep.subr.mxu0 0.0
    %388 = vmatpush1.msra.mxu0 0.0
    %389 = vmatprep.subr.mxu0 0.0
    %390 = vmatpush1.msra.mxu0 0.0
    %391 = vmatprep.subr.mxu0 0.0
    %392 = vmatpush1.msra.mxu0 0.0
    %393 = vmatprep.mubr.f32.mxu0 0.0
    %v394 = vand.u32 %v112, 4294901760
    %v395 = vsub.f32 %v112, %v394
    %396 = vmatmul.mubr.f32.gmra.mrb[0].mxu0 %v395
    %v397 = vpop.f32.mrb[0].mxu0
    %v398 = vadd.f32 %v306, %v397
    %v399 = vpop.f32.mrb[0].mxu0
    %400 = vmatprep.mubr.f32.mxu0 0.0
    %v401 = vand.u32 %v115, 4294901760
    %v402 = vsub.f32 %v115, %v401
    %403 = vmatmul.mubr.f32.gmra.mrb[0].mxu0 %v402
    %v404 = vpop.f32.mrb[0].mxu0
    %v405 = vadd.f32 %v312, %v404
    %v406 = vpop.f32.mrb[0].mxu0
    %407 = vmatprep.mubr.f32.mxu0 0.0
    %v408 = vand.u32 %v118, 4294901760
    %v409 = vsub.f32 %v118, %v408
    %410 = vmatmul.mubr.f32.gmra.mrb[0].mxu0 %v409
    %v411 = vpop.f32.mrb[0].mxu0
    %v412 = vadd.f32 %v318, %v411
    %v413 = vpop.f32.mrb[0].mxu0
    %414 = vmatprep.mubr.f32.mxu0 0.0
    %v415 = vand.u32 %v121, 4294901760
    %v416 = vsub.f32 %v121, %v415
    %417 = vmatmul.mubr.f32.gmra.mrb[0].mxu0 %v416
    %v418 = vpop.f32.mrb[0].mxu0
    %v419 = vadd.f32 %v324, %v418
    %v420 = vpop.f32.mrb[0].mxu0
    %421 = vdwg.mxu0
    %422 = vmatprep.subr.mxu0 0.0
    %v423 = vand.u32 %v125, 4294901760
    %424 = vmatpush1.msra.mxu0 %v423
    %425 = vmatprep.subr.mxu0 0.0
    %426 = vmatpush1.msra.mxu0 0.0
    %427 = vmatprep.subr.mxu0 0.0
    %428 = vmatpush1.msra.mxu0 0.0
    %429 = vmatprep.subr.mxu0 0.0
    %430 = vmatpush1.msra.mxu0 0.0
    %431 = vmatprep.subr.mxu0 0.0
    %432 = vmatpush1.msra.mxu0 0.0
    %433 = vmatprep.subr.mxu0 0.0
    %434 = vmatpush1.msra.mxu0 0.0
    %435 = vmatprep.subr.mxu0 0.0
    %436 = vmatpush1.msra.mxu0 0.0
    %437 = vmatprep.subr.mxu0 0.0
    %438 = vmatpush1.msra.mxu0 0.0
    %439 = vmatprep.subr.mxu0 0.0
    %440 = vmatpush1.msra.mxu0 0.0
    %441 = vmatprep.subr.mxu0 0.0
    %442 = vmatpush1.msra.mxu0 0.0
    %443 = vmatprep.subr.mxu0 0.0
    %444 = vmatpush1.msra.mxu0 0.0
    %445 = vmatprep.subr.mxu0 0.0
    %446 = vmatpush1.msra.mxu0 0.0
    %447 = vmatprep.subr.mxu0 0.0
    %448 = vmatpush1.msra.mxu0 0.0
    %449 = vmatprep.subr.mxu0 0.0
    %450 = vmatpush1.msra.mxu0 0.0
    %451 = vmatprep.subr.mxu0 0.0
    %452 = vmatpush1.msra.mxu0 0.0
    %453 = vmatprep.subr.mxu0 0.0
    %454 = vmatpush1.msra.mxu0 0.0
    %455 = vmatprep.subr.mxu0 0.0
    %456 = vmatpush1.msra.mxu0 0.0
    %457 = vmatprep.subr.mxu0 0.0
    %458 = vmatpush1.msra.mxu0 0.0
    %459 = vmatprep.subr.mxu0 0.0
    %460 = vmatpush1.msra.mxu0 0.0
    %461 = vmatprep.subr.mxu0 0.0
    %462 = vmatpush1.msra.mxu0 0.0
    %463 = vmatprep.subr.mxu0 0.0
    %464 = vmatpush1.msra.mxu0 0.0
    %465 = vmatprep.subr.mxu0 0.0
    %466 = vmatpush1.msra.mxu0 0.0
    %467 = vmatprep.subr.mxu0 0.0
    %468 = vmatpush1.msra.mxu0 0.0
    %469 = vmatprep.subr.mxu0 0.0
    %470 = vmatpush1.msra.mxu0 0.0
    %471 = vmatprep.subr.mxu0 0.0
    %472 = vmatpush1.msra.mxu0 0.0
    %473 = vmatprep.subr.mxu0 0.0
    %474 = vmatpush1.msra.mxu0 0.0
    %475 = vmatprep.subr.mxu0 0.0
    %476 = vmatpush1.msra.mxu0 0.0
    %477 = vmatprep.subr.mxu0 0.0
    %478 = vmatpush1.msra.mxu0 0.0
    %479 = vmatprep.subr.mxu0 0.0
    %480 = vmatpush1.msra.mxu0 0.0
    %481 = vmatprep.subr.mxu0 0.0
    %482 = vmatpush1.msra.mxu0 0.0
    %483 = vmatprep.subr.mxu0 0.0
    %484 = vmatpush1.msra.mxu0 0.0
    %485 = vmatprep.subr.mxu0 0.0
    %486 = vmatpush1.msra.mxu0 0.0
    %487 = vmatprep.mubr.f32.mxu0 0.0
    %v488 = vand.u32 %v112, 4294901760
    %v489 = vsub.f32 %v112, %v488
    %v490 = vand.u32 %v489, 4294901760
    %491 = vmatmul.mubr.f32.gmra.mrb[0].mxu0 %v490
    %v492 = vpop.f32.mrb[0].mxu0
    %v493 = vadd.f32 %v398, %v492
    %v494 = vpop.f32.mrb[0].mxu0
    %495 = vmatprep.mubr.f32.mxu0 0.0
    %v496 = vand.u32 %v115, 4294901760
    %v497 = vsub.f32 %v115, %v496
    %v498 = vand.u32 %v497, 4294901760
    %499 = vmatmul.mubr.f32.gmra.mrb[0].mxu0 %v498
    %v500 = vpop.f32.mrb[0].mxu0
    %v501 = vadd.f32 %v405, %v500
    %v502 = vpop.f32.mrb[0].mxu0
    %503 = vmatprep.mubr.f32.mxu0 0.0
    %v504 = vand.u32 %v118, 4294901760
    %v505 = vsub.f32 %v118, %v504
    %v506 = vand.u32 %v505, 4294901760
    %507 = vmatmul.mubr.f32.gmra.mrb[0].mxu0 %v506
    %v508 = vpop.f32.mrb[0].mxu0
    %v509 = vadd.f32 %v412, %v508
    %v510 = vpop.f32.mrb[0].mxu0
    %511 = vmatprep.mubr.f32.mxu0 0.0
    %v512 = vand.u32 %v121, 4294901760
    %v513 = vsub.f32 %v121, %v512
    %v514 = vand.u32 %v513, 4294901760
    %515 = vmatmul.mubr.f32.gmra.mrb[0].mxu0 %v514
    %v516 = vpop.f32.mrb[0].mxu0
    %v517 = vadd.f32 %v419, %v516
    %v518 = vpop.f32.mrb[0].mxu0
    %519 = vdwg.mxu0
    %520 = vmatprep.subr.mxu0 0.0
    %v521 = vand.u32 %v125, 4294901760
    %v522 = vsub.f32 %v125, %v521
    %v523 = vand.u32 %v522, 4294901760
    %524 = vmatpush1.msra.mxu0 %v523
    %525 = vmatprep.subr.mxu0 0.0
    %526 = vmatpush1.msra.mxu0 0.0
    %527 = vmatprep.subr.mxu0 0.0
    %528 = vmatpush1.msra.mxu0 0.0
    %529 = vmatprep.subr.mxu0 0.0
    %530 = vmatpush1.msra.mxu0 0.0
    %531 = vmatprep.subr.mxu0 0.0
    %532 = vmatpush1.msra.mxu0 0.0
    %533 = vmatprep.subr.mxu0 0.0
    %534 = vmatpush1.msra.mxu0 0.0
    %535 = vmatprep.subr.mxu0 0.0
    %536 = vmatpush1.msra.mxu0 0.0
    %537 = vmatprep.subr.mxu0 0.0
    %538 = vmatpush1.msra.mxu0 0.0
    %539 = vmatprep.subr.mxu0 0.0
    %540 = vmatpush1.msra.mxu0 0.0
    %541 = vmatprep.subr.mxu0 0.0
    %542 = vmatpush1.msra.mxu0 0.0
    %543 = vmatprep.subr.mxu0 0.0
    %544 = vmatpush1.msra.mxu0 0.0
    %545 = vmatprep.subr.mxu0 0.0
    %546 = vmatpush1.msra.mxu0 0.0
    %547 = vmatprep.subr.mxu0 0.0
    %548 = vmatpush1.msra.mxu0 0.0
    %549 = vmatprep.subr.mxu0 0.0
    %550 = vmatpush1.msra.mxu0 0.0
    %551 = vmatprep.subr.mxu0 0.0
    %552 = vmatpush1.msra.mxu0 0.0
    %553 = vmatprep.subr.mxu0 0.0
    %554 = vmatpush1.msra.mxu0 0.0
    %555 = vmatprep.subr.mxu0 0.0
    %556 = vmatpush1.msra.mxu0 0.0
    %557 = vmatprep.subr.mxu0 0.0
    %558 = vmatpush1.msra.mxu0 0.0
    %559 = vmatprep.subr.mxu0 0.0
    %560 = vmatpush1.msra.mxu0 0.0
    %561 = vmatprep.subr.mxu0 0.0
    %562 = vmatpush1.msra.mxu0 0.0
    %563 = vmatprep.subr.mxu0 0.0
    %564 = vmatpush1.msra.mxu0 0.0
    %565 = vmatprep.subr.mxu0 0.0
    %566 = vmatpush1.msra.mxu0 0.0
    %567 = vmatprep.subr.mxu0 0.0
    %568 = vmatpush1.msra.mxu0 0.0
    %569 = vmatprep.subr.mxu0 0.0
    %570 = vmatpush1.msra.mxu0 0.0
    %571 = vmatprep.subr.mxu0 0.0
    %572 = vmatpush1.msra.mxu0 0.0
    %573 = vmatprep.subr.mxu0 0.0
    %574 = vmatpush1.msra.mxu0 0.0
    %575 = vmatprep.subr.mxu0 0.0
    %576 = vmatpush1.msra.mxu0 0.0
    %577 = vmatprep.subr.mxu0 0.0
    %578 = vmatpush1.msra.mxu0 0.0
    %579 = vmatprep.subr.mxu0 0.0
    %580 = vmatpush1.msra.mxu0 0.0
    %581 = vmatprep.subr.mxu0 0.0
    %582 = vmatpush1.msra.mxu0 0.0
    %583 = vmatprep.subr.mxu0 0.0
    %584 = vmatpush1.msra.mxu0 0.0
    %585 = vmatprep.subr.mxu0 0.0
    %586 = vmatpush1.msra.mxu0 0.0
    %587 = vmatprep.mubr.f32.mxu0 0.0
    %v588 = vand.u32 %v112, 4294901760
    %589 = vmatmul.mubr.f32.gmra.mrb[0].mxu0 %v588
    %v590 = vpop.f32.mrb[0].mxu0
    %v591 = vadd.f32 %v493, %v590
    %v592 = vpop.f32.mrb[0].mxu0
    %593 = vmatprep.mubr.f32.mxu0 0.0
    %v594 = vand.u32 %v115, 4294901760
    %595 = vmatmul.mubr.f32.gmra.mrb[0].mxu0 %v594
    %v596 = vpop.f32.mrb[0].mxu0
    %v597 = vadd.f32 %v501, %v596
    %v598 = vpop.f32.mrb[0].mxu0
    %599 = vmatprep.mubr.f32.mxu0 0.0
    %v600 = vand.u32 %v118, 4294901760
    %601 = vmatmul.mubr.f32.gmra.mrb[0].mxu0 %v600
    %v602 = vpop.f32.mrb[0].mxu0
    %v603 = vadd.f32 %v509, %v602
    %v604 = vpop.f32.mrb[0].mxu0
    %605 = vmatprep.mubr.f32.mxu0 0.0
    %v606 = vand.u32 %v121, 4294901760
    %607 = vmatmul.mubr.f32.gmra.mrb[0].mxu0 %v606
    %v608 = vpop.f32.mrb[0].mxu0
    %v609 = vadd.f32 %v517, %v608
    %v610 = vpop.f32.mrb[0].mxu0
    %611 = vdwg.mxu0
    %612 = vmatprep.subr.mxu0 0.0
    %v613 = vand.u32 %v125, 4294901760
    %614 = vmatpush1.msra.mxu0 %v613
    %615 = vmatprep.subr.mxu0 0.0
    %616 = vmatpush1.msra.mxu0 0.0
    %617 = vmatprep.subr.mxu0 0.0
    %618 = vmatpush1.msra.mxu0 0.0
    %619 = vmatprep.subr.mxu0 0.0
    %620 = vmatpush1.msra.mxu0 0.0
    %621 = vmatprep.subr.mxu0 0.0
    %622 = vmatpush1.msra.mxu0 0.0
    %623 = vmatprep.subr.mxu0 0.0
    %624 = vmatpush1.msra.mxu0 0.0
    %625 = vmatprep.subr.mxu0 0.0
    %626 = vmatpush1.msra.mxu0 0.0
    %627 = vmatprep.subr.mxu0 0.0
    %628 = vmatpush1.msra.mxu0 0.0
    %629 = vmatprep.subr.mxu0 0.0
    %630 = vmatpush1.msra.mxu0 0.0
    %631 = vmatprep.subr.mxu0 0.0
    %632 = vmatpush1.msra.mxu0 0.0
    %633 = vmatprep.subr.mxu0 0.0
    %634 = vmatpush1.msra.mxu0 0.0
    %635 = vmatprep.subr.mxu0 0.0
    %636 = vmatpush1.msra.mxu0 0.0
    %637 = vmatprep.subr.mxu0 0.0
    %638 = vmatpush1.msra.mxu0 0.0
    %639 = vmatprep.subr.mxu0 0.0
    %640 = vmatpush1.msra.mxu0 0.0
    %641 = vmatprep.subr.mxu0 0.0
    %642 = vmatpush1.msra.mxu0 0.0
    %643 = vmatprep.subr.mxu0 0.0
    %644 = vmatpush1.msra.mxu0 0.0
    %645 = vmatprep.subr.mxu0 0.0
    %646 = vmatpush1.msra.mxu0 0.0
    %647 = vmatprep.subr.mxu0 0.0
    %648 = vmatpush1.msra.mxu0 0.0
    %649 = vmatprep.subr.mxu0 0.0
    %650 = vmatpush1.msra.mxu0 0.0
    %651 = vmatprep.subr.mxu0 0.0
    %652 = vmatpush1.msra.mxu0 0.0
    %653 = vmatprep.subr.mxu0 0.0
    %654 = vmatpush1.msra.mxu0 0.0
    %655 = vmatprep.subr.mxu0 0.0
    %656 = vmatpush1.msra.mxu0 0.0
    %657 = vmatprep.subr.mxu0 0.0
    %658 = vmatpush1.msra.mxu0 0.0
    %659 = vmatprep.subr.mxu0 0.0
    %660 = vmatpush1.msra.mxu0 0.0
    %661 = vmatprep.subr.mxu0 0.0
    %662 = vmatpush1.msra.mxu0 0.0
    %663 = vmatprep.subr.mxu0 0.0
    %664 = vmatpush1.msra.mxu0 0.0
    %665 = vmatprep.subr.mxu0 0.0
    %666 = vmatpush1.msra.mxu0 0.0
    %667 = vmatprep.subr.mxu0 0.0
    %668 = vmatpush1.msra.mxu0 0.0
    %669 = vmatprep.subr.mxu0 0.0
    %670 = vmatpush1.msra.mxu0 0.0
    %671 = vmatprep.subr.mxu0 0.0
    %672 = vmatpush1.msra.mxu0 0.0
    %673 = vmatprep.subr.mxu0 0.0
    %674 = vmatpush1.msra.mxu0 0.0
    %675 = vmatprep.subr.mxu0 0.0
    %676 = vmatpush1.msra.mxu0 0.0
    %677 = vmatprep.mubr.f32.mxu0 0.0
    %v678 = vand.u32 %v112, 4294901760
    %679 = vmatmul.mubr.f32.gmra.mrb[0].mxu0 %v678
    %v680 = vpop.f32.mrb[0].mxu0
    %v681 = vadd.f32 %v591, %v680
    %v682 = vpop.f32.mrb[0].mxu0
    %683 = vmatprep.mubr.f32.mxu0 0.0
    %v684 = vand.u32 %v115, 4294901760
    %685 = vmatmul.mubr.f32.gmra.mrb[0].mxu0 %v684
    %v686 = vpop.f32.mrb[0].mxu0
    %v687 = vadd.f32 %v597, %v686
    %v688 = vpop.f32.mrb[0].mxu0
    %689 = vmatprep.mubr.f32.mxu0 0.0
    %v690 = vand.u32 %v118, 4294901760
    %691 = vmatmul.mubr.f32.gmra.mrb[0].mxu0 %v690
    %v692 = vpop.f32.mrb[0].mxu0
    %v693 = vadd.f32 %v603, %v692
    %v694 = vpop.f32.mrb[0].mxu0
    %695 = vmatprep.mubr.f32.mxu0 0.0
    %v696 = vand.u32 %v121, 4294901760
    %697 = vmatmul.mubr.f32.gmra.mrb[0].mxu0 %v696
    %v698 = vpop.f32.mrb[0].mxu0
    %v699 = vadd.f32 %v609, %v698
    %v700 = vpop.f32.mrb[0].mxu0
    %701 = vdwg.mxu0
    %v702 = vld [vmem:[%s3] sm:$0x1]
    %v703 = vld [vmem:[%s3 + $0x1] sm:$0x1]
    %v704 = vld [vmem:[%s3 + $0x2] sm:$0x1]
    %v705 = vld [vmem:[%s3 + $0x3] sm:$0x1]
    %v710 = vlaneseq
    %v711 = vshrl.u32 %v710, 7
    %v712 = vsub.s32 0, %v711
    %v713 = vrot.slane %v702, %v712
    %v714 = vlaneseq
    %v715 = vshrl.u32 %v714, 7
    %v716 = vsub.s32 0, %v715
    %v717 = vrot.slane %v703, %v716
    %v718 = vlaneseq
    %v719 = vshrl.u32 %v718, 7
    %v720 = vsub.s32 0, %v719
    %v721 = vrot.slane %v704, %v720
    %v722 = vlaneseq
    %v723 = vshrl.u32 %v722, 7
    %v724 = vsub.s32 0, %v723
    %v725 = vrot.slane %v705, %v724
    %v730 = vmul.f32 %v681, %v713
    %v731 = vmul.f32 %v687, %v717
    %v732 = vmul.f32 %v693, %v721
    %v733 = vmul.f32 %v699, %v725
    %v734 = vld [vmem:[%s4] sm:$0x1]
    %v735 = vld [vmem:[%s4 + $0x1] sm:$0x1]
    %v736 = vld [vmem:[%s4 + $0x2] sm:$0x1]
    %v737 = vld [vmem:[%s4 + $0x3] sm:$0x1]
    %v742 = vlaneseq
    %v743 = vshrl.u32 %v742, 7
    %v744 = vsub.s32 0, %v743
    %v745 = vrot.slane %v734, %v744
    %v746 = vlaneseq
    %v747 = vshrl.u32 %v746, 7
    %v748 = vsub.s32 0, %v747
    %v749 = vrot.slane %v735, %v748
    %v750 = vlaneseq
    %v751 = vshrl.u32 %v750, 7
    %v752 = vsub.s32 0, %v751
    %v753 = vrot.slane %v736, %v752
    %v754 = vlaneseq
    %v755 = vshrl.u32 %v754, 7
    %v756 = vsub.s32 0, %v755
    %v757 = vrot.slane %v737, %v756
    %v762 = vadd.f32 %v730, %v745
    %v763 = vadd.f32 %v731, %v749
    %v764 = vadd.f32 %v732, %v753
    %v765 = vadd.f32 %v733, %v757
    %v766 = vmax.f32 %v762, 0.0
    %v767 = vmax.f32 %v763, 0.0
    %v768 = vmax.f32 %v764, 0.0
    %v769 = vmax.f32 %v765, 0.0
    %v770 = vld [vmem:[%s6] sm:$0x1]
    %v771 = vld [vmem:[%s6 + $0x1] sm:$0x1]
    %v772 = vld [vmem:[%s6 + $0x2] sm:$0x1]
    %v773 = vld [vmem:[%s6 + $0x3] sm:$0x1]
    %v778 = vlaneseq
    %v779 = vshrl.u32 %v778, 7
    %v780 = vsub.s32 0, %v779
    %v781 = vrot.slane %v770, %v780
    %v782 = vlaneseq
    %v783 = vshrl.u32 %v782, 7
    %v784 = vsub.s32 0, %v783
    %v785 = vrot.slane %v771, %v784
    %v786 = vlaneseq
    %v787 = vshrl.u32 %v786, 7
    %v788 = vsub.s32 0, %v787
    %v789 = vrot.slane %v772, %v788
    %v790 = vlaneseq
    %v791 = vshrl.u32 %v790, 7
    %v792 = vsub.s32 0, %v791
    %v793 = vrot.slane %v773, %v792
    %v798 = vmul.f32 %v766, %v781
    %v799 = vmul.f32 %v767, %v785
    %v800 = vmul.f32 %v768, %v789
    %v801 = vmul.f32 %v769, %v793
    %v802 = vld [vmem:[#allocation2] sm:$0xff]
    %v803 = vld [vmem:[#allocation2 + $0x8] sm:$0xff]
    %v804 = vld [vmem:[#allocation2 + $0x10] sm:$0xff]
    %v805 = vld [vmem:[#allocation2 + $0x18] sm:$0xff]
    %v806 = vld [vmem:[#allocation2 + $0x20] sm:$0xff]
    %v807 = vld [vmem:[#allocation2 + $0x28] sm:$0xff]
    %v808 = vld [vmem:[#allocation2 + $0x30] sm:$0xff]
    %v809 = vld [vmem:[#allocation2 + $0x38] sm:$0xff]
    %v810 = vld [vmem:[#allocation2 + $0x40] sm:$0xff]
    %v811 = vld [vmem:[#allocation2 + $0x48] sm:$0xff]
    %v812 = vld [vmem:[#allocation2 + $0x50] sm:$0xff]
    %v813 = vld [vmem:[#allocation2 + $0x58] sm:$0xff]
    %v814 = vld [vmem:[#allocation2 + $0x60] sm:$0xff]
    %v815 = vld [vmem:[#allocation2 + $0x68] sm:$0xff]
    %v816 = vld [vmem:[#allocation2 + $0x70] sm:$0xff]
    %v817 = vld [vmem:[#allocation2 + $0x78] sm:$0xff]
    %818 = vmatprep.subr.mxu0 0.0
    %v819 = vand.u32 %v802, 4294901760
    %820 = vmatpush1.msra.mxu0 %v819
    %821 = vmatprep.subr.mxu0 0.0
    %v822 = vand.u32 %v803, 4294901760
    %823 = vmatpush1.msra.mxu0 %v822
    %824 = vmatprep.subr.mxu0 0.0
    %v825 = vand.u32 %v804, 4294901760
    %826 = vmatpush1.msra.mxu0 %v825
    %827 = vmatprep.subr.mxu0 0.0
    %v828 = vand.u32 %v805, 4294901760
    %829 = vmatpush1.msra.mxu0 %v828
    %830 = vmatprep.subr.mxu0 0.0
    %v831 = vand.u32 %v806, 4294901760
    %832 = vmatpush1.msra.mxu0 %v831
    %833 = vmatprep.subr.mxu0 0.0
    %v834 = vand.u32 %v807, 4294901760
    %835 = vmatpush1.msra.mxu0 %v834
    %836 = vmatprep.subr.mxu0 0.0
    %v837 = vand.u32 %v808, 4294901760
    %838 = vmatpush1.msra.mxu0 %v837
    %839 = vmatprep.subr.mxu0 0.0
    %v840 = vand.u32 %v809, 4294901760
    %841 = vmatpush1.msra.mxu0 %v840
    %842 = vmatprep.subr.mxu0 0.0
    %v843 = vand.u32 %v810, 4294901760
    %844 = vmatpush1.msra.mxu0 %v843
    %845 = vmatprep.subr.mxu0 0.0
    %v846 = vand.u32 %v811, 4294901760
    %847 = vmatpush1.msra.mxu0 %v846
    %848 = vmatprep.subr.mxu0 0.0
    %v849 = vand.u32 %v812, 4294901760
    %850 = vmatpush1.msra.mxu0 %v849
    %851 = vmatprep.subr.mxu0 0.0
    %v852 = vand.u32 %v813, 4294901760
    %853 = vmatpush1.msra.mxu0 %v852
    %854 = vmatprep.subr.mxu0 0.0
    %v855 = vand.u32 %v814, 4294901760
    %856 = vmatpush1.msra.mxu0 %v855
    %857 = vmatprep.subr.mxu0 0.0
    %v858 = vand.u32 %v815, 4294901760
    %859 = vmatpush1.msra.mxu0 %v858
    %860 = vmatprep.subr.mxu0 0.0
    %v861 = vand.u32 %v816, 4294901760
    %862 = vmatpush1.msra.mxu0 %v861
    %863 = vmatprep.subr.mxu0 0.0
    %v864 = vand.u32 %v817, 4294901760
    %865 = vmatpush1.msra.mxu0 %v864
    %866 = vmatprep.subr.mxu0 0.0
    %867 = vmatpush1.msra.mxu0 0.0
    %868 = vmatprep.subr.mxu0 0.0
    %869 = vmatpush1.msra.mxu0 0.0
    %870 = vmatprep.subr.mxu0 0.0
    %871 = vmatpush1.msra.mxu0 0.0
    %872 = vmatprep.subr.mxu0 0.0
    %873 = vmatpush1.msra.mxu0 0.0
    %874 = vmatprep.subr.mxu0 0.0
    %875 = vmatpush1.msra.mxu0 0.0
    %876 = vmatprep.subr.mxu0 0.0
    %877 = vmatpush1.msra.mxu0 0.0
    %878 = vmatprep.subr.mxu0 0.0
    %879 = vmatpush1.msra.mxu0 0.0
    %880 = vmatprep.subr.mxu0 0.0
    %881 = vmatpush1.msra.mxu0 0.0
    %882 = vmatprep.subr.mxu0 0.0
    %883 = vmatpush1.msra.mxu0 0.0
    %884 = vmatprep.subr.mxu0 0.0
    %885 = vmatpush1.msra.mxu0 0.0
    %886 = vmatprep.subr.mxu0 0.0
    %887 = vmatpush1.msra.mxu0 0.0
    %888 = vmatprep.subr.mxu0 0.0
    %889 = vmatpush1.msra.mxu0 0.0
    %890 = vmatprep.subr.mxu0 0.0
    %891 = vmatpush1.msra.mxu0 0.0
    %892 = vmatprep.subr.mxu0 0.0
    %893 = vmatpush1.msra.mxu0 0.0
    %894 = vmatprep.subr.mxu0 0.0
    %895 = vmatpush1.msra.mxu0 0.0
    %896 = vmatprep.subr.mxu0 0.0
    %897 = vmatpush1.msra.mxu0 0.0
    %898 = vmatprep.mubr.f32.mxu0 0.0
    %v899 = vand.u32 %v798, 4294901760
    %v900 = vsub.f32 %v798, %v899
    %v901 = vand.u32 %v900, 4294901760
    %v902 = vsub.f32 %v900, %v901
    %v903 = vand.u32 %v902, 4294901760
    %904 = vmatmul.mubr.f32.gmra.mrb[0].mxu0 %v903
    %v905 = vpop.f32.mrb[0].mxu0
    %v906 = vadd.f32 0.0, %v905
    %v907 = vpop.f32.mrb[0].mxu0
    %908 = vmatprep.mubr.f32.mxu0 0.0
    %v909 = vand.u32 %v799, 4294901760
    %v910 = vsub.f32 %v799, %v909
    %v911 = vand.u32 %v910, 4294901760
    %v912 = vsub.f32 %v910, %v911
    %v913 = vand.u32 %v912, 4294901760
    %914 = vmatmul.mubr.f32.gmra.mrb[0].mxu0 %v913
    %v915 = vpop.f32.mrb[0].mxu0
    %v916 = vadd.f32 0.0, %v915
    %v917 = vpop.f32.mrb[0].mxu0
    %918 = vmatprep.mubr.f32.mxu0 0.0
    %v919 = vand.u32 %v800, 4294901760
    %v920 = vsub.f32 %v800, %v919
    %v921 = vand.u32 %v920, 4294901760
    %v922 = vsub.f32 %v920, %v921
    %v923 = vand.u32 %v922, 4294901760
    %924 = vmatmul.mubr.f32.gmra.mrb[0].mxu0 %v923
    %v925 = vpop.f32.mrb[0].mxu0
    %v926 = vadd.f32 0.0, %v925
    %v927 = vpop.f32.mrb[0].mxu0
    %928 = vmatprep.mubr.f32.mxu0 0.0
    %v929 = vand.u32 %v801, 4294901760
    %v930 = vsub.f32 %v801, %v929
    %v931 = vand.u32 %v930, 4294901760
    %v932 = vsub.f32 %v930, %v931
    %v933 = vand.u32 %v932, 4294901760
    %934 = vmatmul.mubr.f32.gmra.mrb[0].mxu0 %v933
    %v935 = vpop.f32.mrb[0].mxu0
    %v936 = vadd.f32 0.0, %v935
    %v937 = vpop.f32.mrb[0].mxu0
    %938 = vdwg.mxu0
    %939 = vmatprep.subr.mxu0 0.0
    %v940 = vand.u32 %v802, 4294901760
    %v941 = vsub.f32 %v802, %v940
    %v942 = vand.u32 %v941, 4294901760
    %v943 = vsub.f32 %v941, %v942
    %v944 = vand.u32 %v943, 4294901760
    %945 = vmatpush1.msra.mxu0 %v944
    %946 = vmatprep.subr.mxu0 0.0
    %v947 = vand.u32 %v803, 4294901760
    %v948 = vsub.f32 %v803, %v947
    %v949 = vand.u32 %v948, 4294901760
    %v950 = vsub.f32 %v948, %v949
    %v951 = vand.u32 %v950, 4294901760
    %952 = vmatpush1.msra.mxu0 %v951
    %953 = vmatprep.subr.mxu0 0.0
    %v954 = vand.u32 %v804, 4294901760
    %v955 = vsub.f32 %v804, %v954
    %v956 = vand.u32 %v955, 4294901760
    %v957 = vsub.f32 %v955, %v956
    %v958 = vand.u32 %v957, 4294901760
    %959 = vmatpush1.msra.mxu0 %v958
    %960 = vmatprep.subr.mxu0 0.0
    %v961 = vand.u32 %v805, 4294901760
    %v962 = vsub.f32 %v805, %v961
    %v963 = vand.u32 %v962, 4294901760
    %v964 = vsub.f32 %v962, %v963
    %v965 = vand.u32 %v964, 4294901760
    %966 = vmatpush1.msra.mxu0 %v965
    %967 = vmatprep.subr.mxu0 0.0
    %v968 = vand.u32 %v806, 4294901760
    %v969 = vsub.f32 %v806, %v968
    %v970 = vand.u32 %v969, 4294901760
    %v971 = vsub.f32 %v969, %v970
    %v972 = vand.u32 %v971, 4294901760
    %973 = vmatpush1.msra.mxu0 %v972
    %974 = vmatprep.subr.mxu0 0.0
    %v975 = vand.u32 %v807, 4294901760
    %v976 = vsub.f32 %v807, %v975
    %v977 = vand.u32 %v976, 4294901760
    %v978 = vsub.f32 %v976, %v977
    %v979 = vand.u32 %v978, 4294901760
    %980 = vmatpush1.msra.mxu0 %v979
    %981 = vmatprep.subr.mxu0 0.0
    %v982 = vand.u32 %v808, 4294901760
    %v983 = vsub.f32 %v808, %v982
    %v984 = vand.u32 %v983, 4294901760
    %v985 = vsub.f32 %v983, %v984
    %v986 = vand.u32 %v985, 4294901760
    %987 = vmatpush1.msra.mxu0 %v986
    %988 = vmatprep.subr.mxu0 0.0
    %v989 = vand.u32 %v809, 4294901760
    %v990 = vsub.f32 %v809, %v989
    %v991 = vand.u32 %v990, 4294901760
    %v992 = vsub.f32 %v990, %v991
    %v993 = vand.u32 %v992, 4294901760
    %994 = vmatpush1.msra.mxu0 %v993
    %995 = vmatprep.subr.mxu0 0.0
    %v996 = vand.u32 %v810, 4294901760
    %v997 = vsub.f32 %v810, %v996
    %v998 = vand.u32 %v997, 4294901760
    %v999 = vsub.f32 %v997, %v998
    %v1000 = vand.u32 %v999, 4294901760
    %1001 = vmatpush1.msra.mxu0 %v1000
    %1002 = vmatprep.subr.mxu0 0.0
    %v1003 = vand.u32 %v811, 4294901760
    %v1004 = vsub.f32 %v811, %v1003
    %v1005 = vand.u32 %v1004, 4294901760
    %v1006 = vsub.f32 %v1004, %v1005
    %v1007 = vand.u32 %v1006, 4294901760
    %1008 = vmatpush1.msra.mxu0 %v1007
    %1009 = vmatprep.subr.mxu0 0.0
    %v1010 = vand.u32 %v812, 4294901760
    %v1011 = vsub.f32 %v812, %v1010
    %v1012 = vand.u32 %v1011, 4294901760
    %v1013 = vsub.f32 %v1011, %v1012
    %v1014 = vand.u32 %v1013, 4294901760
    %1015 = vmatpush1.msra.mxu0 %v1014
    %1016 = vmatprep.subr.mxu0 0.0
    %v1017 = vand.u32 %v813, 4294901760
    %v1018 = vsub.f32 %v813, %v1017
    %v1019 = vand.u32 %v1018, 4294901760
    %v1020 = vsub.f32 %v1018, %v1019
    %v1021 = vand.u32 %v1020, 4294901760
    %1022 = vmatpush1.msra.mxu0 %v1021
    %1023 = vmatprep.subr.mxu0 0.0
    %v1024 = vand.u32 %v814, 4294901760
    %v1025 = vsub.f32 %v814, %v1024
    %v1026 = vand.u32 %v1025, 4294901760
    %v1027 = vsub.f32 %v1025, %v1026
    %v1028 = vand.u32 %v1027, 4294901760
    %1029 = vmatpush1.msra.mxu0 %v1028
    %1030 = vmatprep.subr.mxu0 0.0
    %v1031 = vand.u32 %v815, 4294901760
    %v1032 = vsub.f32 %v815, %v1031
    %v1033 = vand.u32 %v1032, 4294901760
    %v1034 = vsub.f32 %v1032, %v1033
    %v1035 = vand.u32 %v1034, 4294901760
    %1036 = vmatpush1.msra.mxu0 %v1035
    %1037 = vmatprep.subr.mxu0 0.0
    %v1038 = vand.u32 %v816, 4294901760
    %v1039 = vsub.f32 %v816, %v1038
    %v1040 = vand.u32 %v1039, 4294901760
    %v1041 = vsub.f32 %v1039, %v1040
    %v1042 = vand.u32 %v1041, 4294901760
    %1043 = vmatpush1.msra.mxu0 %v1042
    %1044 = vmatprep.subr.mxu0 0.0
    %v1045 = vand.u32 %v817, 4294901760
    %v1046 = vsub.f32 %v817, %v1045
    %v1047 = vand.u32 %v1046, 4294901760
    %v1048 = vsub.f32 %v1046, %v1047
    %v1049 = vand.u32 %v1048, 4294901760
    %1050 = vmatpush1.msra.mxu0 %v1049
    %1051 = vmatprep.subr.mxu0 0.0
    %1052 = vmatpush1.msra.mxu0 0.0
    %1053 = vmatprep.subr.mxu0 0.0
    %1054 = vmatpush1.msra.mxu0 0.0
    %1055 = vmatprep.subr.mxu0 0.0
    %1056 = vmatpush1.msra.mxu0 0.0
    %1057 = vmatprep.subr.mxu0 0.0
    %1058 = vmatpush1.msra.mxu0 0.0
    %1059 = vmatprep.subr.mxu0 0.0
    %1060 = vmatpush1.msra.mxu0 0.0
    %1061 = vmatprep.subr.mxu0 0.0
    %1062 = vmatpush1.msra.mxu0 0.0
    %1063 = vmatprep.subr.mxu0 0.0
    %1064 = vmatpush1.msra.mxu0 0.0
    %1065 = vmatprep.subr.mxu0 0.0
    %1066 = vmatpush1.msra.mxu0 0.0
    %1067 = vmatprep.subr.mxu0 0.0
    %1068 = vmatpush1.msra.mxu0 0.0
    %1069 = vmatprep.subr.mxu0 0.0
    %1070 = vmatpush1.msra.mxu0 0.0
    %1071 = vmatprep.subr.mxu0 0.0
    %1072 = vmatpush1.msra.mxu0 0.0
    %1073 = vmatprep.subr.mxu0 0.0
    %1074 = vmatpush1.msra.mxu0 0.0
    %1075 = vmatprep.subr.mxu0 0.0
    %1076 = vmatpush1.msra.mxu0 0.0
    %1077 = vmatprep.subr.mxu0 0.0
    %1078 = vmatpush1.msra.mxu0 0.0
    %1079 = vmatprep.subr.mxu0 0.0
    %1080 = vmatpush1.msra.mxu0 0.0
    %1081 = vmatprep.subr.mxu0 0.0
    %1082 = vmatpush1.msra.mxu0 0.0
    %1083 = vmatprep.mubr.f32.mxu0 0.0
    %v1084 = vand.u32 %v798, 4294901760
    %1085 = vmatmul.mubr.f32.gmra.mrb[0].mxu0 %v1084
    %v1086 = vpop.f32.mrb[0].mxu0
    %v1087 = vadd.f32 %v906, %v1086
    %v1088 = vpop.f32.mrb[0].mxu0
    %1089 = vmatprep.mubr.f32.mxu0 0.0
    %v1090 = vand.u32 %v799, 4294901760
    %1091 = vmatmul.mubr.f32.gmra.mrb[0].mxu0 %v1090
    %v1092 = vpop.f32.mrb[0].mxu0
    %v1093 = vadd.f32 %v916, %v1092
    %v1094 = vpop.f32.mrb[0].mxu0
    %1095 = vmatprep.mubr.f32.mxu0 0.0
    %v1096 = vand.u32 %v800, 4294901760
    %1097 = vmatmul.mubr.f32.gmra.mrb[0].mxu0 %v1096
    %v1098 = vpop.f32.mrb[0].mxu0
    %v1099 = vadd.f32 %v926, %v1098
    %v1100 = vpop.f32.mrb[0].mxu0
    %1101 = vmatprep.mubr.f32.mxu0 0.0
    %v1102 = vand.u32 %v801, 4294901760
    %1103 = vmatmul.mubr.f32.gmra.mrb[0].mxu0 %v1102
    %v1104 = vpop.f32.mrb[0].mxu0
    %v1105 = vadd.f32 %v936, %v1104
    %v1106 = vpop.f32.mrb[0].mxu0
    %1107 = vdwg.mxu0
    %1108 = vmatprep.subr.mxu0 0.0
    %v1109 = vand.u32 %v802, 4294901760
    %v1110 = vsub.f32 %v802, %v1109
    %1111 = vmatpush1.msra.mxu0 %v1110
    %1112 = vmatprep.subr.mxu0 0.0
    %v1113 = vand.u32 %v803, 4294901760
    %v1114 = vsub.f32 %v803, %v1113
    %1115 = vmatpush1.msra.mxu0 %v1114
    %1116 = vmatprep.subr.mxu0 0.0
    %v1117 = vand.u32 %v804, 4294901760
    %v1118 = vsub.f32 %v804, %v1117
    %1119 = vmatpush1.msra.mxu0 %v1118
    %1120 = vmatprep.subr.mxu0 0.0
    %v1121 = vand.u32 %v805, 4294901760
    %v1122 = vsub.f32 %v805, %v1121
    %1123 = vmatpush1.msra.mxu0 %v1122
    %1124 = vmatprep.subr.mxu0 0.0
    %v1125 = vand.u32 %v806, 4294901760
    %v1126 = vsub.f32 %v806, %v1125
    %1127 = vmatpush1.msra.mxu0 %v1126
    %1128 = vmatprep.subr.mxu0 0.0
    %v1129 = vand.u32 %v807, 4294901760
    %v1130 = vsub.f32 %v807, %v1129
    %1131 = vmatpush1.msra.mxu0 %v1130
    %1132 = vmatprep.subr.mxu0 0.0
    %v1133 = vand.u32 %v808, 4294901760
    %v1134 = vsub.f32 %v808, %v1133
    %1135 = vmatpush1.msra.mxu0 %v1134
    %1136 = vmatprep.subr.mxu0 0.0
    %v1137 = vand.u32 %v809, 4294901760
    %v1138 = vsub.f32 %v809, %v1137
    %1139 = vmatpush1.msra.mxu0 %v1138
    %1140 = vmatprep.subr.mxu0 0.0
    %v1141 = vand.u32 %v810, 4294901760
    %v1142 = vsub.f32 %v810, %v1141
    %1143 = vmatpush1.msra.mxu0 %v1142
    %1144 = vmatprep.subr.mxu0 0.0
    %v1145 = vand.u32 %v811, 4294901760
    %v1146 = vsub.f32 %v811, %v1145
    %1147 = vmatpush1.msra.mxu0 %v1146
    %1148 = vmatprep.subr.mxu0 0.0
    %v1149 = vand.u32 %v812, 4294901760
    %v1150 = vsub.f32 %v812, %v1149
    %1151 = vmatpush1.msra.mxu0 %v1150
    %1152 = vmatprep.subr.mxu0 0.0
    %v1153 = vand.u32 %v813, 4294901760
    %v1154 = vsub.f32 %v813, %v1153
    %1155 = vmatpush1.msra.mxu0 %v1154
    %1156 = vmatprep.subr.mxu0 0.0
    %v1157 = vand.u32 %v814, 4294901760
    %v1158 = vsub.f32 %v814, %v1157
    %1159 = vmatpush1.msra.mxu0 %v1158
    %1160 = vmatprep.subr.mxu0 0.0
    %v1161 = vand.u32 %v815, 4294901760
    %v1162 = vsub.f32 %v815, %v1161
    %1163 = vmatpush1.msra.mxu0 %v1162
    %1164 = vmatprep.subr.mxu0 0.0
    %v1165 = vand.u32 %v816, 4294901760
    %v1166 = vsub.f32 %v816, %v1165
    %1167 = vmatpush1.msra.mxu0 %v1166
    %1168 = vmatprep.subr.mxu0 0.0
    %v1169 = vand.u32 %v817, 4294901760
    %v1170 = vsub.f32 %v817, %v1169
    %1171 = vmatpush1.msra.mxu0 %v1170
    %1172 = vmatprep.subr.mxu0 0.0
    %1173 = vmatpush1.msra.mxu0 0.0
    %1174 = vmatprep.subr.mxu0 0.0
    %1175 = vmatpush1.msra.mxu0 0.0
    %1176 = vmatprep.subr.mxu0 0.0
    %1177 = vmatpush1.msra.mxu0 0.0
    %1178 = vmatprep.subr.mxu0 0.0
    %1179 = vmatpush1.msra.mxu0 0.0
    %1180 = vmatprep.subr.mxu0 0.0
    %1181 = vmatpush1.msra.mxu0 0.0
    %1182 = vmatprep.subr.mxu0 0.0
    %1183 = vmatpush1.msra.mxu0 0.0
    %1184 = vmatprep.subr.mxu0 0.0
    %1185 = vmatpush1.msra.mxu0 0.0
    %1186 = vmatprep.subr.mxu0 0.0
    %1187 = vmatpush1.msra.mxu0 0.0
    %1188 = vmatprep.subr.mxu0 0.0
    %1189 = vmatpush1.msra.mxu0 0.0
    %1190 = vmatprep.subr.mxu0 0.0
    %1191 = vmatpush1.msra.mxu0 0.0
    %1192 = vmatprep.subr.mxu0 0.0
    %1193 = vmatpush1.msra.mxu0 0.0
    %1194 = vmatprep.subr.mxu0 0.0
    %1195 = vmatpush1.msra.mxu0 0.0
    %1196 = vmatprep.subr.mxu0 0.0
    %1197 = vmatpush1.msra.mxu0 0.0
    %1198 = vmatprep.subr.mxu0 0.0
    %1199 = vmatpush1.msra.mxu0 0.0
    %1200 = vmatprep.subr.mxu0 0.0
    %1201 = vmatpush1.msra.mxu0 0.0
    %1202 = vmatprep.subr.mxu0 0.0
    %1203 = vmatpush1.msra.mxu0 0.0
    %1204 = vmatprep.mubr.f32.mxu0 0.0
    %v1205 = vand.u32 %v798, 4294901760
    %v1206 = vsub.f32 %v798, %v1205
    %1207 = vmatmul.mubr.f32.gmra.mrb[0].mxu0 %v1206
    %v1208 = vpop.f32.mrb[0].mxu0
    %v1209 = vadd.f32 %v1087, %v1208
    %v1210 = vpop.f32.mrb[0].mxu0
    %1211 = vmatprep.mubr.f32.mxu0 0.0
    %v1212 = vand.u32 %v799, 4294901760
    %v1213 = vsub.f32 %v799, %v1212
    %1214 = vmatmul.mubr.f32.gmra.mrb[0].mxu0 %v1213
    %v1215 = vpop.f32.mrb[0].mxu0
    %v1216 = vadd.f32 %v1093, %v1215
    %v1217 = vpop.f32.mrb[0].mxu0
    %1218 = vmatprep.mubr.f32.mxu0 0.0
    %v1219 = vand.u32 %v800, 4294901760
    %v1220 = vsub.f32 %v800, %v1219
    %1221 = vmatmul.mubr.f32.gmra.mrb[0].mxu0 %v1220
    %v1222 = vpop.f32.mrb[0].mxu0
    %v1223 = vadd.f32 %v1099, %v1222
    %v1224 = vpop.f32.mrb[0].mxu0
    %1225 = vmatprep.mubr.f32.mxu0 0.0
    %v1226 = vand.u32 %v801, 4294901760
    %v1227 = vsub.f32 %v801, %v1226
    %1228 = vmatmul.mubr.f32.gmra.mrb[0].mxu0 %v1227
    %v1229 = vpop.f32.mrb[0].mxu0
    %v1230 = vadd.f32 %v1105, %v1229
    %v1231 = vpop.f32.mrb[0].mxu0
    %1232 = vdwg.mxu0
    %1233 = vmatprep.subr.mxu0 0.0
    %v1234 = vand.u32 %v802, 4294901760
    %1235 = vmatpush1.msra.mxu0 %v1234
    %1236 = vmatprep.subr.mxu0 0.0
    %v1237 = vand.u32 %v803, 4294901760
    %1238 = vmatpush1.msra.mxu0 %v1237
    %1239 = vmatprep.subr.mxu0 0.0
    %v1240 = vand.u32 %v804, 4294901760
    %1241 = vmatpush1.msra.mxu0 %v1240
    %1242 = vmatprep.subr.mxu0 0.0
    %v1243 = vand.u32 %v805, 4294901760
    %1244 = vmatpush1.msra.mxu0 %v1243
    %1245 = vmatprep.subr.mxu0 0.0
    %v1246 = vand.u32 %v806, 4294901760
    %1247 = vmatpush1.msra.mxu0 %v1246
    %1248 = vmatprep.subr.mxu0 0.0
    %v1249 = vand.u32 %v807, 4294901760
    %1250 = vmatpush1.msra.mxu0 %v1249
    %1251 = vmatprep.subr.mxu0 0.0
    %v1252 = vand.u32 %v808, 4294901760
    %1253 = vmatpush1.msra.mxu0 %v1252
    %1254 = vmatprep.subr.mxu0 0.0
    %v1255 = vand.u32 %v809, 4294901760
    %1256 = vmatpush1.msra.mxu0 %v1255
    %1257 = vmatprep.subr.mxu0 0.0
    %v1258 = vand.u32 %v810, 4294901760
    %1259 = vmatpush1.msra.mxu0 %v1258
    %1260 = vmatprep.subr.mxu0 0.0
    %v1261 = vand.u32 %v811, 4294901760
    %1262 = vmatpush1.msra.mxu0 %v1261
    %1263 = vmatprep.subr.mxu0 0.0
    %v1264 = vand.u32 %v812, 4294901760
    %1265 = vmatpush1.msra.mxu0 %v1264
    %1266 = vmatprep.subr.mxu0 0.0
    %v1267 = vand.u32 %v813, 4294901760
    %1268 = vmatpush1.msra.mxu0 %v1267
    %1269 = vmatprep.subr.mxu0 0.0
    %v1270 = vand.u32 %v814, 4294901760
    %1271 = vmatpush1.msra.mxu0 %v1270
    %1272 = vmatprep.subr.mxu0 0.0
    %v1273 = vand.u32 %v815, 4294901760
    %1274 = vmatpush1.msra.mxu0 %v1273
    %1275 = vmatprep.subr.mxu0 0.0
    %v1276 = vand.u32 %v816, 4294901760
    %1277 = vmatpush1.msra.mxu0 %v1276
    %1278 = vmatprep.subr.mxu0 0.0
    %v1279 = vand.u32 %v817, 4294901760
    %1280 = vmatpush1.msra.mxu0 %v1279
    %1281 = vmatprep.subr.mxu0 0.0
    %1282 = vmatpush1.msra.mxu0 0.0
    %1283 = vmatprep.subr.mxu0 0.0
    %1284 = vmatpush1.msra.mxu0 0.0
    %1285 = vmatprep.subr.mxu0 0.0
    %1286 = vmatpush1.msra.mxu0 0.0
    %1287 = vmatprep.subr.mxu0 0.0
    %1288 = vmatpush1.msra.mxu0 0.0
    %1289 = vmatprep.subr.mxu0 0.0
    %1290 = vmatpush1.msra.mxu0 0.0
    %1291 = vmatprep.subr.mxu0 0.0
    %1292 = vmatpush1.msra.mxu0 0.0
    %1293 = vmatprep.subr.mxu0 0.0
    %1294 = vmatpush1.msra.mxu0 0.0
    %1295 = vmatprep.subr.mxu0 0.0
    %1296 = vmatpush1.msra.mxu0 0.0
    %1297 = vmatprep.subr.mxu0 0.0
    %1298 = vmatpush1.msra.mxu0 0.0
    %1299 = vmatprep.subr.mxu0 0.0
    %1300 = vmatpush1.msra.mxu0 0.0
    %1301 = vmatprep.subr.mxu0 0.0
    %1302 = vmatpush1.msra.mxu0 0.0
    %1303 = vmatprep.subr.mxu0 0.0
    %1304 = vmatpush1.msra.mxu0 0.0
    %1305 = vmatprep.subr.mxu0 0.0
    %1306 = vmatpush1.msra.mxu0 0.0
    %1307 = vmatprep.subr.mxu0 0.0
    %1308 = vmatpush1.msra.mxu0 0.0
    %1309 = vmatprep.subr.mxu0 0.0
    %1310 = vmatpush1.msra.mxu0 0.0
    %1311 = vmatprep.subr.mxu0 0.0
    %1312 = vmatpush1.msra.mxu0 0.0
    %1313 = vmatprep.mubr.f32.mxu0 0.0
    %v1314 = vand.u32 %v798, 4294901760
    %v1315 = vsub.f32 %v798, %v1314
    %v1316 = vand.u32 %v1315, 4294901760
    %1317 = vmatmul.mubr.f32.gmra.mrb[0].mxu0 %v1316
    %v1318 = vpop.f32.mrb[0].mxu0
    %v1319 = vadd.f32 %v1209, %v1318
    %v1320 = vpop.f32.mrb[0].mxu0
    %1321 = vmatprep.mubr.f32.mxu0 0.0
    %v1322 = vand.u32 %v799, 4294901760
    %v1323 = vsub.f32 %v799, %v1322
    %v1324 = vand.u32 %v1323, 4294901760
    %1325 = vmatmul.mubr.f32.gmra.mrb[0].mxu0 %v1324
    %v1326 = vpop.f32.mrb[0].mxu0
    %v1327 = vadd.f32 %v1216, %v1326
    %v1328 = vpop.f32.mrb[0].mxu0
    %1329 = vmatprep.mubr.f32.mxu0 0.0
    %v1330 = vand.u32 %v800, 4294901760
    %v1331 = vsub.f32 %v800, %v1330
    %v1332 = vand.u32 %v1331, 4294901760
    %1333 = vmatmul.mubr.f32.gmra.mrb[0].mxu0 %v1332
    %v1334 = vpop.f32.mrb[0].mxu0
    %v1335 = vadd.f32 %v1223, %v1334
    %v1336 = vpop.f32.mrb[0].mxu0
    %1337 = vmatprep.mubr.f32.mxu0 0.0
    %v1338 = vand.u32 %v801, 4294901760
    %v1339 = vsub.f32 %v801, %v1338
    %v1340 = vand.u32 %v1339, 4294901760
    %1341 = vmatmul.mubr.f32.gmra.mrb[0].mxu0 %v1340
    %v1342 = vpop.f32.mrb[0].mxu0
    %v1343 = vadd.f32 %v1230, %v1342
    %v1344 = vpop.f32.mrb[0].mxu0
    %1345 = vdwg.mxu0
    %1346 = vmatprep.subr.mxu0 0.0
    %v1347 = vand.u32 %v802, 4294901760
    %v1348 = vsub.f32 %v802, %v1347
    %v1349 = vand.u32 %v1348, 4294901760
    %1350 = vmatpush1.msra.mxu0 %v1349
    %1351 = vmatprep.subr.mxu0 0.0
    %v1352 = vand.u32 %v803, 4294901760
    %v1353 = vsub.f32 %v803, %v1352
    %v1354 = vand.u32 %v1353, 4294901760
    %1355 = vmatpush1.msra.mxu0 %v1354
    %1356 = vmatprep.subr.mxu0 0.0
    %v1357 = vand.u32 %v804, 4294901760
    %v1358 = vsub.f32 %v804, %v1357
    %v1359 = vand.u32 %v1358, 4294901760
    %1360 = vmatpush1.msra.mxu0 %v1359
    %1361 = vmatprep.subr.mxu0 0.0
    %v1362 = vand.u32 %v805, 4294901760
    %v1363 = vsub.f32 %v805, %v1362
    %v1364 = vand.u32 %v1363, 4294901760
    %1365 = vmatpush1.msra.mxu0 %v1364
    %1366 = vmatprep.subr.mxu0 0.0
    %v1367 = vand.u32 %v806, 4294901760
    %v1368 = vsub.f32 %v806, %v1367
    %v1369 = vand.u32 %v1368, 4294901760
    %1370 = vmatpush1.msra.mxu0 %v1369
    %1371 = vmatprep.subr.mxu0 0.0
    %v1372 = vand.u32 %v807, 4294901760
    %v1373 = vsub.f32 %v807, %v1372
    %v1374 = vand.u32 %v1373, 4294901760
    %1375 = vmatpush1.msra.mxu0 %v1374
    %1376 = vmatprep.subr.mxu0 0.0
    %v1377 = vand.u32 %v808, 4294901760
    %v1378 = vsub.f32 %v808, %v1377
    %v1379 = vand.u32 %v1378, 4294901760
    %1380 = vmatpush1.msra.mxu0 %v1379
    %1381 = vmatprep.subr.mxu0 0.0
    %v1382 = vand.u32 %v809, 4294901760
    %v1383 = vsub.f32 %v809, %v1382
    %v1384 = vand.u32 %v1383, 4294901760
    %1385 = vmatpush1.msra.mxu0 %v1384
    %1386 = vmatprep.subr.mxu0 0.0
    %v1387 = vand.u32 %v810, 4294901760
    %v1388 = vsub.f32 %v810, %v1387
    %v1389 = vand.u32 %v1388, 4294901760
    %1390 = vmatpush1.msra.mxu0 %v1389
    %1391 = vmatprep.subr.mxu0 0.0
    %v1392 = vand.u32 %v811, 4294901760
    %v1393 = vsub.f32 %v811, %v1392
    %v1394 = vand.u32 %v1393, 4294901760
    %1395 = vmatpush1.msra.mxu0 %v1394
    %1396 = vmatprep.subr.mxu0 0.0
    %v1397 = vand.u32 %v812, 4294901760
    %v1398 = vsub.f32 %v812, %v1397
    %v1399 = vand.u32 %v1398, 4294901760
    %1400 = vmatpush1.msra.mxu0 %v1399
    %1401 = vmatprep.subr.mxu0 0.0
    %v1402 = vand.u32 %v813, 4294901760
    %v1403 = vsub.f32 %v813, %v1402
    %v1404 = vand.u32 %v1403, 4294901760
    %1405 = vmatpush1.msra.mxu0 %v1404
    %1406 = vmatprep.subr.mxu0 0.0
    %v1407 = vand.u32 %v814, 4294901760
    %v1408 = vsub.f32 %v814, %v1407
    %v1409 = vand.u32 %v1408, 4294901760
    %1410 = vmatpush1.msra.mxu0 %v1409
    %1411 = vmatprep.subr.mxu0 0.0
    %v1412 = vand.u32 %v815, 4294901760
    %v1413 = vsub.f32 %v815, %v1412
    %v1414 = vand.u32 %v1413, 4294901760
    %1415 = vmatpush1.msra.mxu0 %v1414
    %1416 = vmatprep.subr.mxu0 0.0
    %v1417 = vand.u32 %v816, 4294901760
    %v1418 = vsub.f32 %v816, %v1417
    %v1419 = vand.u32 %v1418, 4294901760
    %1420 = vmatpush1.msra.mxu0 %v1419
    %1421 = vmatprep.subr.mxu0 0.0
    %v1422 = vand.u32 %v817, 4294901760
    %v1423 = vsub.f32 %v817, %v1422
    %v1424 = vand.u32 %v1423, 4294901760
    %1425 = vmatpush1.msra.mxu0 %v1424
    %1426 = vmatprep.subr.mxu0 0.0
    %1427 = vmatpush1.msra.mxu0 0.0
    %1428 = vmatprep.subr.mxu0 0.0
    %1429 = vmatpush1.msra.mxu0 0.0
    %1430 = vmatprep.subr.mxu0 0.0
    %1431 = vmatpush1.msra.mxu0 0.0
    %1432 = vmatprep.subr.mxu0 0.0
    %1433 = vmatpush1.msra.mxu0 0.0
    %1434 = vmatprep.subr.mxu0 0.0
    %1435 = vmatpush1.msra.mxu0 0.0
    %1436 = vmatprep.subr.mxu0 0.0
    %1437 = vmatpush1.msra.mxu0 0.0
    %1438 = vmatprep.subr.mxu0 0.0
    %1439 = vmatpush1.msra.mxu0 0.0
    %1440 = vmatprep.subr.mxu0 0.0
    %1441 = vmatpush1.msra.mxu0 0.0
    %1442 = vmatprep.subr.mxu0 0.0
    %1443 = vmatpush1.msra.mxu0 0.0
    %1444 = vmatprep.subr.mxu0 0.0
    %1445 = vmatpush1.msra.mxu0 0.0
    %1446 = vmatprep.subr.mxu0 0.0
    %1447 = vmatpush1.msra.mxu0 0.0
    %1448 = vmatprep.subr.mxu0 0.0
    %1449 = vmatpush1.msra.mxu0 0.0
    %1450 = vmatprep.subr.mxu0 0.0
    %1451 = vmatpush1.msra.mxu0 0.0
    %1452 = vmatprep.subr.mxu0 0.0
    %1453 = vmatpush1.msra.mxu0 0.0
    %1454 = vmatprep.subr.mxu0 0.0
    %1455 = vmatpush1.msra.mxu0 0.0
    %1456 = vmatprep.subr.mxu0 0.0
    %1457 = vmatpush1.msra.mxu0 0.0
    %1458 = vmatprep.mubr.f32.mxu0 0.0
    %v1459 = vand.u32 %v798, 4294901760
    %1460 = vmatmul.mubr.f32.gmra.mrb[0].mxu0 %v1459
    %v1461 = vpop.f32.mrb[0].mxu0
    %v1462 = vadd.f32 %v1319, %v1461
    %v1463 = vpop.f32.mrb[0].mxu0
    %1464 = vmatprep.mubr.f32.mxu0 0.0
    %v1465 = vand.u32 %v799, 4294901760
    %1466 = vmatmul.mubr.f32.gmra.mrb[0].mxu0 %v1465
    %v1467 = vpop.f32.mrb[0].mxu0
    %v1468 = vadd.f32 %v1327, %v1467
    %v1469 = vpop.f32.mrb[0].mxu0
    %1470 = vmatprep.mubr.f32.mxu0 0.0
    %v1471 = vand.u32 %v800, 4294901760
    %1472 = vmatmul.mubr.f32.gmra.mrb[0].mxu0 %v1471
    %v1473 = vpop.f32.mrb[0].mxu0
    %v1474 = vadd.f32 %v1335, %v1473
    %v1475 = vpop.f32.mrb[0].mxu0
    %1476 = vmatprep.mubr.f32.mxu0 0.0
    %v1477 = vand.u32 %v801, 4294901760
    %1478 = vmatmul.mubr.f32.gmra.mrb[0].mxu0 %v1477
    %v1479 = vpop.f32.mrb[0].mxu0
    %v1480 = vadd.f32 %v1343, %v1479
    %v1481 = vpop.f32.mrb[0].mxu0
    %1482 = vdwg.mxu0
    %1483 = vmatprep.subr.mxu0 0.0
    %v1484 = vand.u32 %v802, 4294901760
    %1485 = vmatpush1.msra.mxu0 %v1484
    %1486 = vmatprep.subr.mxu0 0.0
    %v1487 = vand.u32 %v803, 4294901760
    %1488 = vmatpush1.msra.mxu0 %v1487
    %1489 = vmatprep.subr.mxu0 0.0
    %v1490 = vand.u32 %v804, 4294901760
    %1491 = vmatpush1.msra.mxu0 %v1490
    %1492 = vmatprep.subr.mxu0 0.0
    %v1493 = vand.u32 %v805, 4294901760
    %1494 = vmatpush1.msra.mxu0 %v1493
    %1495 = vmatprep.subr.mxu0 0.0
    %v1496 = vand.u32 %v806, 4294901760
    %1497 = vmatpush1.msra.mxu0 %v1496
    %1498 = vmatprep.subr.mxu0 0.0
    %v1499 = vand.u32 %v807, 4294901760
    %1500 = vmatpush1.msra.mxu0 %v1499
    %1501 = vmatprep.subr.mxu0 0.0
    %v1502 = vand.u32 %v808, 4294901760
    %1503 = vmatpush1.msra.mxu0 %v1502
    %1504 = vmatprep.subr.mxu0 0.0
    %v1505 = vand.u32 %v809, 4294901760
    %1506 = vmatpush1.msra.mxu0 %v1505
    %1507 = vmatprep.subr.mxu0 0.0
    %v1508 = vand.u32 %v810, 4294901760
    %1509 = vmatpush1.msra.mxu0 %v1508
    %1510 = vmatprep.subr.mxu0 0.0
    %v1511 = vand.u32 %v811, 4294901760
    %1512 = vmatpush1.msra.mxu0 %v1511
    %1513 = vmatprep.subr.mxu0 0.0
    %v1514 = vand.u32 %v812, 4294901760
    %1515 = vmatpush1.msra.mxu0 %v1514
    %1516 = vmatprep.subr.mxu0 0.0
    %v1517 = vand.u32 %v813, 4294901760
    %1518 = vmatpush1.msra.mxu0 %v1517
    %1519 = vmatprep.subr.mxu0 0.0
    %v1520 = vand.u32 %v814, 4294901760
    %1521 = vmatpush1.msra.mxu0 %v1520
    %1522 = vmatprep.subr.mxu0 0.0
    %v1523 = vand.u32 %v815, 4294901760
    %1524 = vmatpush1.msra.mxu0 %v1523
    %1525 = vmatprep.subr.mxu0 0.0
    %v1526 = vand.u32 %v816, 4294901760
    %1527 = vmatpush1.msra.mxu0 %v1526
    %1528 = vmatprep.subr.mxu0 0.0
    %v1529 = vand.u32 %v817, 4294901760
    %1530 = vmatpush1.msra.mxu0 %v1529
    %1531 = vmatprep.subr.mxu0 0.0
    %1532 = vmatpush1.msra.mxu0 0.0
    %1533 = vmatprep.subr.mxu0 0.0
    %1534 = vmatpush1.msra.mxu0 0.0
    %1535 = vmatprep.subr.mxu0 0.0
    %1536 = vmatpush1.msra.mxu0 0.0
    %1537 = vmatprep.subr.mxu0 0.0
    %1538 = vmatpush1.msra.mxu0 0.0
    %1539 = vmatprep.subr.mxu0 0.0
    %1540 = vmatpush1.msra.mxu0 0.0
    %1541 = vmatprep.subr.mxu0 0.0
    %1542 = vmatpush1.msra.mxu0 0.0
    %1543 = vmatprep.subr.mxu0 0.0
    %1544 = vmatpush1.msra.mxu0 0.0
    %1545 = vmatprep.subr.mxu0 0.0
    %1546 = vmatpush1.msra.mxu0 0.0
    %1547 = vmatprep.subr.mxu0 0.0
    %1548 = vmatpush1.msra.mxu0 0.0
    %1549 = vmatprep.subr.mxu0 0.0
    %1550 = vmatpush1.msra.mxu0 0.0
    %1551 = vmatprep.subr.mxu0 0.0
    %1552 = vmatpush1.msra.mxu0 0.0
    %1553 = vmatprep.subr.mxu0 0.0
    %1554 = vmatpush1.msra.mxu0 0.0
    %1555 = vmatprep.subr.mxu0 0.0
    %1556 = vmatpush1.msra.mxu0 0.0
    %1557 = vmatprep.subr.mxu0 0.0
    %1558 = vmatpush1.msra.mxu0 0.0
    %1559 = vmatprep.subr.mxu0 0.0
    %1560 = vmatpush1.msra.mxu0 0.0
    %1561 = vmatprep.subr.mxu0 0.0
    %1562 = vmatpush1.msra.mxu0 0.0
    %1563 = vmatprep.mubr.f32.mxu0 0.0
    %v1564 = vand.u32 %v798, 4294901760
    %1565 = vmatmul.mubr.f32.gmra.mrb[0].mxu0 %v1564
    %v1566 = vpop.f32.mrb[0].mxu0
    %v1567 = vadd.f32 %v1462, %v1566
    %v1568 = vpop.f32.mrb[0].mxu0
    %1569 = vmatprep.mubr.f32.mxu0 0.0
    %v1570 = vand.u32 %v799, 4294901760
    %1571 = vmatmul.mubr.f32.gmra.mrb[0].mxu0 %v1570
    %v1572 = vpop.f32.mrb[0].mxu0
    %v1573 = vadd.f32 %v1468, %v1572
    %v1574 = vpop.f32.mrb[0].mxu0
    %1575 = vmatprep.mubr.f32.mxu0 0.0
    %v1576 = vand.u32 %v800, 4294901760
    %1577 = vmatmul.mubr.f32.gmra.mrb[0].mxu0 %v1576
    %v1578 = vpop.f32.mrb[0].mxu0
    %v1579 = vadd.f32 %v1474, %v1578
    %v1580 = vpop.f32.mrb[0].mxu0
    %1581 = vmatprep.mubr.f32.mxu0 0.0
    %v1582 = vand.u32 %v801, 4294901760
    %1583 = vmatmul.mubr.f32.gmra.mrb[0].mxu0 %v1582
    %v1584 = vpop.f32.mrb[0].mxu0
    %v1585 = vadd.f32 %v1480, %v1584
    %v1586 = vpop.f32.mrb[0].mxu0
    %1587 = vdwg.mxu0
    %v1588 = vld [vmem:[%s7] sm:$0x1]
    %v1589 = vld [vmem:[%s7 + $0x1] sm:$0x1]
    %v1590 = vld [vmem:[%s7 + $0x2] sm:$0x1]
    %v1591 = vld [vmem:[%s7 + $0x3] sm:$0x1]
    %v1596 = vlaneseq
    %v1597 = vshrl.u32 %v1596, 7
    %v1598 = vsub.s32 0, %v1597
    %v1599 = vrot.slane %v1588, %v1598
    %v1600 = vlaneseq
    %v1601 = vshrl.u32 %v1600, 7
    %v1602 = vsub.s32 0, %v1601
    %v1603 = vrot.slane %v1589, %v1602
    %v1604 = vlaneseq
    %v1605 = vshrl.u32 %v1604, 7
    %v1606 = vsub.s32 0, %v1605
    %v1607 = vrot.slane %v1590, %v1606
    %v1608 = vlaneseq
    %v1609 = vshrl.u32 %v1608, 7
    %v1610 = vsub.s32 0, %v1609
    %v1611 = vrot.slane %v1591, %v1610
    %v1616 = vmul.f32 %v1567, %v1599
    %v1617 = vmul.f32 %v1573, %v1603
    %v1618 = vmul.f32 %v1579, %v1607
    %v1619 = vmul.f32 %v1585, %v1611
    %v1620 = vld [vmem:[%s8] sm:$0x1]
    %v1621 = vld [vmem:[%s8 + $0x1] sm:$0x1]
    %v1622 = vld [vmem:[%s8 + $0x2] sm:$0x1]
    %v1623 = vld [vmem:[%s8 + $0x3] sm:$0x1]
    %v1628 = vlaneseq
    %v1629 = vshrl.u32 %v1628, 7
    %v1630 = vsub.s32 0, %v1629
    %v1631 = vrot.slane %v1620, %v1630
    %v1632 = vlaneseq
    %v1633 = vshrl.u32 %v1632, 7
    %v1634 = vsub.s32 0, %v1633
    %v1635 = vrot.slane %v1621, %v1634
    %v1636 = vlaneseq
    %v1637 = vshrl.u32 %v1636, 7
    %v1638 = vsub.s32 0, %v1637
    %v1639 = vrot.slane %v1622, %v1638
    %v1640 = vlaneseq
    %v1641 = vshrl.u32 %v1640, 7
    %v1642 = vsub.s32 0, %v1641
    %v1643 = vrot.slane %v1623, %v1642
    %v1648 = vadd.f32 %v1616, %v1631
    %v1649 = vadd.f32 %v1617, %v1635
    %v1650 = vadd.f32 %v1618, %v1639
    %v1651 = vadd.f32 %v1619, %v1643
    %v1652 = vmax.f32 %v1648, 0.0
    %v1653 = vmax.f32 %v1649, 0.0
    %v1654 = vmax.f32 %v1650, 0.0
    %v1655 = vmax.f32 %v1651, 0.0
    %v1656 = vld [vmem:[%s10] sm:$0x1]
    %v1657 = vld [vmem:[%s10 + $0x1] sm:$0x1]
    %v1658 = vld [vmem:[%s10 + $0x2] sm:$0x1]
    %v1659 = vld [vmem:[%s10 + $0x3] sm:$0x1]
    %v1664 = vlaneseq
    %v1665 = vshrl.u32 %v1664, 7
    %v1666 = vsub.s32 0, %v1665
    %v1667 = vrot.slane %v1656, %v1666
    %v1668 = vlaneseq
    %v1669 = vshrl.u32 %v1668, 7
    %v1670 = vsub.s32 0, %v1669
    %v1671 = vrot.slane %v1657, %v1670
    %v1672 = vlaneseq
    %v1673 = vshrl.u32 %v1672, 7
    %v1674 = vsub.s32 0, %v1673
    %v1675 = vrot.slane %v1658, %v1674
    %v1676 = vlaneseq
    %v1677 = vshrl.u32 %v1676, 7
    %v1678 = vsub.s32 0, %v1677
    %v1679 = vrot.slane %v1659, %v1678
    %v1684 = vmul.f32 %v1652, %v1667
    %v1685 = vmul.f32 %v1653, %v1671
    %v1686 = vmul.f32 %v1654, %v1675
    %v1687 = vmul.f32 %v1655, %v1679
    %v1688 = vld [vmem:[#allocation5] sm:$0xff]
    %v1689 = vld [vmem:[#allocation5 + $0x8] sm:$0xff]
    %v1690 = vld [vmem:[#allocation5 + $0x10] sm:$0xff]
    %v1691 = vld [vmem:[#allocation5 + $0x18] sm:$0xff]
    %v1692 = vld [vmem:[#allocation5 + $0x20] sm:$0xff]
    %v1693 = vld [vmem:[#allocation5 + $0x28] sm:$0xff]
    %v1694 = vld [vmem:[#allocation5 + $0x30] sm:$0xff]
    %v1695 = vld [vmem:[#allocation5 + $0x38] sm:$0xff]
    %v1696 = vld [vmem:[#allocation5 + $0x40] sm:$0xff]
    %v1697 = vld [vmem:[#allocation5 + $0x48] sm:$0xff]
    %v1698 = vld [vmem:[#allocation5 + $0x50] sm:$0xff]
    %v1699 = vld [vmem:[#allocation5 + $0x58] sm:$0xff]
    %v1700 = vld [vmem:[#allocation5 + $0x60] sm:$0xff]
    %v1701 = vld [vmem:[#allocation5 + $0x68] sm:$0xff]
    %v1702 = vld [vmem:[#allocation5 + $0x70] sm:$0xff]
    %v1703 = vld [vmem:[#allocation5 + $0x78] sm:$0xff]
    %1704 = vmatprep.subr.mxu0 0.0
    %v1705 = vand.u32 %v1688, 4294901760
    %1706 = vmatpush1.msra.mxu0 %v1705
    %1707 = vmatprep.subr.mxu0 0.0
    %v1708 = vand.u32 %v1689, 4294901760
    %1709 = vmatpush1.msra.mxu0 %v1708
    %1710 = vmatprep.subr.mxu0 0.0
    %v1711 = vand.u32 %v1690, 4294901760
    %1712 = vmatpush1.msra.mxu0 %v1711
    %1713 = vmatprep.subr.mxu0 0.0
    %v1714 = vand.u32 %v1691, 4294901760
    %1715 = vmatpush1.msra.mxu0 %v1714
    %1716 = vmatprep.subr.mxu0 0.0
    %v1717 = vand.u32 %v1692, 4294901760
    %1718 = vmatpush1.msra.mxu0 %v1717
    %1719 = vmatprep.subr.mxu0 0.0
    %v1720 = vand.u32 %v1693, 4294901760
    %1721 = vmatpush1.msra.mxu0 %v1720
    %1722 = vmatprep.subr.mxu0 0.0
    %v1723 = vand.u32 %v1694, 4294901760
    %1724 = vmatpush1.msra.mxu0 %v1723
    %1725 = vmatprep.subr.mxu0 0.0
    %v1726 = vand.u32 %v1695, 4294901760
    %1727 = vmatpush1.msra.mxu0 %v1726
    %1728 = vmatprep.subr.mxu0 0.0
    %v1729 = vand.u32 %v1696, 4294901760
    %1730 = vmatpush1.msra.mxu0 %v1729
    %1731 = vmatprep.subr.mxu0 0.0
    %v1732 = vand.u32 %v1697, 4294901760
    %1733 = vmatpush1.msra.mxu0 %v1732
    %1734 = vmatprep.subr.mxu0 0.0
    %v1735 = vand.u32 %v1698, 4294901760
    %1736 = vmatpush1.msra.mxu0 %v1735
    %1737 = vmatprep.subr.mxu0 0.0
    %v1738 = vand.u32 %v1699, 4294901760
    %1739 = vmatpush1.msra.mxu0 %v1738
    %1740 = vmatprep.subr.mxu0 0.0
    %v1741 = vand.u32 %v1700, 4294901760
    %1742 = vmatpush1.msra.mxu0 %v1741
    %1743 = vmatprep.subr.mxu0 0.0
    %v1744 = vand.u32 %v1701, 4294901760
    %1745 = vmatpush1.msra.mxu0 %v1744
    %1746 = vmatprep.subr.mxu0 0.0
    %v1747 = vand.u32 %v1702, 4294901760
    %1748 = vmatpush1.msra.mxu0 %v1747
    %1749 = vmatprep.subr.mxu0 0.0
    %v1750 = vand.u32 %v1703, 4294901760
    %1751 = vmatpush1.msra.mxu0 %v1750
    %1752 = vmatprep.subr.mxu0 0.0
    %1753 = vmatpush1.msra.mxu0 0.0
    %1754 = vmatprep.subr.mxu0 0.0
    %1755 = vmatpush1.msra.mxu0 0.0
    %1756 = vmatprep.subr.mxu0 0.0
    %1757 = vmatpush1.msra.mxu0 0.0
    %1758 = vmatprep.subr.mxu0 0.0
    %1759 = vmatpush1.msra.mxu0 0.0
    %1760 = vmatprep.subr.mxu0 0.0
    %1761 = vmatpush1.msra.mxu0 0.0
    %1762 = vmatprep.subr.mxu0 0.0
    %1763 = vmatpush1.msra.mxu0 0.0
    %1764 = vmatprep.subr.mxu0 0.0
    %1765 = vmatpush1.msra.mxu0 0.0
    %1766 = vmatprep.subr.mxu0 0.0
    %1767 = vmatpush1.msra.mxu0 0.0
    %1768 = vmatprep.subr.mxu0 0.0
    %1769 = vmatpush1.msra.mxu0 0.0
    %1770 = vmatprep.subr.mxu0 0.0
    %1771 = vmatpush1.msra.mxu0 0.0
    %1772 = vmatprep.subr.mxu0 0.0
    %1773 = vmatpush1.msra.mxu0 0.0
    %1774 = vmatprep.subr.mxu0 0.0
    %1775 = vmatpush1.msra.mxu0 0.0
    %1776 = vmatprep.subr.mxu0 0.0
    %1777 = vmatpush1.msra.mxu0 0.0
    %1778 = vmatprep.subr.mxu0 0.0
    %1779 = vmatpush1.msra.mxu0 0.0
    %1780 = vmatprep.subr.mxu0 0.0
    %1781 = vmatpush1.msra.mxu0 0.0
    %1782 = vmatprep.subr.mxu0 0.0
    %1783 = vmatpush1.msra.mxu0 0.0
    %1784 = vmatprep.mubr.f32.mxu0 0.0
    %v1785 = vand.u32 %v1684, 4294901760
    %v1786 = vsub.f32 %v1684, %v1785
    %v1787 = vand.u32 %v1786, 4294901760
    %v1788 = vsub.f32 %v1786, %v1787
    %v1789 = vand.u32 %v1788, 4294901760
    %1790 = vmatmul.mubr.f32.gmra.mrb[0].mxu0 %v1789
    %v1791 = vpop.f32.mrb[0].mxu0
    %v1792 = vadd.f32 0.0, %v1791
    %v1793 = vpop.f32.mrb[0].mxu0
    %1794 = vmatprep.mubr.f32.mxu0 0.0
    %v1795 = vand.u32 %v1685, 4294901760
    %v1796 = vsub.f32 %v1685, %v1795
    %v1797 = vand.u32 %v1796, 4294901760
    %v1798 = vsub.f32 %v1796, %v1797
    %v1799 = vand.u32 %v1798, 4294901760
    %1800 = vmatmul.mubr.f32.gmra.mrb[0].mxu0 %v1799
    %v1801 = vpop.f32.mrb[0].mxu0
    %v1802 = vadd.f32 0.0, %v1801
    %v1803 = vpop.f32.mrb[0].mxu0
    %1804 = vmatprep.mubr.f32.mxu0 0.0
    %v1805 = vand.u32 %v1686, 4294901760
    %v1806 = vsub.f32 %v1686, %v1805
    %v1807 = vand.u32 %v1806, 4294901760
    %v1808 = vsub.f32 %v1806, %v1807
    %v1809 = vand.u32 %v1808, 4294901760
    %1810 = vmatmul.mubr.f32.gmra.mrb[0].mxu0 %v1809
    %v1811 = vpop.f32.mrb[0].mxu0
    %v1812 = vadd.f32 0.0, %v1811
    %v1813 = vpop.f32.mrb[0].mxu0
    %1814 = vmatprep.mubr.f32.mxu0 0.0
    %v1815 = vand.u32 %v1687, 4294901760
    %v1816 = vsub.f32 %v1687, %v1815
    %v1817 = vand.u32 %v1816, 4294901760
    %v1818 = vsub.f32 %v1816, %v1817
    %v1819 = vand.u32 %v1818, 4294901760
    %1820 = vmatmul.mubr.f32.gmra.mrb[0].mxu0 %v1819
    %v1821 = vpop.f32.mrb[0].mxu0
    %v1822 = vadd.f32 0.0, %v1821
    %v1823 = vpop.f32.mrb[0].mxu0
    %1824 = vdwg.mxu0
    %1825 = vmatprep.subr.mxu0 0.0
    %v1826 = vand.u32 %v1688, 4294901760
    %v1827 = vsub.f32 %v1688, %v1826
    %v1828 = vand.u32 %v1827, 4294901760
    %v1829 = vsub.f32 %v1827, %v1828
    %v1830 = vand.u32 %v1829, 4294901760
    %1831 = vmatpush1.msra.mxu0 %v1830
    %1832 = vmatprep.subr.mxu0 0.0
    %v1833 = vand.u32 %v1689, 4294901760
    %v1834 = vsub.f32 %v1689, %v1833
    %v1835 = vand.u32 %v1834, 4294901760
    %v1836 = vsub.f32 %v1834, %v1835
    %v1837 = vand.u32 %v1836, 4294901760
    %1838 = vmatpush1.msra.mxu0 %v1837
    %1839 = vmatprep.subr.mxu0 0.0
    %v1840 = vand.u32 %v1690, 4294901760
    %v1841 = vsub.f32 %v1690, %v1840
    %v1842 = vand.u32 %v1841, 4294901760
    %v1843 = vsub.f32 %v1841, %v1842
    %v1844 = vand.u32 %v1843, 4294901760
    %1845 = vmatpush1.msra.mxu0 %v1844
    %1846 = vmatprep.subr.mxu0 0.0
    %v1847 = vand.u32 %v1691, 4294901760
    %v1848 = vsub.f32 %v1691, %v1847
    %v1849 = vand.u32 %v1848, 4294901760
    %v1850 = vsub.f32 %v1848, %v1849
    %v1851 = vand.u32 %v1850, 4294901760
    %1852 = vmatpush1.msra.mxu0 %v1851
    %1853 = vmatprep.subr.mxu0 0.0
    %v1854 = vand.u32 %v1692, 4294901760
    %v1855 = vsub.f32 %v1692, %v1854
    %v1856 = vand.u32 %v1855, 4294901760
    %v1857 = vsub.f32 %v1855, %v1856
    %v1858 = vand.u32 %v1857, 4294901760
    %1859 = vmatpush1.msra.mxu0 %v1858
    %1860 = vmatprep.subr.mxu0 0.0
    %v1861 = vand.u32 %v1693, 4294901760
    %v1862 = vsub.f32 %v1693, %v1861
    %v1863 = vand.u32 %v1862, 4294901760
    %v1864 = vsub.f32 %v1862, %v1863
    %v1865 = vand.u32 %v1864, 4294901760
    %1866 = vmatpush1.msra.mxu0 %v1865
    %1867 = vmatprep.subr.mxu0 0.0
    %v1868 = vand.u32 %v1694, 4294901760
    %v1869 = vsub.f32 %v1694, %v1868
    %v1870 = vand.u32 %v1869, 4294901760
    %v1871 = vsub.f32 %v1869, %v1870
    %v1872 = vand.u32 %v1871, 4294901760
    %1873 = vmatpush1.msra.mxu0 %v1872
    %1874 = vmatprep.subr.mxu0 0.0
    %v1875 = vand.u32 %v1695, 4294901760
    %v1876 = vsub.f32 %v1695, %v1875
    %v1877 = vand.u32 %v1876, 4294901760
    %v1878 = vsub.f32 %v1876, %v1877
    %v1879 = vand.u32 %v1878, 4294901760
    %1880 = vmatpush1.msra.mxu0 %v1879
    %1881 = vmatprep.subr.mxu0 0.0
    %v1882 = vand.u32 %v1696, 4294901760
    %v1883 = vsub.f32 %v1696, %v1882
    %v1884 = vand.u32 %v1883, 4294901760
    %v1885 = vsub.f32 %v1883, %v1884
    %v1886 = vand.u32 %v1885, 4294901760
    %1887 = vmatpush1.msra.mxu0 %v1886
    %1888 = vmatprep.subr.mxu0 0.0
    %v1889 = vand.u32 %v1697, 4294901760
    %v1890 = vsub.f32 %v1697, %v1889
    %v1891 = vand.u32 %v1890, 4294901760
    %v1892 = vsub.f32 %v1890, %v1891
    %v1893 = vand.u32 %v1892, 4294901760
    %1894 = vmatpush1.msra.mxu0 %v1893
    %1895 = vmatprep.subr.mxu0 0.0
    %v1896 = vand.u32 %v1698, 4294901760
    %v1897 = vsub.f32 %v1698, %v1896
    %v1898 = vand.u32 %v1897, 4294901760
    %v1899 = vsub.f32 %v1897, %v1898
    %v1900 = vand.u32 %v1899, 4294901760
    %1901 = vmatpush1.msra.mxu0 %v1900
    %1902 = vmatprep.subr.mxu0 0.0
    %v1903 = vand.u32 %v1699, 4294901760
    %v1904 = vsub.f32 %v1699, %v1903
    %v1905 = vand.u32 %v1904, 4294901760
    %v1906 = vsub.f32 %v1904, %v1905
    %v1907 = vand.u32 %v1906, 4294901760
    %1908 = vmatpush1.msra.mxu0 %v1907
    %1909 = vmatprep.subr.mxu0 0.0
    %v1910 = vand.u32 %v1700, 4294901760
    %v1911 = vsub.f32 %v1700, %v1910
    %v1912 = vand.u32 %v1911, 4294901760
    %v1913 = vsub.f32 %v1911, %v1912
    %v1914 = vand.u32 %v1913, 4294901760
    %1915 = vmatpush1.msra.mxu0 %v1914
    %1916 = vmatprep.subr.mxu0 0.0
    %v1917 = vand.u32 %v1701, 4294901760
    %v1918 = vsub.f32 %v1701, %v1917
    %v1919 = vand.u32 %v1918, 4294901760
    %v1920 = vsub.f32 %v1918, %v1919
    %v1921 = vand.u32 %v1920, 4294901760
    %1922 = vmatpush1.msra.mxu0 %v1921
    %1923 = vmatprep.subr.mxu0 0.0
    %v1924 = vand.u32 %v1702, 4294901760
    %v1925 = vsub.f32 %v1702, %v1924
    %v1926 = vand.u32 %v1925, 4294901760
    %v1927 = vsub.f32 %v1925, %v1926
    %v1928 = vand.u32 %v1927, 4294901760
    %1929 = vmatpush1.msra.mxu0 %v1928
    %1930 = vmatprep.subr.mxu0 0.0
    %v1931 = vand.u32 %v1703, 4294901760
    %v1932 = vsub.f32 %v1703, %v1931
    %v1933 = vand.u32 %v1932, 4294901760
    %v1934 = vsub.f32 %v1932, %v1933
    %v1935 = vand.u32 %v1934, 4294901760
    %1936 = vmatpush1.msra.mxu0 %v1935
    %1937 = vmatprep.subr.mxu0 0.0
    %1938 = vmatpush1.msra.mxu0 0.0
    %1939 = vmatprep.subr.mxu0 0.0
    %1940 = vmatpush1.msra.mxu0 0.0
    %1941 = vmatprep.subr.mxu0 0.0
    %1942 = vmatpush1.msra.mxu0 0.0
    %1943 = vmatprep.subr.mxu0 0.0
    %1944 = vmatpush1.msra.mxu0 0.0
    %1945 = vmatprep.subr.mxu0 0.0
    %1946 = vmatpush1.msra.mxu0 0.0
    %1947 = vmatprep.subr.mxu0 0.0
    %1948 = vmatpush1.msra.mxu0 0.0
    %1949 = vmatprep.subr.mxu0 0.0
    %1950 = vmatpush1.msra.mxu0 0.0
    %1951 = vmatprep.subr.mxu0 0.0
    %1952 = vmatpush1.msra.mxu0 0.0
    %1953 = vmatprep.subr.mxu0 0.0
    %1954 = vmatpush1.msra.mxu0 0.0
    %1955 = vmatprep.subr.mxu0 0.0
    %1956 = vmatpush1.msra.mxu0 0.0
    %1957 = vmatprep.subr.mxu0 0.0
    %1958 = vmatpush1.msra.mxu0 0.0
    %1959 = vmatprep.subr.mxu0 0.0
    %1960 = vmatpush1.msra.mxu0 0.0
    %1961 = vmatprep.subr.mxu0 0.0
    %1962 = vmatpush1.msra.mxu0 0.0
    %1963 = vmatprep.subr.mxu0 0.0
    %1964 = vmatpush1.msra.mxu0 0.0
    %1965 = vmatprep.subr.mxu0 0.0
    %1966 = vmatpush1.msra.mxu0 0.0
    %1967 = vmatprep.subr.mxu0 0.0
    %1968 = vmatpush1.msra.mxu0 0.0
    %1969 = vmatprep.mubr.f32.mxu0 0.0
    %v1970 = vand.u32 %v1684, 4294901760
    %1971 = vmatmul.mubr.f32.gmra.mrb[0].mxu0 %v1970
    %v1972 = vpop.f32.mrb[0].mxu0
    %v1973 = vadd.f32 %v1792, %v1972
    %v1974 = vpop.f32.mrb[0].mxu0
    %1975 = vmatprep.mubr.f32.mxu0 0.0
    %v1976 = vand.u32 %v1685, 4294901760
    %1977 = vmatmul.mubr.f32.gmra.mrb[0].mxu0 %v1976
    %v1978 = vpop.f32.mrb[0].mxu0
    %v1979 = vadd.f32 %v1802, %v1978
    %v1980 = vpop.f32.mrb[0].mxu0
    %1981 = vmatprep.mubr.f32.mxu0 0.0
    %v1982 = vand.u32 %v1686, 4294901760
    %1983 = vmatmul.mubr.f32.gmra.mrb[0].mxu0 %v1982
    %v1984 = vpop.f32.mrb[0].mxu0
    %v1985 = vadd.f32 %v1812, %v1984
    %v1986 = vpop.f32.mrb[0].mxu0
    %1987 = vmatprep.mubr.f32.mxu0 0.0
    %v1988 = vand.u32 %v1687, 4294901760
    %1989 = vmatmul.mubr.f32.gmra.mrb[0].mxu0 %v1988
    %v1990 = vpop.f32.mrb[0].mxu0
    %v1991 = vadd.f32 %v1822, %v1990
    %v1992 = vpop.f32.mrb[0].mxu0
    %1993 = vdwg.mxu0
    %1994 = vmatprep.subr.mxu0 0.0
    %v1995 = vand.u32 %v1688, 4294901760
    %v1996 = vsub.f32 %v1688, %v1995
    %1997 = vmatpush1.msra.mxu0 %v1996
    %1998 = vmatprep.subr.mxu0 0.0
    %v1999 = vand.u32 %v1689, 4294901760
    %v2000 = vsub.f32 %v1689, %v1999
    %2001 = vmatpush1.msra.mxu0 %v2000
    %2002 = vmatprep.subr.mxu0 0.0
    %v2003 = vand.u32 %v1690, 4294901760
    %v2004 = vsub.f32 %v1690, %v2003
    %2005 = vmatpush1.msra.mxu0 %v2004
    %2006 = vmatprep.subr.mxu0 0.0
    %v2007 = vand.u32 %v1691, 4294901760
    %v2008 = vsub.f32 %v1691, %v2007
    %2009 = vmatpush1.msra.mxu0 %v2008
    %2010 = vmatprep.subr.mxu0 0.0
    %v2011 = vand.u32 %v1692, 4294901760
    %v2012 = vsub.f32 %v1692, %v2011
    %2013 = vmatpush1.msra.mxu0 %v2012
    %2014 = vmatprep.subr.mxu0 0.0
    %v2015 = vand.u32 %v1693, 4294901760
    %v2016 = vsub.f32 %v1693, %v2015
    %2017 = vmatpush1.msra.mxu0 %v2016
    %2018 = vmatprep.subr.mxu0 0.0
    %v2019 = vand.u32 %v1694, 4294901760
    %v2020 = vsub.f32 %v1694, %v2019
    %2021 = vmatpush1.msra.mxu0 %v2020
    %2022 = vmatprep.subr.mxu0 0.0
    %v2023 = vand.u32 %v1695, 4294901760
    %v2024 = vsub.f32 %v1695, %v2023
    %2025 = vmatpush1.msra.mxu0 %v2024
    %2026 = vmatprep.subr.mxu0 0.0
    %v2027 = vand.u32 %v1696, 4294901760
    %v2028 = vsub.f32 %v1696, %v2027
    %2029 = vmatpush1.msra.mxu0 %v2028
    %2030 = vmatprep.subr.mxu0 0.0
    %v2031 = vand.u32 %v1697, 4294901760
    %v2032 = vsub.f32 %v1697, %v2031
    %2033 = vmatpush1.msra.mxu0 %v2032
    %2034 = vmatprep.subr.mxu0 0.0
    %v2035 = vand.u32 %v1698, 4294901760
    %v2036 = vsub.f32 %v1698, %v2035
    %2037 = vmatpush1.msra.mxu0 %v2036
    %2038 = vmatprep.subr.mxu0 0.0
    %v2039 = vand.u32 %v1699, 4294901760
    %v2040 = vsub.f32 %v1699, %v2039
    %2041 = vmatpush1.msra.mxu0 %v2040
    %2042 = vmatprep.subr.mxu0 0.0
    %v2043 = vand.u32 %v1700, 4294901760
    %v2044 = vsub.f32 %v1700, %v2043
    %2045 = vmatpush1.msra.mxu0 %v2044
    %2046 = vmatprep.subr.mxu0 0.0
    %v2047 = vand.u32 %v1701, 4294901760
    %v2048 = vsub.f32 %v1701, %v2047
    %2049 = vmatpush1.msra.mxu0 %v2048
    %2050 = vmatprep.subr.mxu0 0.0
    %v2051 = vand.u32 %v1702, 4294901760
    %v2052 = vsub.f32 %v1702, %v2051
    %2053 = vmatpush1.msra.mxu0 %v2052
    %2054 = vmatprep.subr.mxu0 0.0
    %v2055 = vand.u32 %v1703, 4294901760
    %v2056 = vsub.f32 %v1703, %v2055
    %2057 = vmatpush1.msra.mxu0 %v2056
    %2058 = vmatprep.subr.mxu0 0.0
    %2059 = vmatpush1.msra.mxu0 0.0
    %2060 = vmatprep.subr.mxu0 0.0
    %2061 = vmatpush1.msra.mxu0 0.0
    %2062 = vmatprep.subr.mxu0 0.0
    %2063 = vmatpush1.msra.mxu0 0.0
    %2064 = vmatprep.subr.mxu0 0.0
    %2065 = vmatpush1.msra.mxu0 0.0
    %2066 = vmatprep.subr.mxu0 0.0
    %2067 = vmatpush1.msra.mxu0 0.0
    %2068 = vmatprep.subr.mxu0 0.0
    %2069 = vmatpush1.msra.mxu0 0.0
    %2070 = vmatprep.subr.mxu0 0.0
    %2071 = vmatpush1.msra.mxu0 0.0
    %2072 = vmatprep.subr.mxu0 0.0
    %2073 = vmatpush1.msra.mxu0 0.0
    %2074 = vmatprep.subr.mxu0 0.0
    %2075 = vmatpush1.msra.mxu0 0.0
    %2076 = vmatprep.subr.mxu0 0.0
    %2077 = vmatpush1.msra.mxu0 0.0
    %2078 = vmatprep.subr.mxu0 0.0
    %2079 = vmatpush1.msra.mxu0 0.0
    %2080 = vmatprep.subr.mxu0 0.0
    %2081 = vmatpush1.msra.mxu0 0.0
    %2082 = vmatprep.subr.mxu0 0.0
    %2083 = vmatpush1.msra.mxu0 0.0
    %2084 = vmatprep.subr.mxu0 0.0
    %2085 = vmatpush1.msra.mxu0 0.0
    %2086 = vmatprep.subr.mxu0 0.0
    %2087 = vmatpush1.msra.mxu0 0.0
    %2088 = vmatprep.subr.mxu0 0.0
    %2089 = vmatpush1.msra.mxu0 0.0
    %2090 = vmatprep.mubr.f32.mxu0 0.0
    %v2091 = vand.u32 %v1684, 4294901760
    %v2092 = vsub.f32 %v1684, %v2091
    %2093 = vmatmul.mubr.f32.gmra.mrb[0].mxu0 %v2092
    %v2094 = vpop.f32.mrb[0].mxu0
    %v2095 = vadd.f32 %v1973, %v2094
    %v2096 = vpop.f32.mrb[0].mxu0
    %2097 = vmatprep.mubr.f32.mxu0 0.0
    %v2098 = vand.u32 %v1685, 4294901760
    %v2099 = vsub.f32 %v1685, %v2098
    %2100 = vmatmul.mubr.f32.gmra.mrb[0].mxu0 %v2099
    %v2101 = vpop.f32.mrb[0].mxu0
    %v2102 = vadd.f32 %v1979, %v2101
    %v2103 = vpop.f32.mrb[0].mxu0
    %2104 = vmatprep.mubr.f32.mxu0 0.0
    %v2105 = vand.u32 %v1686, 4294901760
    %v2106 = vsub.f32 %v1686, %v2105
    %2107 = vmatmul.mubr.f32.gmra.mrb[0].mxu0 %v2106
    %v2108 = vpop.f32.mrb[0].mxu0
    %v2109 = vadd.f32 %v1985, %v2108
    %v2110 = vpop.f32.mrb[0].mxu0
    %2111 = vmatprep.mubr.f32.mxu0 0.0
    %v2112 = vand.u32 %v1687, 4294901760
    %v2113 = vsub.f32 %v1687, %v2112
    %2114 = vmatmul.mubr.f32.gmra.mrb[0].mxu0 %v2113
    %v2115 = vpop.f32.mrb[0].mxu0
    %v2116 = vadd.f32 %v1991, %v2115
    %v2117 = vpop.f32.mrb[0].mxu0
    %2118 = vdwg.mxu0
    %2119 = vmatprep.subr.mxu0 0.0
    %v2120 = vand.u32 %v1688, 4294901760
    %2121 = vmatpush1.msra.mxu0 %v2120
    %2122 = vmatprep.subr.mxu0 0.0
    %v2123 = vand.u32 %v1689, 4294901760
    %2124 = vmatpush1.msra.mxu0 %v2123
    %2125 = vmatprep.subr.mxu0 0.0
    %v2126 = vand.u32 %v1690, 4294901760
    %2127 = vmatpush1.msra.mxu0 %v2126
    %2128 = vmatprep.subr.mxu0 0.0
    %v2129 = vand.u32 %v1691, 4294901760
    %2130 = vmatpush1.msra.mxu0 %v2129
    %2131 = vmatprep.subr.mxu0 0.0
    %v2132 = vand.u32 %v1692, 4294901760
    %2133 = vmatpush1.msra.mxu0 %v2132
    %2134 = vmatprep.subr.mxu0 0.0
    %v2135 = vand.u32 %v1693, 4294901760
    %2136 = vmatpush1.msra.mxu0 %v2135
    %2137 = vmatprep.subr.mxu0 0.0
    %v2138 = vand.u32 %v1694, 4294901760
    %2139 = vmatpush1.msra.mxu0 %v2138
    %2140 = vmatprep.subr.mxu0 0.0
    %v2141 = vand.u32 %v1695, 4294901760
    %2142 = vmatpush1.msra.mxu0 %v2141
    %2143 = vmatprep.subr.mxu0 0.0
    %v2144 = vand.u32 %v1696, 4294901760
    %2145 = vmatpush1.msra.mxu0 %v2144
    %2146 = vmatprep.subr.mxu0 0.0
    %v2147 = vand.u32 %v1697, 4294901760
    %2148 = vmatpush1.msra.mxu0 %v2147
    %2149 = vmatprep.subr.mxu0 0.0
    %v2150 = vand.u32 %v1698, 4294901760
    %2151 = vmatpush1.msra.mxu0 %v2150
    %2152 = vmatprep.subr.mxu0 0.0
    %v2153 = vand.u32 %v1699, 4294901760
    %2154 = vmatpush1.msra.mxu0 %v2153
    %2155 = vmatprep.subr.mxu0 0.0
    %v2156 = vand.u32 %v1700, 4294901760
    %2157 = vmatpush1.msra.mxu0 %v2156
    %2158 = vmatprep.subr.mxu0 0.0
    %v2159 = vand.u32 %v1701, 4294901760
    %2160 = vmatpush1.msra.mxu0 %v2159
    %2161 = vmatprep.subr.mxu0 0.0
    %v2162 = vand.u32 %v1702, 4294901760
    %2163 = vmatpush1.msra.mxu0 %v2162
    %2164 = vmatprep.subr.mxu0 0.0
    %v2165 = vand.u32 %v1703, 4294901760
    %2166 = vmatpush1.msra.mxu0 %v2165
    %2167 = vmatprep.subr.mxu0 0.0
    %2168 = vmatpush1.msra.mxu0 0.0
    %2169 = vmatprep.subr.mxu0 0.0
    %2170 = vmatpush1.msra.mxu0 0.0
    %2171 = vmatprep.subr.mxu0 0.0
    %2172 = vmatpush1.msra.mxu0 0.0
    %2173 = vmatprep.subr.mxu0 0.0
    %2174 = vmatpush1.msra.mxu0 0.0
    %2175 = vmatprep.subr.mxu0 0.0
    %2176 = vmatpush1.msra.mxu0 0.0
    %2177 = vmatprep.subr.mxu0 0.0
    %2178 = vmatpush1.msra.mxu0 0.0
    %2179 = vmatprep.subr.mxu0 0.0
    %2180 = vmatpush1.msra.mxu0 0.0
    %2181 = vmatprep.subr.mxu0 0.0
    %2182 = vmatpush1.msra.mxu0 0.0
    %2183 = vmatprep.subr.mxu0 0.0
    %2184 = vmatpush1.msra.mxu0 0.0
    %2185 = vmatprep.subr.mxu0 0.0
    %2186 = vmatpush1.msra.mxu0 0.0
    %2187 = vmatprep.subr.mxu0 0.0
    %2188 = vmatpush1.msra.mxu0 0.0
    %2189 = vmatprep.subr.mxu0 0.0
    %2190 = vmatpush1.msra.mxu0 0.0
    %2191 = vmatprep.subr.mxu0 0.0
    %2192 = vmatpush1.msra.mxu0 0.0
    %2193 = vmatprep.subr.mxu0 0.0
    %2194 = vmatpush1.msra.mxu0 0.0
    %2195 = vmatprep.subr.mxu0 0.0
    %2196 = vmatpush1.msra.mxu0 0.0
    %2197 = vmatprep.subr.mxu0 0.0
    %2198 = vmatpush1.msra.mxu0 0.0
    %2199 = vmatprep.mubr.f32.mxu0 0.0
    %v2200 = vand.u32 %v1684, 4294901760
    %v2201 = vsub.f32 %v1684, %v2200
    %v2202 = vand.u32 %v2201, 4294901760
    %2203 = vmatmul.mubr.f32.gmra.mrb[0].mxu0 %v2202
    %v2204 = vpop.f32.mrb[0].mxu0
    %v2205 = vadd.f32 %v2095, %v2204
    %v2206 = vpop.f32.mrb[0].mxu0
    %2207 = vmatprep.mubr.f32.mxu0 0.0
    %v2208 = vand.u32 %v1685, 4294901760
    %v2209 = vsub.f32 %v1685, %v2208
    %v2210 = vand.u32 %v2209, 4294901760
    %2211 = vmatmul.mubr.f32.gmra.mrb[0].mxu0 %v2210
    %v2212 = vpop.f32.mrb[0].mxu0
    %v2213 = vadd.f32 %v2102, %v2212
    %v2214 = vpop.f32.mrb[0].mxu0
    %2215 = vmatprep.mubr.f32.mxu0 0.0
    %v2216 = vand.u32 %v1686, 4294901760
    %v2217 = vsub.f32 %v1686, %v2216
    %v2218 = vand.u32 %v2217, 4294901760
    %2219 = vmatmul.mubr.f32.gmra.mrb[0].mxu0 %v2218
    %v2220 = vpop.f32.mrb[0].mxu0
    %v2221 = vadd.f32 %v2109, %v2220
    %v2222 = vpop.f32.mrb[0].mxu0
    %2223 = vmatprep.mubr.f32.mxu0 0.0
    %v2224 = vand.u32 %v1687, 4294901760
    %v2225 = vsub.f32 %v1687, %v2224
    %v2226 = vand.u32 %v2225, 4294901760
    %2227 = vmatmul.mubr.f32.gmra.mrb[0].mxu0 %v2226
    %v2228 = vpop.f32.mrb[0].mxu0
    %v2229 = vadd.f32 %v2116, %v2228
    %v2230 = vpop.f32.mrb[0].mxu0
    %2231 = vdwg.mxu0
    %2232 = vmatprep.subr.mxu0 0.0
    %v2233 = vand.u32 %v1688, 4294901760
    %v2234 = vsub.f32 %v1688, %v2233
    %v2235 = vand.u32 %v2234, 4294901760
    %2236 = vmatpush1.msra.mxu0 %v2235
    %2237 = vmatprep.subr.mxu0 0.0
    %v2238 = vand.u32 %v1689, 4294901760
    %v2239 = vsub.f32 %v1689, %v2238
    %v2240 = vand.u32 %v2239, 4294901760
    %2241 = vmatpush1.msra.mxu0 %v2240
    %2242 = vmatprep.subr.mxu0 0.0
    %v2243 = vand.u32 %v1690, 4294901760
    %v2244 = vsub.f32 %v1690, %v2243
    %v2245 = vand.u32 %v2244, 4294901760
    %2246 = vmatpush1.msra.mxu0 %v2245
    %2247 = vmatprep.subr.mxu0 0.0
    %v2248 = vand.u32 %v1691, 4294901760
    %v2249 = vsub.f32 %v1691, %v2248
    %v2250 = vand.u32 %v2249, 4294901760
    %2251 = vmatpush1.msra.mxu0 %v2250
    %2252 = vmatprep.subr.mxu0 0.0
    %v2253 = vand.u32 %v1692, 4294901760
    %v2254 = vsub.f32 %v1692, %v2253
    %v2255 = vand.u32 %v2254, 4294901760
    %2256 = vmatpush1.msra.mxu0 %v2255
    %2257 = vmatprep.subr.mxu0 0.0
    %v2258 = vand.u32 %v1693, 4294901760
    %v2259 = vsub.f32 %v1693, %v2258
    %v2260 = vand.u32 %v2259, 4294901760
    %2261 = vmatpush1.msra.mxu0 %v2260
    %2262 = vmatprep.subr.mxu0 0.0
    %v2263 = vand.u32 %v1694, 4294901760
    %v2264 = vsub.f32 %v1694, %v2263
    %v2265 = vand.u32 %v2264, 4294901760
    %2266 = vmatpush1.msra.mxu0 %v2265
    %2267 = vmatprep.subr.mxu0 0.0
    %v2268 = vand.u32 %v1695, 4294901760
    %v2269 = vsub.f32 %v1695, %v2268
    %v2270 = vand.u32 %v2269, 4294901760
    %2271 = vmatpush1.msra.mxu0 %v2270
    %2272 = vmatprep.subr.mxu0 0.0
    %v2273 = vand.u32 %v1696, 4294901760
    %v2274 = vsub.f32 %v1696, %v2273
    %v2275 = vand.u32 %v2274, 4294901760
    %2276 = vmatpush1.msra.mxu0 %v2275
    %2277 = vmatprep.subr.mxu0 0.0
    %v2278 = vand.u32 %v1697, 4294901760
    %v2279 = vsub.f32 %v1697, %v2278
    %v2280 = vand.u32 %v2279, 4294901760
    %2281 = vmatpush1.msra.mxu0 %v2280
    %2282 = vmatprep.subr.mxu0 0.0
    %v2283 = vand.u32 %v1698, 4294901760
    %v2284 = vsub.f32 %v1698, %v2283
    %v2285 = vand.u32 %v2284, 4294901760
    %2286 = vmatpush1.msra.mxu0 %v2285
    %2287 = vmatprep.subr.mxu0 0.0
    %v2288 = vand.u32 %v1699, 4294901760
    %v2289 = vsub.f32 %v1699, %v2288
    %v2290 = vand.u32 %v2289, 4294901760
    %2291 = vmatpush1.msra.mxu0 %v2290
    %2292 = vmatprep.subr.mxu0 0.0
    %v2293 = vand.u32 %v1700, 4294901760
    %v2294 = vsub.f32 %v1700, %v2293
    %v2295 = vand.u32 %v2294, 4294901760
    %2296 = vmatpush1.msra.mxu0 %v2295
    %2297 = vmatprep.subr.mxu0 0.0
    %v2298 = vand.u32 %v1701, 4294901760
    %v2299 = vsub.f32 %v1701, %v2298
    %v2300 = vand.u32 %v2299, 4294901760
    %2301 = vmatpush1.msra.mxu0 %v2300
    %2302 = vmatprep.subr.mxu0 0.0
    %v2303 = vand.u32 %v1702, 4294901760
    %v2304 = vsub.f32 %v1702, %v2303
    %v2305 = vand.u32 %v2304, 4294901760
    %2306 = vmatpush1.msra.mxu0 %v2305
    %2307 = vmatprep.subr.mxu0 0.0
    %v2308 = vand.u32 %v1703, 4294901760
    %v2309 = vsub.f32 %v1703, %v2308
    %v2310 = vand.u32 %v2309, 4294901760
    %2311 = vmatpush1.msra.mxu0 %v2310
    %2312 = vmatprep.subr.mxu0 0.0
    %2313 = vmatpush1.msra.mxu0 0.0
    %2314 = vmatprep.subr.mxu0 0.0
    %2315 = vmatpush1.msra.mxu0 0.0
    %2316 = vmatprep.subr.mxu0 0.0
    %2317 = vmatpush1.msra.mxu0 0.0
    %2318 = vmatprep.subr.mxu0 0.0
    %2319 = vmatpush1.msra.mxu0 0.0
    %2320 = vmatprep.subr.mxu0 0.0
    %2321 = vmatpush1.msra.mxu0 0.0
    %2322 = vmatprep.subr.mxu0 0.0
    %2323 = vmatpush1.msra.mxu0 0.0
    %2324 = vmatprep.subr.mxu0 0.0
    %2325 = vmatpush1.msra.mxu0 0.0
    %2326 = vmatprep.subr.mxu0 0.0
    %2327 = vmatpush1.msra.mxu0 0.0
    %2328 = vmatprep.subr.mxu0 0.0
    %2329 = vmatpush1.msra.mxu0 0.0
    %2330 = vmatprep.subr.mxu0 0.0
    %2331 = vmatpush1.msra.mxu0 0.0
    %2332 = vmatprep.subr.mxu0 0.0
    %2333 = vmatpush1.msra.mxu0 0.0
    %2334 = vmatprep.subr.mxu0 0.0
    %2335 = vmatpush1.msra.mxu0 0.0
    %2336 = vmatprep.subr.mxu0 0.0
    %2337 = vmatpush1.msra.mxu0 0.0
    %2338 = vmatprep.subr.mxu0 0.0
    %2339 = vmatpush1.msra.mxu0 0.0
    %2340 = vmatprep.subr.mxu0 0.0
    %2341 = vmatpush1.msra.mxu0 0.0
    %2342 = vmatprep.subr.mxu0 0.0
    %2343 = vmatpush1.msra.mxu0 0.0
    %2344 = vmatprep.mubr.f32.mxu0 0.0
    %v2345 = vand.u32 %v1684, 4294901760
    %2346 = vmatmul.mubr.f32.gmra.mrb[0].mxu0 %v2345
    %v2347 = vpop.f32.mrb[0].mxu0
    %v2348 = vadd.f32 %v2205, %v2347
    %v2349 = vpop.f32.mrb[0].mxu0
    %2350 = vmatprep.mubr.f32.mxu0 0.0
    %v2351 = vand.u32 %v1685, 4294901760
    %2352 = vmatmul.mubr.f32.gmra.mrb[0].mxu0 %v2351
    %v2353 = vpop.f32.mrb[0].mxu0
    %v2354 = vadd.f32 %v2213, %v2353
    %v2355 = vpop.f32.mrb[0].mxu0
    %2356 = vmatprep.mubr.f32.mxu0 0.0
    %v2357 = vand.u32 %v1686, 4294901760
    %2358 = vmatmul.mubr.f32.gmra.mrb[0].mxu0 %v2357
    %v2359 = vpop.f32.mrb[0].mxu0
    %v2360 = vadd.f32 %v2221, %v2359
    %v2361 = vpop.f32.mrb[0].mxu0
    %2362 = vmatprep.mubr.f32.mxu0 0.0
    %v2363 = vand.u32 %v1687, 4294901760
    %2364 = vmatmul.mubr.f32.gmra.mrb[0].mxu0 %v2363
    %v2365 = vpop.f32.mrb[0].mxu0
    %v2366 = vadd.f32 %v2229, %v2365
    %v2367 = vpop.f32.mrb[0].mxu0
    %2368 = vdwg.mxu0
    %2369 = vmatprep.subr.mxu0 0.0
    %v2370 = vand.u32 %v1688, 4294901760
    %2371 = vmatpush1.msra.mxu0 %v2370
    %2372 = vmatprep.subr.mxu0 0.0
    %v2373 = vand.u32 %v1689, 4294901760
    %2374 = vmatpush1.msra.mxu0 %v2373
    %2375 = vmatprep.subr.mxu0 0.0
    %v2376 = vand.u32 %v1690, 4294901760
    %2377 = vmatpush1.msra.mxu0 %v2376
    %2378 = vmatprep.subr.mxu0 0.0
    %v2379 = vand.u32 %v1691, 4294901760
    %2380 = vmatpush1.msra.mxu0 %v2379
    %2381 = vmatprep.subr.mxu0 0.0
    %v2382 = vand.u32 %v1692, 4294901760
    %2383 = vmatpush1.msra.mxu0 %v2382
    %2384 = vmatprep.subr.mxu0 0.0
    %v2385 = vand.u32 %v1693, 4294901760
    %2386 = vmatpush1.msra.mxu0 %v2385
    %2387 = vmatprep.subr.mxu0 0.0
    %v2388 = vand.u32 %v1694, 4294901760
    %2389 = vmatpush1.msra.mxu0 %v2388
    %2390 = vmatprep.subr.mxu0 0.0
    %v2391 = vand.u32 %v1695, 4294901760
    %2392 = vmatpush1.msra.mxu0 %v2391
    %2393 = vmatprep.subr.mxu0 0.0
    %v2394 = vand.u32 %v1696, 4294901760
    %2395 = vmatpush1.msra.mxu0 %v2394
    %2396 = vmatprep.subr.mxu0 0.0
    %v2397 = vand.u32 %v1697, 4294901760
    %2398 = vmatpush1.msra.mxu0 %v2397
    %2399 = vmatprep.subr.mxu0 0.0
    %v2400 = vand.u32 %v1698, 4294901760
    %2401 = vmatpush1.msra.mxu0 %v2400
    %2402 = vmatprep.subr.mxu0 0.0
    %v2403 = vand.u32 %v1699, 4294901760
    %2404 = vmatpush1.msra.mxu0 %v2403
    %2405 = vmatprep.subr.mxu0 0.0
    %v2406 = vand.u32 %v1700, 4294901760
    %2407 = vmatpush1.msra.mxu0 %v2406
    %2408 = vmatprep.subr.mxu0 0.0
    %v2409 = vand.u32 %v1701, 4294901760
    %2410 = vmatpush1.msra.mxu0 %v2409
    %2411 = vmatprep.subr.mxu0 0.0
    %v2412 = vand.u32 %v1702, 4294901760
    %2413 = vmatpush1.msra.mxu0 %v2412
    %2414 = vmatprep.subr.mxu0 0.0
    %v2415 = vand.u32 %v1703, 4294901760
    %2416 = vmatpush1.msra.mxu0 %v2415
    %2417 = vmatprep.subr.mxu0 0.0
    %2418 = vmatpush1.msra.mxu0 0.0
    %2419 = vmatprep.subr.mxu0 0.0
    %2420 = vmatpush1.msra.mxu0 0.0
    %2421 = vmatprep.subr.mxu0 0.0
    %2422 = vmatpush1.msra.mxu0 0.0
    %2423 = vmatprep.subr.mxu0 0.0
    %2424 = vmatpush1.msra.mxu0 0.0
    %2425 = vmatprep.subr.mxu0 0.0
    %2426 = vmatpush1.msra.mxu0 0.0
    %2427 = vmatprep.subr.mxu0 0.0
    %2428 = vmatpush1.msra.mxu0 0.0
    %2429 = vmatprep.subr.mxu0 0.0
    %2430 = vmatpush1.msra.mxu0 0.0
    %2431 = vmatprep.subr.mxu0 0.0
    %2432 = vmatpush1.msra.mxu0 0.0
    %2433 = vmatprep.subr.mxu0 0.0
    %2434 = vmatpush1.msra.mxu0 0.0
    %2435 = vmatprep.subr.mxu0 0.0
    %2436 = vmatpush1.msra.mxu0 0.0
    %2437 = vmatprep.subr.mxu0 0.0
    %2438 = vmatpush1.msra.mxu0 0.0
    %2439 = vmatprep.subr.mxu0 0.0
    %2440 = vmatpush1.msra.mxu0 0.0
    %2441 = vmatprep.subr.mxu0 0.0
    %2442 = vmatpush1.msra.mxu0 0.0
    %2443 = vmatprep.subr.mxu0 0.0
    %2444 = vmatpush1.msra.mxu0 0.0
    %2445 = vmatprep.subr.mxu0 0.0
    %2446 = vmatpush1.msra.mxu0 0.0
    %2447 = vmatprep.subr.mxu0 0.0
    %2448 = vmatpush1.msra.mxu0 0.0
    %2449 = vmatprep.mubr.f32.mxu0 0.0
    %v2450 = vand.u32 %v1684, 4294901760
    %2451 = vmatmul.mubr.f32.gmra.mrb[0].mxu0 %v2450
    %v2452 = vpop.f32.mrb[0].mxu0
    %v2453 = vadd.f32 %v2348, %v2452
    %v2454 = vpop.f32.mrb[0].mxu0
    %2455 = vmatprep.mubr.f32.mxu0 0.0
    %v2456 = vand.u32 %v1685, 4294901760
    %2457 = vmatmul.mubr.f32.gmra.mrb[0].mxu0 %v2456
    %v2458 = vpop.f32.mrb[0].mxu0
    %v2459 = vadd.f32 %v2354, %v2458
    %v2460 = vpop.f32.mrb[0].mxu0
    %2461 = vmatprep.mubr.f32.mxu0 0.0
    %v2462 = vand.u32 %v1686, 4294901760
    %2463 = vmatmul.mubr.f32.gmra.mrb[0].mxu0 %v2462
    %v2464 = vpop.f32.mrb[0].mxu0
    %v2465 = vadd.f32 %v2360, %v2464
    %v2466 = vpop.f32.mrb[0].mxu0
    %2467 = vmatprep.mubr.f32.mxu0 0.0
    %v2468 = vand.u32 %v1687, 4294901760
    %2469 = vmatmul.mubr.f32.gmra.mrb[0].mxu0 %v2468
    %v2470 = vpop.f32.mrb[0].mxu0
    %v2471 = vadd.f32 %v2366, %v2470
    %v2472 = vpop.f32.mrb[0].mxu0
    %2473 = vdwg.mxu0
    %v2474 = vld [vmem:[%s11] sm:$0x1]
    %v2475 = vld [vmem:[%s11 + $0x1] sm:$0x1]
    %v2476 = vld [vmem:[%s11 + $0x2] sm:$0x1]
    %v2477 = vld [vmem:[%s11 + $0x3] sm:$0x1]
    %v2482 = vlaneseq
    %v2483 = vshrl.u32 %v2482, 7
    %v2484 = vsub.s32 0, %v2483
    %v2485 = vrot.slane %v2474, %v2484
    %v2486 = vlaneseq
    %v2487 = vshrl.u32 %v2486, 7
    %v2488 = vsub.s32 0, %v2487
    %v2489 = vrot.slane %v2475, %v2488
    %v2490 = vlaneseq
    %v2491 = vshrl.u32 %v2490, 7
    %v2492 = vsub.s32 0, %v2491
    %v2493 = vrot.slane %v2476, %v2492
    %v2494 = vlaneseq
    %v2495 = vshrl.u32 %v2494, 7
    %v2496 = vsub.s32 0, %v2495
    %v2497 = vrot.slane %v2477, %v2496
    %v2502 = vmul.f32 %v2453, %v2485
    %v2503 = vmul.f32 %v2459, %v2489
    %v2504 = vmul.f32 %v2465, %v2493
    %v2505 = vmul.f32 %v2471, %v2497
    %v2506 = vld [vmem:[%s12] sm:$0x1]
    %v2507 = vld [vmem:[%s12 + $0x1] sm:$0x1]
    %v2508 = vld [vmem:[%s12 + $0x2] sm:$0x1]
    %v2509 = vld [vmem:[%s12 + $0x3] sm:$0x1]
    %v2514 = vlaneseq
    %v2515 = vshrl.u32 %v2514, 7
    %v2516 = vsub.s32 0, %v2515
    %v2517 = vrot.slane %v2506, %v2516
    %v2518 = vlaneseq
    %v2519 = vshrl.u32 %v2518, 7
    %v2520 = vsub.s32 0, %v2519
    %v2521 = vrot.slane %v2507, %v2520
    %v2522 = vlaneseq
    %v2523 = vshrl.u32 %v2522, 7
    %v2524 = vsub.s32 0, %v2523
    %v2525 = vrot.slane %v2508, %v2524
    %v2526 = vlaneseq
    %v2527 = vshrl.u32 %v2526, 7
    %v2528 = vsub.s32 0, %v2527
    %v2529 = vrot.slane %v2509, %v2528
    %v2534 = vadd.f32 %v2502, %v2517
    %v2535 = vadd.f32 %v2503, %v2521
    %v2536 = vadd.f32 %v2504, %v2525
    %v2537 = vadd.f32 %v2505, %v2529
    %2538 = vst [vmem:[#allocation7] sm:$0xff] %v2534
    %2539 = vst [vmem:[#allocation7 + $0x8] sm:$0xff] %v2535
    %2540 = vst [vmem:[#allocation7 + $0x10] sm:$0xff] %v2536
    %2541 = vst [vmem:[#allocation7 + $0x18] sm:$0xff] %v2537
    // Predicated region
    $region62: #{tpu_custom_call.1} parent=1 // pred_check
      _
    $region63: #{tpu_custom_call.1} parent=1 // pred_check_branch
      %2543 = sbr.rel (0) target = $region65
    $region64: #{tpu_custom_call.1} parent=1 // pred_region
      %s2545 = ssub.s32 512, 512
      %2546 = vsyncadd [#allocation4], %s2545
      %s2547 = sshll.u32 [#allocation7], 4
      %s2548 = int_to_ptr.vmem [resolvable:$true] %s2547
      %2553 = dma.vmem_to_hbm [thread:$0]  %s2548, 512, %s13, [#allocation4], 128, 128, 8
    $region65: #{tpu_custom_call.1} parent=1 // pred_fallthru
      _
    // Predicated region
    $region66: #{tpu_custom_call.1} parent=1 // pred_check
      _
    $region67: #{tpu_custom_call.1} parent=1 // pred_check_branch
      %2555 = sbr.rel (0) target = $region69
    $region68: #{tpu_custom_call.1} parent=1 // pred_region
      %2556 = dma.done [#allocation4], 512
    $region69: #{tpu_custom_call.1} parent=1 // pred_fallthru
      _
    %2557 = vsyncpa [#allocation3], 1
    %2558 = vsyncpa [#allocation6], 1
    %2559 = vsyncpa [#allocation4], 1

</llo_original>
